<compile_context>
chip_gen: v5e
topology: v5e:2x2
jax: 0.10.0
libtpu: 0.0.40
codegen_flags: <defaults>
</compile_context>

<pallas_src>
import functools

import jax
import jax.numpy as jnp
from jax.experimental import pallas as pl
from jax.experimental.pallas import tpu as pltpu

IN_DIM = 28 * 28          # 784
HIDDEN_DIM = 2000
OUT_DIM = 10

HIDDEN_PAD = 2048         # 2000 -> multiple of 128 (lane-dense W1 / h)
OUT_PAD = 128             # 10   -> 128            (lane-dense output store)


def _cdiv(a, b):
    return (a + b - 1) // b


def _round_up(n, m):
    return ((n + m - 1) // m) * m


def mlp_kernel(x_ref, w1_ref, b1_ref, w2_ref, b2_ref, o_ref):
    # x_ref : (TB, IN_DIM)          f32  (cast to bf16 in-kernel)
    # w1_ref: (IN_DIM, HIDDEN_PAD)  bf16 (grid-invariant, VMEM-resident)
    # b1_ref: (1, HIDDEN_PAD)       f32  (grid-invariant)
    # w2_ref: (HIDDEN_PAD, OUT_PAD) bf16 (grid-invariant)
    # b2_ref: (1, OUT_PAD)          f32  (grid-invariant)
    # o_ref : (TB, OUT_PAD)         f32  finished logits (lane-dense store)
    x = x_ref[...].astype(jnp.bfloat16)
    h = jnp.dot(x, w1_ref[...], preferred_element_type=jnp.float32)
    h = jnp.maximum(h + b1_ref[...], 0.0).astype(jnp.bfloat16)   # ReLU, bf16 stream
    out = jnp.dot(h, w2_ref[...], preferred_element_type=jnp.float32) + b2_ref[...]
    o_ref[...] = out.astype(o_ref.dtype)


def prepare_params(w1, b1, w2, b2):
    """Zero-pad to lane-aligned shapes; cast streamed weights to bf16."""
    w1 = jnp.asarray(w1, jnp.float32).reshape(IN_DIM, HIDDEN_DIM)
    b1 = jnp.asarray(b1, jnp.float32).reshape(1, HIDDEN_DIM)
    w2 = jnp.asarray(w2, jnp.float32).reshape(HIDDEN_DIM, OUT_DIM)
    b2 = jnp.asarray(b2, jnp.float32).reshape(1, OUT_DIM)

    w1p = (jnp.zeros((IN_DIM, HIDDEN_PAD), jnp.bfloat16)
           .at[:, :HIDDEN_DIM].set(w1.astype(jnp.bfloat16)))
    b1p = jnp.zeros((1, HIDDEN_PAD), jnp.float32).at[:, :HIDDEN_DIM].set(b1)
    w2p = (jnp.zeros((HIDDEN_PAD, OUT_PAD), jnp.bfloat16)
           .at[:HIDDEN_DIM, :OUT_DIM].set(w2.astype(jnp.bfloat16)))
    b2p = jnp.zeros((1, OUT_PAD), jnp.float32).at[:, :OUT_DIM].set(b2)
    return w1p, b1p, w2p, b2p


@functools.partial(jax.jit, static_argnames=("tb",))
def mlp_forward(x_nchw, w1p, b1p, w2p, b2p, *, tb=512):
    """x_nchw: (B, 1, 28, 28) float32 -> (B, 10) float32."""
    B = x_nchw.shape[0]
    x = x_nchw.reshape(B, IN_DIM)                 # free view; stays f32

    # Balanced batch tiling: minimize padding, keep TB a multiple of 16
    # (bf16 sublane pair for the in-kernel cast).
    nb = max(1, _cdiv(B, tb))
    TB = _round_up(_cdiv(B, nb), 16)
    Bp = nb * TB
    if Bp != B:
        x = jnp.pad(x, ((0, Bp - B), (0, 0)))

    out_pad = pl.pallas_call(
        mlp_kernel,
        out_shape=jax.ShapeDtypeStruct((Bp, OUT_PAD), jnp.float32),
        grid=(nb,),
        in_specs=[
            pl.BlockSpec((TB, IN_DIM), lambda i: (i, 0)),          # x: batch-tiled
            pl.BlockSpec((IN_DIM, HIDDEN_PAD), lambda i: (0, 0)),  # W1: resident
            pl.BlockSpec((1, HIDDEN_PAD), lambda i: (0, 0)),       # b1: resident
            pl.BlockSpec((HIDDEN_PAD, OUT_PAD), lambda i: (0, 0)), # W2: resident
            pl.BlockSpec((1, OUT_PAD), lambda i: (0, 0)),          # b2: resident
        ],
        out_specs=pl.BlockSpec((TB, OUT_PAD), lambda i: (i, 0)),
        compiler_params=pltpu.CompilerParams(
            dimension_semantics=("parallel",),
            vmem_limit_bytes=32 << 20,
        ),
    )(x, w1p, b1p, w2p, b2p)

    # Drop batch/lane padding (cheap slice; logits already include b2).
    return out_pad[:B, :OUT_DIM]


def init_params(key):
    """Torch nn.Linear-style init, stored as (in, out) f32 (unpadded)."""
    k1, k2, k3, k4 = jax.random.split(key, 4)
    lim1 = 1.0 / (IN_DIM ** 0.5)
    lim2 = 1.0 / (HIDDEN_DIM ** 0.5)
    w1 = jax.random.uniform(k1, (IN_DIM, HIDDEN_DIM), jnp.float32, -lim1, lim1)
    b1 = jax.random.uniform(k2, (1, HIDDEN_DIM), jnp.float32, -lim1, lim1)
    w2 = jax.random.uniform(k3, (HIDDEN_DIM, OUT_DIM), jnp.float32, -lim2, lim2)
    b2 = jax.random.uniform(k4, (1, OUT_DIM), jnp.float32, -lim2, lim2)
    return w1, b1, w2, b2


if __name__ == "__main__":
    key = jax.random.PRNGKey(0)
    kx, kp = jax.random.split(key)

    w1, b1, w2, b2 = init_params(kp)
    w1p, b1p, w2p, b2p = prepare_params(w1, b1, w2, b2)

    def ref_fwd(x_nchw):
        xf = x_nchw.reshape(x_nchw.shape[0], -1).astype(jnp.float32)
        return jnp.maximum(xf @ w1 + b1, 0.0) @ w2 + b2

    # Main check: B = 8 (MNIST-like NCHW input).
    B = 8
    x = jax.random.normal(kx, (B, 1, 28, 28), jnp.float32)
    out = jax.block_until_ready(mlp_forward(x, w1p, b1p, w2p, b2p))
    assert out.shape == (B, OUT_DIM)
    assert jnp.allclose(out, ref_fwd(x), atol=5e-2, rtol=5e-2), "mismatch at B=8"

    # Exercise the batch-padding path (B not a multiple of the tile).
    x3 = x[:3]
    out3 = jax.block_until_ready(mlp_forward(x3, w1p, b1p, w2p, b2p))
    assert out3.shape == (3, OUT_DIM)
    assert jnp.allclose(out3, ref_fwd(x3), atol=5e-2, rtol=5e-2), "mismatch at B=3"

    # Exercise a multi-tile grid (weights stay VMEM-resident across tiles).
    B2 = 600
    kx2, _ = jax.random.split(kx)
    xbig = jax.random.normal(kx2, (B2, 1, 28, 28), jnp.float32)
    outbig = jax.block_until_ready(mlp_forward(xbig, w1p, b1p, w2p, b2p, tb=256))
    assert outbig.shape == (B2, OUT_DIM)
    assert jnp.allclose(outbig, ref_fwd(xbig), atol=5e-2, rtol=5e-2), "mismatch at B=600"

    print("KERNEL_OK")
</pallas_src>

<mosaic_0001>
module attributes {stable_mosaic.version = 11 : i64} {
  func.func @mlp_kernel(%arg0: i32, %arg1: memref<16x784xf32, #tpu.memory_space<vmem>>, %arg2: memref<784x2048xbf16, #tpu.memory_space<vmem>>, %arg3: memref<1x2048xf32, #tpu.memory_space<vmem>>, %arg4: memref<2048x128xbf16, #tpu.memory_space<vmem>>, %arg5: memref<1x128xf32, #tpu.memory_space<vmem>>, %arg6: memref<16x128xf32, #tpu.memory_space<vmem>>) attributes {dimension_semantics = [#tpu.dimension_semantics<parallel>], iteration_bounds = array<i64: 1>, scalar_prefetch = 0 : i64, scratch_operands = 0 : i64, tpu.core_type = #tpu.core_type<tc>, window_params = [{transform_indices = @transform_0, window_bounds = array<i64: 16, 784>}, {pipeline_mode = #tpu.pipeline_mode<synchronous>, transform_indices = @transform_1, window_bounds = array<i64: 784, 2048>}, {pipeline_mode = #tpu.pipeline_mode<synchronous>, transform_indices = @transform_2, window_bounds = array<i64: 1, 2048>}, {pipeline_mode = #tpu.pipeline_mode<synchronous>, transform_indices = @transform_3, window_bounds = array<i64: 2048, 128>}, {pipeline_mode = #tpu.pipeline_mode<synchronous>, transform_indices = @transform_4, window_bounds = array<i64: 1, 128>}, {transform_indices = @transform_5, window_bounds = array<i64: 16, 128>}]} {
    %c0 = arith.constant 0 : index
    %c0_0 = arith.constant 0 : index
    %0 = vector.load %arg1[%c0, %c0_0] : memref<16x784xf32, #tpu.memory_space<vmem>>, vector<16x784xf32>
    %1 = arith.truncf %0 : vector<16x784xf32> to vector<16x784xbf16>
    %c0_1 = arith.constant 0 : index
    %c0_2 = arith.constant 0 : index
    %2 = vector.load %arg2[%c0_1, %c0_2] : memref<784x2048xbf16, #tpu.memory_space<vmem>>, vector<784x2048xbf16>
    %cst = arith.constant dense<0.000000e+00> : vector<16x2048xf32>
    %3 = tpu.matmul %1, %2, %cst {dimension_numbers = #tpu.dot_dimension_numbers<[1], [0], [0], [1], [0, 0, 1, 1], [], []>} : vector<16x784xbf16>, vector<784x2048xbf16>, vector<16x2048xf32> -> vector<16x2048xf32>
    %c0_3 = arith.constant 0 : index
    %c0_4 = arith.constant 0 : index
    %4 = vector.load %arg3[%c0_3, %c0_4] : memref<1x2048xf32, #tpu.memory_space<vmem>>, vector<1x2048xf32>
    %5 = vector.broadcast %4 : vector<1x2048xf32> to vector<16x2048xf32>
    %6 = arith.addf %3, %5 : vector<16x2048xf32>
    %cst_5 = arith.constant 0.000000e+00 : f32
    %7 = vector.broadcast %cst_5 : f32 to vector<16x2048xf32>
    %8 = arith.maximumf %6, %7 : vector<16x2048xf32>
    %9 = arith.truncf %8 : vector<16x2048xf32> to vector<16x2048xbf16>
    %c0_6 = arith.constant 0 : index
    %c0_7 = arith.constant 0 : index
    %10 = vector.load %arg4[%c0_6, %c0_7] : memref<2048x128xbf16, #tpu.memory_space<vmem>>, vector<2048x128xbf16>
    %cst_8 = arith.constant dense<0.000000e+00> : vector<16x128xf32>
    %11 = tpu.matmul %9, %10, %cst_8 {dimension_numbers = #tpu.dot_dimension_numbers<[1], [0], [0], [1], [0, 0, 1, 1], [], []>} : vector<16x2048xbf16>, vector<2048x128xbf16>, vector<16x128xf32> -> vector<16x128xf32>
    %c0_9 = arith.constant 0 : index
    %c0_10 = arith.constant 0 : index
    %12 = vector.load %arg5[%c0_9, %c0_10] : memref<1x128xf32, #tpu.memory_space<vmem>>, vector<1x128xf32>
    %13 = vector.broadcast %12 : vector<1x128xf32> to vector<16x128xf32>
    %14 = arith.addf %11, %13 : vector<16x128xf32>
    %c0_11 = arith.constant 0 : index
    %c0_12 = arith.constant 0 : index
    %15 = vector.load %arg6[%c0_11, %c0_12] : memref<16x128xf32, #tpu.memory_space<vmem>>, vector<16x128xf32>
    tpu.vector_store %arg6[%c0_11, %c0_12], %14 {strides = array<i32>} : memref<16x128xf32, #tpu.memory_space<vmem>>, vector<16x128xf32>,
    return
  }
  func.func @transform_0(%arg0: i32) -> (i32, i32) {
    %c0_i32 = arith.constant 0 : i32
    %c0_i32_0 = arith.constant 0 : i32
    return %arg0, %c0_i32 : i32, i32
  }
  func.func @transform_1(%arg0: i32) -> (i32, i32) {
    %c0_i32 = arith.constant 0 : i32
    %c0_i32_0 = arith.constant 0 : i32
    %c0_i32_1 = arith.constant 0 : i32
    return %c0_i32, %c0_i32_0 : i32, i32
  }
  func.func @transform_2(%arg0: i32) -> (i32, i32) {
    %c0_i32 = arith.constant 0 : i32
    %c0_i32_0 = arith.constant 0 : i32
    %c0_i32_1 = arith.constant 0 : i32
    return %c0_i32, %c0_i32_0 : i32, i32
  }
  func.func @transform_3(%arg0: i32) -> (i32, i32) {
    %c0_i32 = arith.constant 0 : i32
    %c0_i32_0 = arith.constant 0 : i32
    %c0_i32_1 = arith.constant 0 : i32
    return %c0_i32, %c0_i32_0 : i32, i32
  }
  func.func @transform_4(%arg0: i32) -> (i32, i32) {
    %c0_i32 = arith.constant 0 : i32
    %c0_i32_0 = arith.constant 0 : i32
    %c0_i32_1 = arith.constant 0 : i32
    return %c0_i32, %c0_i32_0 : i32, i32
  }
  func.func @transform_5(%arg0: i32) -> (i32, i32) {
    %c0_i32 = arith.constant 0 : i32
    %c0_i32_0 = arith.constant 0 : i32
    return %arg0, %c0_i32 : i32, i32
  }
}

</mosaic_0001>

<llo_original>
// kernel: mlp_forward.1
$region0: #{mlp_forward.1}
  #allocation0 [shape = 'u32[]', space=smem, size = 0x4, offset = 0x4, fixed_abs, tag = 'smem constant byte address 0x4 - core index']
  #allocation1 [shape = 'u32[72,128]{1,0:T(1,128)}', space=vmem, size = 0x9000, scoped, tag = 'internal scratch']
  %s0 = inlined_call_operand.vmem [shape: f32[16,784], index: 0, kind: input, shape index: {}]
  %s1 = inlined_call_operand.hbm [shape: bf16[784,2048], index: 1, kind: input, shape index: {}]
  %s2 = inlined_call_operand.hbm [shape: f32[1,2048], index: 2, kind: input, shape index: {}]
  %s3 = inlined_call_operand.hbm [shape: bf16[2048,128], index: 3, kind: input, shape index: {}]
  %s4 = inlined_call_operand.hbm [shape: f32[1,128], index: 4, kind: input, shape index: {}]
  %s5 = inlined_call_operand.vmem [shape: f32[16,128], index: 5, kind: output, shape index: {}]
  %s6 = sld [smem:[#allocation0]]
  $region46: #{mlp_forward.1} parent=0
    _
  %s8 = ssub.s32 1, %s6
  %s9 = scalar_select 0, %s8, %s6
  $region1: #{mlp_forward.1} parent=0
    #allocation2 [shape = 'u8[3211264]{0}', space=vmem, size = 0x310000, scoped, tag = 'input window, operand 1, single buffered']
    #allocation3 [shape = 's32[1]{0}', space=sflag, size = 0x4, scoped, tag = 'scoped memory for mlp_forward.1']
    #allocation4 [shape = 'u8[8192]{0}', space=vmem, size = 0x2000, scoped, tag = 'input window, operand 2, single buffered']
    #allocation5 [shape = 's32[1]{0}', space=sflag, size = 0x4, scoped, tag = 'scoped memory for mlp_forward.1']
    #allocation6 [shape = 'u8[524288]{0}', space=vmem, size = 0x80000, scoped, tag = 'input window, operand 3, single buffered']
    #allocation7 [shape = 'u8[512]{0}', space=vmem, size = 0x400, scoped, tag = 'input window, operand 4, single buffered']
    #allocation8 [shape = 's32[1]{0}', space=sflag, size = 0x4, scoped, tag = 'scoped memory for mlp_forward.1']
    %10 = vsyncpa [#allocation3], 0
    %11 = vsyncpa [#allocation5], 0
    %12 = vsyncpa [#allocation8], 0
    // Predicated region
    $region2: #{mlp_forward.1} parent=1 // pred_check
      _
    $region3: #{mlp_forward.1} parent=1 // pred_check_branch
      %14 = sbr.rel (0) target = $region5
    $region4: #{mlp_forward.1} parent=1 // pred_region
      _
    $region5: #{mlp_forward.1} parent=1 // pred_fallthru
      _
    // Predicated region
    $region6: #{mlp_forward.1} parent=1 // pred_check
      _
    $region7: #{mlp_forward.1} parent=1 // pred_check_branch
      %16 = sbr.rel (0) target = $region9
    $region8: #{mlp_forward.1} parent=1 // pred_region
      %18 = vsyncadd [#allocation3], 0
      %s19 = sshll.u32 %s1, 4
      %s20 = int_to_ptr.hbm [resolvable:$true] %s19
      %s21 = sshll.u32 [#allocation2], 4
      %s22 = int_to_ptr.vmem [resolvable:$true] %s21
      %27 = dma.hbm_to_vmem [thread:$0]  %s20, 100352, %s22, [#allocation3], 1024, 1024, 64
    $region9: #{mlp_forward.1} parent=1 // pred_fallthru
      _
    // Predicated region
    $region10: #{mlp_forward.1} parent=1 // pred_check
      _
    $region11: #{mlp_forward.1} parent=1 // pred_check_branch
      %29 = sbr.rel (0) target = $region13
    $region12: #{mlp_forward.1} parent=1 // pred_region
      %31 = vsyncadd [#allocation5], 0
      %s33 = sshll.u32 %s2, 4
      %s34 = int_to_ptr.hbm [resolvable:$true] %s33
      %s35 = sshll.u32 [#allocation4], 4
      %s36 = int_to_ptr.vmem [resolvable:$true] %s35
      %38 = dma.hbm_to_vmem [thread:$0]  %s34, 256, %s36, [#allocation5]
    $region13: #{mlp_forward.1} parent=1 // pred_fallthru
      _
    // Predicated region
    $region14: #{mlp_forward.1} parent=1 // pred_check
      _
    $region15: #{mlp_forward.1} parent=1 // pred_check_branch
      %40 = sbr.rel (0) target = $region17
    $region16: #{mlp_forward.1} parent=1 // pred_region
      %42 = vsyncadd [#allocation5], 0
      %s43 = sshll.u32 %s3, 4
      %s44 = int_to_ptr.hbm [resolvable:$true] %s43
      %s45 = sshll.u32 [#allocation6], 4
      %s46 = int_to_ptr.vmem [resolvable:$true] %s45
      %51 = dma.hbm_to_vmem [thread:$0]  %s44, 16384, %s46, [#allocation5], 64, 64, 4
    $region17: #{mlp_forward.1} parent=1 // pred_fallthru
      _
    // Predicated region
    $region18: #{mlp_forward.1} parent=1 // pred_check
      _
    $region19: #{mlp_forward.1} parent=1 // pred_check_branch
      %53 = sbr.rel (0) target = $region21
    $region20: #{mlp_forward.1} parent=1 // pred_region
      %55 = vsyncadd [#allocation8], 0
      %s57 = sshll.u32 %s4, 4
      %s58 = int_to_ptr.hbm [resolvable:$true] %s57
      %s59 = sshll.u32 [#allocation7], 4
      %s60 = int_to_ptr.vmem [resolvable:$true] %s59
      %62 = dma.hbm_to_vmem [thread:$0]  %s58, 16, %s60, [#allocation8]
    $region21: #{mlp_forward.1} parent=1 // pred_fallthru
      _
    // Predicated region
    $region22: #{mlp_forward.1} parent=1 // pred_check
      _
    $region23: #{mlp_forward.1} parent=1 // pred_check_branch
      %64 = sbr.rel (0) target = $region25
    $region24: #{mlp_forward.1} parent=1 // pred_region
      %66 = dma.done [#allocation3], 100352
    $region25: #{mlp_forward.1} parent=1 // pred_fallthru
      _
    // Predicated region
    $region26: #{mlp_forward.1} parent=1 // pred_check
      _
    $region27: #{mlp_forward.1} parent=1 // pred_check_branch
      %68 = sbr.rel (0) target = $region29
    $region28: #{mlp_forward.1} parent=1 // pred_region
      %70 = dma.done [#allocation5], 256
    $region29: #{mlp_forward.1} parent=1 // pred_fallthru
      _
    // Predicated region
    $region30: #{mlp_forward.1} parent=1 // pred_check
      _
    $region31: #{mlp_forward.1} parent=1 // pred_check_branch
      %72 = sbr.rel (0) target = $region33
    $region32: #{mlp_forward.1} parent=1 // pred_region
      %74 = dma.done [#allocation5], 16384
    $region33: #{mlp_forward.1} parent=1 // pred_fallthru
      _
    // Predicated region
    $region34: #{mlp_forward.1} parent=1 // pred_check
      _
    $region35: #{mlp_forward.1} parent=1 // pred_check_branch
      %76 = sbr.rel (0) target = $region37
    $region36: #{mlp_forward.1} parent=1 // pred_region
      %78 = dma.done [#allocation8], 16
    $region37: #{mlp_forward.1} parent=1 // pred_fallthru
      _
    %v80 = vld [vmem:[%s0] sm:$0xff]
    %v81 = vld [vmem:[%s0 + $0x8] sm:$0xff]
    %v82 = vld [vmem:[%s0 + $0x10] sm:$0xff]
    %v83 = vld [vmem:[%s0 + $0x18] sm:$0xff]
    %v84 = vld [vmem:[%s0 + $0x20] sm:$0xff]
    %v85 = vld [vmem:[%s0 + $0x28] sm:$0xff]
    %v86 = vld [vmem:[%s0 + $0x30] sm:$0xff]
    %v87 = vld [vmem:[%s0 + $0x38] sm:$0xff]
    %v88 = vld [vmem:[%s0 + $0x40] sm:$0xff]
    %v89 = vld [vmem:[%s0 + $0x48] sm:$0xff]
    %v90 = vld [vmem:[%s0 + $0x50] sm:$0xff]
    %v91 = vld [vmem:[%s0 + $0x58] sm:$0xff]
    %v92 = vld [vmem:[%s0 + $0x60] sm:$0xff]
    %v93 = vld [vmem:[%s0 + $0x68] sm:$0xff]
    %v94 = vpack.c.bf16 %v87, %v80
    %v95 = vpack.c.bf16 %v88, %v81
    %v96 = vpack.c.bf16 %v89, %v82
    %v97 = vpack.c.bf16 %v90, %v83
    %v98 = vpack.c.bf16 %v91, %v84
    %v99 = vpack.c.bf16 %v92, %v85
    %v100 = vpack.c.bf16 %v93, %v86
    %v101 = vld [vmem:[#allocation2] sm:$0xff]
    %v102 = vld [vmem:[#allocation2 + $0x8] sm:$0xff]
    %v103 = vld [vmem:[#allocation2 + $0x10] sm:$0xff]
    %v104 = vld [vmem:[#allocation2 + $0x18] sm:$0xff]
    %v105 = vld [vmem:[#allocation2 + $0x20] sm:$0xff]
    %v106 = vld [vmem:[#allocation2 + $0x28] sm:$0xff]
    %v107 = vld [vmem:[#allocation2 + $0x30] sm:$0xff]
    %v108 = vld [vmem:[#allocation2 + $0x38] sm:$0xff]
    %v109 = vld [vmem:[#allocation2 + $0x40] sm:$0xff]
    %v110 = vld [vmem:[#allocation2 + $0x48] sm:$0xff]
    %v111 = vld [vmem:[#allocation2 + $0x50] sm:$0xff]
    %v112 = vld [vmem:[#allocation2 + $0x58] sm:$0xff]
    %v113 = vld [vmem:[#allocation2 + $0x60] sm:$0xff]
    %v114 = vld [vmem:[#allocation2 + $0x68] sm:$0xff]
    %v115 = vld [vmem:[#allocation2 + $0x70] sm:$0xff]
    %v116 = vld [vmem:[#allocation2 + $0x78] sm:$0xff]
    %v117 = vld [vmem:[#allocation2 + $0x80] sm:$0xff]
    %v118 = vld [vmem:[#allocation2 + $0x88] sm:$0xff]
    %v119 = vld [vmem:[#allocation2 + $0x90] sm:$0xff]
    %v120 = vld [vmem:[#allocation2 + $0x98] sm:$0xff]
    %v121 = vld [vmem:[#allocation2 + $0xa0] sm:$0xff]
    %v122 = vld [vmem:[#allocation2 + $0xa8] sm:$0xff]
    %v123 = vld [vmem:[#allocation2 + $0xb0] sm:$0xff]
    %v124 = vld [vmem:[#allocation2 + $0xb8] sm:$0xff]
    %v125 = vld [vmem:[#allocation2 + $0xc0] sm:$0xff]
    %v126 = vld [vmem:[#allocation2 + $0xc8] sm:$0xff]
    %v127 = vld [vmem:[#allocation2 + $0xd0] sm:$0xff]
    %v128 = vld [vmem:[#allocation2 + $0xd8] sm:$0xff]
    %v129 = vld [vmem:[#allocation2 + $0xe0] sm:$0xff]
    %v130 = vld [vmem:[#allocation2 + $0xe8] sm:$0xff]
    %v131 = vld [vmem:[#allocation2 + $0xf0] sm:$0xff]
    %v132 = vld [vmem:[#allocation2 + $0xf8] sm:$0xff]
    %v133 = vld [vmem:[#allocation2 + $0x100] sm:$0xff]
    %v134 = vld [vmem:[#allocation2 + $0x108] sm:$0xff]
    %v135 = vld [vmem:[#allocation2 + $0x110] sm:$0xff]
    %v136 = vld [vmem:[#allocation2 + $0x118] sm:$0xff]
    %v137 = vld [vmem:[#allocation2 + $0x120] sm:$0xff]
    %v138 = vld [vmem:[#allocation2 + $0x128] sm:$0xff]
    %v139 = vld [vmem:[#allocation2 + $0x130] sm:$0xff]
    %v140 = vld [vmem:[#allocation2 + $0x138] sm:$0xff]
    %v141 = vld [vmem:[#allocation2 + $0x140] sm:$0xff]
    %v142 = vld [vmem:[#allocation2 + $0x148] sm:$0xff]
    %v143 = vld [vmem:[#allocation2 + $0x150] sm:$0xff]
    %v144 = vld [vmem:[#allocation2 + $0x158] sm:$0xff]
    %v145 = vld [vmem:[#allocation2 + $0x160] sm:$0xff]
    %v146 = vld [vmem:[#allocation2 + $0x168] sm:$0xff]
    %v147 = vld [vmem:[#allocation2 + $0x170] sm:$0xff]
    %v148 = vld [vmem:[#allocation2 + $0x178] sm:$0xff]
    %v149 = vld [vmem:[#allocation2 + $0x180] sm:$0xff]
    %v150 = vld [vmem:[#allocation2 + $0x188] sm:$0xff]
    %v151 = vld [vmem:[#allocation2 + $0x190] sm:$0xff]
    %v152 = vld [vmem:[#allocation2 + $0x198] sm:$0xff]
    %v153 = vld [vmem:[#allocation2 + $0x1a0] sm:$0xff]
    %v154 = vld [vmem:[#allocation2 + $0x1a8] sm:$0xff]
    %v155 = vld [vmem:[#allocation2 + $0x1b0] sm:$0xff]
    %v156 = vld [vmem:[#allocation2 + $0x1b8] sm:$0xff]
    %v157 = vld [vmem:[#allocation2 + $0x1c0] sm:$0xff]
    %v158 = vld [vmem:[#allocation2 + $0x1c8] sm:$0xff]
    %v159 = vld [vmem:[#allocation2 + $0x1d0] sm:$0xff]
    %v160 = vld [vmem:[#allocation2 + $0x1d8] sm:$0xff]
    %v161 = vld [vmem:[#allocation2 + $0x1e0] sm:$0xff]
    %v162 = vld [vmem:[#allocation2 + $0x1e8] sm:$0xff]
    %v163 = vld [vmem:[#allocation2 + $0x1f0] sm:$0xff]
    %v164 = vld [vmem:[#allocation2 + $0x1f8] sm:$0xff]
    %v165 = vld [vmem:[#allocation2 + $0x200] sm:$0xff]
    %v166 = vld [vmem:[#allocation2 + $0x208] sm:$0xff]
    %v167 = vld [vmem:[#allocation2 + $0x210] sm:$0xff]
    %v168 = vld [vmem:[#allocation2 + $0x218] sm:$0xff]
    %v169 = vld [vmem:[#allocation2 + $0x220] sm:$0xff]
    %v170 = vld [vmem:[#allocation2 + $0x228] sm:$0xff]
    %v171 = vld [vmem:[#allocation2 + $0x230] sm:$0xff]
    %v172 = vld [vmem:[#allocation2 + $0x238] sm:$0xff]
    %v173 = vld [vmem:[#allocation2 + $0x240] sm:$0xff]
    %v174 = vld [vmem:[#allocation2 + $0x248] sm:$0xff]
    %v175 = vld [vmem:[#allocation2 + $0x250] sm:$0xff]
    %v176 = vld [vmem:[#allocation2 + $0x258] sm:$0xff]
    %v177 = vld [vmem:[#allocation2 + $0x260] sm:$0xff]
    %v178 = vld [vmem:[#allocation2 + $0x268] sm:$0xff]
    %v179 = vld [vmem:[#allocation2 + $0x270] sm:$0xff]
    %v180 = vld [vmem:[#allocation2 + $0x278] sm:$0xff]
    %v181 = vld [vmem:[#allocation2 + $0x280] sm:$0xff]
    %v182 = vld [vmem:[#allocation2 + $0x288] sm:$0xff]
    %v183 = vld [vmem:[#allocation2 + $0x290] sm:$0xff]
    %v184 = vld [vmem:[#allocation2 + $0x298] sm:$0xff]
    %v185 = vld [vmem:[#allocation2 + $0x2a0] sm:$0xff]
    %v186 = vld [vmem:[#allocation2 + $0x2a8] sm:$0xff]
    %v187 = vld [vmem:[#allocation2 + $0x2b0] sm:$0xff]
    %v188 = vld [vmem:[#allocation2 + $0x2b8] sm:$0xff]
    %v189 = vld [vmem:[#allocation2 + $0x2c0] sm:$0xff]
    %v190 = vld [vmem:[#allocation2 + $0x2c8] sm:$0xff]
    %v191 = vld [vmem:[#allocation2 + $0x2d0] sm:$0xff]
    %v192 = vld [vmem:[#allocation2 + $0x2d8] sm:$0xff]
    %v193 = vld [vmem:[#allocation2 + $0x2e0] sm:$0xff]
    %v194 = vld [vmem:[#allocation2 + $0x2e8] sm:$0xff]
    %v195 = vld [vmem:[#allocation2 + $0x2f0] sm:$0xff]
    %v196 = vld [vmem:[#allocation2 + $0x2f8] sm:$0xff]
    %v197 = vld [vmem:[#allocation2 + $0x300] sm:$0xff]
    %v198 = vld [vmem:[#allocation2 + $0x308] sm:$0xff]
    %v199 = vld [vmem:[#allocation2 + $0x310] sm:$0xff]
    %v200 = vld [vmem:[#allocation2 + $0x318] sm:$0xff]
    %v201 = vld [vmem:[#allocation2 + $0x320] sm:$0xff]
    %v202 = vld [vmem:[#allocation2 + $0x328] sm:$0xff]
    %v203 = vld [vmem:[#allocation2 + $0x330] sm:$0xff]
    %v204 = vld [vmem:[#allocation2 + $0x338] sm:$0xff]
    %v205 = vld [vmem:[#allocation2 + $0x340] sm:$0xff]
    %v206 = vld [vmem:[#allocation2 + $0x348] sm:$0xff]
    %v207 = vld [vmem:[#allocation2 + $0x350] sm:$0xff]
    %v208 = vld [vmem:[#allocation2 + $0x358] sm:$0xff]
    %v209 = vld [vmem:[#allocation2 + $0x360] sm:$0xff]
    %v210 = vld [vmem:[#allocation2 + $0x368] sm:$0xff]
    %v211 = vld [vmem:[#allocation2 + $0x370] sm:$0xff]
    %v212 = vld [vmem:[#allocation2 + $0x378] sm:$0xff]
    %v213 = vld [vmem:[#allocation2 + $0x380] sm:$0xff]
    %v214 = vld [vmem:[#allocation2 + $0x388] sm:$0xff]
    %v215 = vld [vmem:[#allocation2 + $0x390] sm:$0xff]
    %v216 = vld [vmem:[#allocation2 + $0x398] sm:$0xff]
    %v217 = vld [vmem:[#allocation2 + $0x3a0] sm:$0xff]
    %v218 = vld [vmem:[#allocation2 + $0x3a8] sm:$0xff]
    %v219 = vld [vmem:[#allocation2 + $0x3b0] sm:$0xff]
    %v220 = vld [vmem:[#allocation2 + $0x3b8] sm:$0xff]
    %v221 = vld [vmem:[#allocation2 + $0x3c0] sm:$0xff]
    %v222 = vld [vmem:[#allocation2 + $0x3c8] sm:$0xff]
    %v223 = vld [vmem:[#allocation2 + $0x3d0] sm:$0xff]
    %v224 = vld [vmem:[#allocation2 + $0x3d8] sm:$0xff]
    %v225 = vld [vmem:[#allocation2 + $0x3e0] sm:$0xff]
    %v226 = vld [vmem:[#allocation2 + $0x3e8] sm:$0xff]
    %v227 = vld [vmem:[#allocation2 + $0x3f0] sm:$0xff]
    %v228 = vld [vmem:[#allocation2 + $0x3f8] sm:$0xff]
    %v229 = vld [vmem:[#allocation2 + $0x400] sm:$0xff]
    %v230 = vld [vmem:[#allocation2 + $0x408] sm:$0xff]
    %v231 = vld [vmem:[#allocation2 + $0x410] sm:$0xff]
    %v232 = vld [vmem:[#allocation2 + $0x418] sm:$0xff]
    %v233 = vld [vmem:[#allocation2 + $0x420] sm:$0xff]
    %v234 = vld [vmem:[#allocation2 + $0x428] sm:$0xff]
    %v235 = vld [vmem:[#allocation2 + $0x430] sm:$0xff]
    %v236 = vld [vmem:[#allocation2 + $0x438] sm:$0xff]
    %v237 = vld [vmem:[#allocation2 + $0x440] sm:$0xff]
    %v238 = vld [vmem:[#allocation2 + $0x448] sm:$0xff]
    %v239 = vld [vmem:[#allocation2 + $0x450] sm:$0xff]
    %v240 = vld [vmem:[#allocation2 + $0x458] sm:$0xff]
    %v241 = vld [vmem:[#allocation2 + $0x460] sm:$0xff]
    %v242 = vld [vmem:[#allocation2 + $0x468] sm:$0xff]
    %v243 = vld [vmem:[#allocation2 + $0x470] sm:$0xff]
    %v244 = vld [vmem:[#allocation2 + $0x478] sm:$0xff]
    %v245 = vld [vmem:[#allocation2 + $0x480] sm:$0xff]
    %v246 = vld [vmem:[#allocation2 + $0x488] sm:$0xff]
    %v247 = vld [vmem:[#allocation2 + $0x490] sm:$0xff]
    %v248 = vld [vmem:[#allocation2 + $0x498] sm:$0xff]
    %v249 = vld [vmem:[#allocation2 + $0x4a0] sm:$0xff]
    %v250 = vld [vmem:[#allocation2 + $0x4a8] sm:$0xff]
    %v251 = vld [vmem:[#allocation2 + $0x4b0] sm:$0xff]
    %v252 = vld [vmem:[#allocation2 + $0x4b8] sm:$0xff]
    %v253 = vld [vmem:[#allocation2 + $0x4c0] sm:$0xff]
    %v254 = vld [vmem:[#allocation2 + $0x4c8] sm:$0xff]
    %v255 = vld [vmem:[#allocation2 + $0x4d0] sm:$0xff]
    %v256 = vld [vmem:[#allocation2 + $0x4d8] sm:$0xff]
    %v257 = vld [vmem:[#allocation2 + $0x4e0] sm:$0xff]
    %v258 = vld [vmem:[#allocation2 + $0x4e8] sm:$0xff]
    %v259 = vld [vmem:[#allocation2 + $0x4f0] sm:$0xff]
    %v260 = vld [vmem:[#allocation2 + $0x4f8] sm:$0xff]
    %v261 = vld [vmem:[#allocation2 + $0x500] sm:$0xff]
    %v262 = vld [vmem:[#allocation2 + $0x508] sm:$0xff]
    %v263 = vld [vmem:[#allocation2 + $0x510] sm:$0xff]
    %v264 = vld [vmem:[#allocation2 + $0x518] sm:$0xff]
    %v265 = vld [vmem:[#allocation2 + $0x520] sm:$0xff]
    %v266 = vld [vmem:[#allocation2 + $0x528] sm:$0xff]
    %v267 = vld [vmem:[#allocation2 + $0x530] sm:$0xff]
    %v268 = vld [vmem:[#allocation2 + $0x538] sm:$0xff]
    %v269 = vld [vmem:[#allocation2 + $0x540] sm:$0xff]
    %v270 = vld [vmem:[#allocation2 + $0x548] sm:$0xff]
    %v271 = vld [vmem:[#allocation2 + $0x550] sm:$0xff]
    %v272 = vld [vmem:[#allocation2 + $0x558] sm:$0xff]
    %v273 = vld [vmem:[#allocation2 + $0x560] sm:$0xff]
    %v274 = vld [vmem:[#allocation2 + $0x568] sm:$0xff]
    %v275 = vld [vmem:[#allocation2 + $0x570] sm:$0xff]
    %v276 = vld [vmem:[#allocation2 + $0x578] sm:$0xff]
    %v277 = vld [vmem:[#allocation2 + $0x580] sm:$0xff]
    %v278 = vld [vmem:[#allocation2 + $0x588] sm:$0xff]
    %v279 = vld [vmem:[#allocation2 + $0x590] sm:$0xff]
    %v280 = vld [vmem:[#allocation2 + $0x598] sm:$0xff]
    %v281 = vld [vmem:[#allocation2 + $0x5a0] sm:$0xff]
    %v282 = vld [vmem:[#allocation2 + $0x5a8] sm:$0xff]
    %v283 = vld [vmem:[#allocation2 + $0x5b0] sm:$0xff]
    %v284 = vld [vmem:[#allocation2 + $0x5b8] sm:$0xff]
    %v285 = vld [vmem:[#allocation2 + $0x5c0] sm:$0xff]
    %v286 = vld [vmem:[#allocation2 + $0x5c8] sm:$0xff]
    %v287 = vld [vmem:[#allocation2 + $0x5d0] sm:$0xff]
    %v288 = vld [vmem:[#allocation2 + $0x5d8] sm:$0xff]
    %v289 = vld [vmem:[#allocation2 + $0x5e0] sm:$0xff]
    %v290 = vld [vmem:[#allocation2 + $0x5e8] sm:$0xff]
    %v291 = vld [vmem:[#allocation2 + $0x5f0] sm:$0xff]
    %v292 = vld [vmem:[#allocation2 + $0x5f8] sm:$0xff]
    %v293 = vld [vmem:[#allocation2 + $0x600] sm:$0xff]
    %v294 = vld [vmem:[#allocation2 + $0x608] sm:$0xff]
    %v295 = vld [vmem:[#allocation2 + $0x610] sm:$0xff]
    %v296 = vld [vmem:[#allocation2 + $0x618] sm:$0xff]
    %v297 = vld [vmem:[#allocation2 + $0x620] sm:$0xff]
    %v298 = vld [vmem:[#allocation2 + $0x628] sm:$0xff]
    %v299 = vld [vmem:[#allocation2 + $0x630] sm:$0xff]
    %v300 = vld [vmem:[#allocation2 + $0x638] sm:$0xff]
    %v301 = vld [vmem:[#allocation2 + $0x640] sm:$0xff]
    %v302 = vld [vmem:[#allocation2 + $0x648] sm:$0xff]
    %v303 = vld [vmem:[#allocation2 + $0x650] sm:$0xff]
    %v304 = vld [vmem:[#allocation2 + $0x658] sm:$0xff]
    %v305 = vld [vmem:[#allocation2 + $0x660] sm:$0xff]
    %v306 = vld [vmem:[#allocation2 + $0x668] sm:$0xff]
    %v307 = vld [vmem:[#allocation2 + $0x670] sm:$0xff]
    %v308 = vld [vmem:[#allocation2 + $0x678] sm:$0xff]
    %v309 = vld [vmem:[#allocation2 + $0x680] sm:$0xff]
    %v310 = vld [vmem:[#allocation2 + $0x688] sm:$0xff]
    %v311 = vld [vmem:[#allocation2 + $0x690] sm:$0xff]
    %v312 = vld [vmem:[#allocation2 + $0x698] sm:$0xff]
    %v313 = vld [vmem:[#allocation2 + $0x6a0] sm:$0xff]
    %v314 = vld [vmem:[#allocation2 + $0x6a8] sm:$0xff]
    %v315 = vld [vmem:[#allocation2 + $0x6b0] sm:$0xff]
    %v316 = vld [vmem:[#allocation2 + $0x6b8] sm:$0xff]
    %v317 = vld [vmem:[#allocation2 + $0x6c0] sm:$0xff]
    %v318 = vld [vmem:[#allocation2 + $0x6c8] sm:$0xff]
    %v319 = vld [vmem:[#allocation2 + $0x6d0] sm:$0xff]
    %v320 = vld [vmem:[#allocation2 + $0x6d8] sm:$0xff]
    %v321 = vld [vmem:[#allocation2 + $0x6e0] sm:$0xff]
    %v322 = vld [vmem:[#allocation2 + $0x6e8] sm:$0xff]
    %v323 = vld [vmem:[#allocation2 + $0x6f0] sm:$0xff]
    %v324 = vld [vmem:[#allocation2 + $0x6f8] sm:$0xff]
    %v325 = vld [vmem:[#allocation2 + $0x700] sm:$0xff]
    %v326 = vld [vmem:[#allocation2 + $0x708] sm:$0xff]
    %v327 = vld [vmem:[#allocation2 + $0x710] sm:$0xff]
    %v328 = vld [vmem:[#allocation2 + $0x718] sm:$0xff]
    %v329 = vld [vmem:[#allocation2 + $0x720] sm:$0xff]
    %v330 = vld [vmem:[#allocation2 + $0x728] sm:$0xff]
    %v331 = vld [vmem:[#allocation2 + $0x730] sm:$0xff]
    %v332 = vld [vmem:[#allocation2 + $0x738] sm:$0xff]
    %v333 = vld [vmem:[#allocation2 + $0x740] sm:$0xff]
    %v334 = vld [vmem:[#allocation2 + $0x748] sm:$0xff]
    %v335 = vld [vmem:[#allocation2 + $0x750] sm:$0xff]
    %v336 = vld [vmem:[#allocation2 + $0x758] sm:$0xff]
    %v337 = vld [vmem:[#allocation2 + $0x760] sm:$0xff]
    %v338 = vld [vmem:[#allocation2 + $0x768] sm:$0xff]
    %v339 = vld [vmem:[#allocation2 + $0x770] sm:$0xff]
    %v340 = vld [vmem:[#allocation2 + $0x778] sm:$0xff]
    %v341 = vld [vmem:[#allocation2 + $0x780] sm:$0xff]
    %v342 = vld [vmem:[#allocation2 + $0x788] sm:$0xff]
    %v343 = vld [vmem:[#allocation2 + $0x790] sm:$0xff]
    %v344 = vld [vmem:[#allocation2 + $0x798] sm:$0xff]
    %v345 = vld [vmem:[#allocation2 + $0x7a0] sm:$0xff]
    %v346 = vld [vmem:[#allocation2 + $0x7a8] sm:$0xff]
    %v347 = vld [vmem:[#allocation2 + $0x7b0] sm:$0xff]
    %v348 = vld [vmem:[#allocation2 + $0x7b8] sm:$0xff]
    %v349 = vld [vmem:[#allocation2 + $0x7c0] sm:$0xff]
    %v350 = vld [vmem:[#allocation2 + $0x7c8] sm:$0xff]
    %v351 = vld [vmem:[#allocation2 + $0x7d0] sm:$0xff]
    %v352 = vld [vmem:[#allocation2 + $0x7d8] sm:$0xff]
    %v353 = vld [vmem:[#allocation2 + $0x7e0] sm:$0xff]
    %v354 = vld [vmem:[#allocation2 + $0x7e8] sm:$0xff]
    %v355 = vld [vmem:[#allocation2 + $0x7f0] sm:$0xff]
    %v356 = vld [vmem:[#allocation2 + $0x7f8] sm:$0xff]
    %v357 = vld [vmem:[#allocation2 + $0x800] sm:$0xff]
    %v358 = vld [vmem:[#allocation2 + $0x808] sm:$0xff]
    %v359 = vld [vmem:[#allocation2 + $0x810] sm:$0xff]
    %v360 = vld [vmem:[#allocation2 + $0x818] sm:$0xff]
    %v361 = vld [vmem:[#allocation2 + $0x820] sm:$0xff]
    %v362 = vld [vmem:[#allocation2 + $0x828] sm:$0xff]
    %v363 = vld [vmem:[#allocation2 + $0x830] sm:$0xff]
    %v364 = vld [vmem:[#allocation2 + $0x838] sm:$0xff]
    %v365 = vld [vmem:[#allocation2 + $0x840] sm:$0xff]
    %v366 = vld [vmem:[#allocation2 + $0x848] sm:$0xff]
    %v367 = vld [vmem:[#allocation2 + $0x850] sm:$0xff]
    %v368 = vld [vmem:[#allocation2 + $0x858] sm:$0xff]
    %v369 = vld [vmem:[#allocation2 + $0x860] sm:$0xff]
    %v370 = vld [vmem:[#allocation2 + $0x868] sm:$0xff]
    %v371 = vld [vmem:[#allocation2 + $0x870] sm:$0xff]
    %v372 = vld [vmem:[#allocation2 + $0x878] sm:$0xff]
    %v373 = vld [vmem:[#allocation2 + $0x880] sm:$0xff]
    %v374 = vld [vmem:[#allocation2 + $0x888] sm:$0xff]
    %v375 = vld [vmem:[#allocation2 + $0x890] sm:$0xff]
    %v376 = vld [vmem:[#allocation2 + $0x898] sm:$0xff]
    %v377 = vld [vmem:[#allocation2 + $0x8a0] sm:$0xff]
    %v378 = vld [vmem:[#allocation2 + $0x8a8] sm:$0xff]
    %v379 = vld [vmem:[#allocation2 + $0x8b0] sm:$0xff]
    %v380 = vld [vmem:[#allocation2 + $0x8b8] sm:$0xff]
    %v381 = vld [vmem:[#allocation2 + $0x8c0] sm:$0xff]
    %v382 = vld [vmem:[#allocation2 + $0x8c8] sm:$0xff]
    %v383 = vld [vmem:[#allocation2 + $0x8d0] sm:$0xff]
    %v384 = vld [vmem:[#allocation2 + $0x8d8] sm:$0xff]
    %v385 = vld [vmem:[#allocation2 + $0x8e0] sm:$0xff]
    %v386 = vld [vmem:[#allocation2 + $0x8e8] sm:$0xff]
    %v387 = vld [vmem:[#allocation2 + $0x8f0] sm:$0xff]
    %v388 = vld [vmem:[#allocation2 + $0x8f8] sm:$0xff]
    %v389 = vld [vmem:[#allocation2 + $0x900] sm:$0xff]
    %v390 = vld [vmem:[#allocation2 + $0x908] sm:$0xff]
    %v391 = vld [vmem:[#allocation2 + $0x910] sm:$0xff]
    %v392 = vld [vmem:[#allocation2 + $0x918] sm:$0xff]
    %v393 = vld [vmem:[#allocation2 + $0x920] sm:$0xff]
    %v394 = vld [vmem:[#allocation2 + $0x928] sm:$0xff]
    %v395 = vld [vmem:[#allocation2 + $0x930] sm:$0xff]
    %v396 = vld [vmem:[#allocation2 + $0x938] sm:$0xff]
    %v397 = vld [vmem:[#allocation2 + $0x940] sm:$0xff]
    %v398 = vld [vmem:[#allocation2 + $0x948] sm:$0xff]
    %v399 = vld [vmem:[#allocation2 + $0x950] sm:$0xff]
    %v400 = vld [vmem:[#allocation2 + $0x958] sm:$0xff]
    %v401 = vld [vmem:[#allocation2 + $0x960] sm:$0xff]
    %v402 = vld [vmem:[#allocation2 + $0x968] sm:$0xff]
    %v403 = vld [vmem:[#allocation2 + $0x970] sm:$0xff]
    %v404 = vld [vmem:[#allocation2 + $0x978] sm:$0xff]
    %v405 = vld [vmem:[#allocation2 + $0x980] sm:$0xff]
    %v406 = vld [vmem:[#allocation2 + $0x988] sm:$0xff]
    %v407 = vld [vmem:[#allocation2 + $0x990] sm:$0xff]
    %v408 = vld [vmem:[#allocation2 + $0x998] sm:$0xff]
    %v409 = vld [vmem:[#allocation2 + $0x9a0] sm:$0xff]
    %v410 = vld [vmem:[#allocation2 + $0x9a8] sm:$0xff]
    %v411 = vld [vmem:[#allocation2 + $0x9b0] sm:$0xff]
    %v412 = vld [vmem:[#allocation2 + $0x9b8] sm:$0xff]
    %v413 = vld [vmem:[#allocation2 + $0x9c0] sm:$0xff]
    %v414 = vld [vmem:[#allocation2 + $0x9c8] sm:$0xff]
    %v415 = vld [vmem:[#allocation2 + $0x9d0] sm:$0xff]
    %v416 = vld [vmem:[#allocation2 + $0x9d8] sm:$0xff]
    %v417 = vld [vmem:[#allocation2 + $0x9e0] sm:$0xff]
    %v418 = vld [vmem:[#allocation2 + $0x9e8] sm:$0xff]
    %v419 = vld [vmem:[#allocation2 + $0x9f0] sm:$0xff]
    %v420 = vld [vmem:[#allocation2 + $0x9f8] sm:$0xff]
    %v421 = vld [vmem:[#allocation2 + $0xa00] sm:$0xff]
    %v422 = vld [vmem:[#allocation2 + $0xa08] sm:$0xff]
    %v423 = vld [vmem:[#allocation2 + $0xa10] sm:$0xff]
    %v424 = vld [vmem:[#allocation2 + $0xa18] sm:$0xff]
    %v425 = vld [vmem:[#allocation2 + $0xa20] sm:$0xff]
    %v426 = vld [vmem:[#allocation2 + $0xa28] sm:$0xff]
    %v427 = vld [vmem:[#allocation2 + $0xa30] sm:$0xff]
    %v428 = vld [vmem:[#allocation2 + $0xa38] sm:$0xff]
    %v429 = vld [vmem:[#allocation2 + $0xa40] sm:$0xff]
    %v430 = vld [vmem:[#allocation2 + $0xa48] sm:$0xff]
    %v431 = vld [vmem:[#allocation2 + $0xa50] sm:$0xff]
    %v432 = vld [vmem:[#allocation2 + $0xa58] sm:$0xff]
    %v433 = vld [vmem:[#allocation2 + $0xa60] sm:$0xff]
    %v434 = vld [vmem:[#allocation2 + $0xa68] sm:$0xff]
    %v435 = vld [vmem:[#allocation2 + $0xa70] sm:$0xff]
    %v436 = vld [vmem:[#allocation2 + $0xa78] sm:$0xff]
    %v437 = vld [vmem:[#allocation2 + $0xa80] sm:$0xff]
    %v438 = vld [vmem:[#allocation2 + $0xa88] sm:$0xff]
    %v439 = vld [vmem:[#allocation2 + $0xa90] sm:$0xff]
    %v440 = vld [vmem:[#allocation2 + $0xa98] sm:$0xff]
    %v441 = vld [vmem:[#allocation2 + $0xaa0] sm:$0xff]
    %v442 = vld [vmem:[#allocation2 + $0xaa8] sm:$0xff]
    %v443 = vld [vmem:[#allocation2 + $0xab0] sm:$0xff]
    %v444 = vld [vmem:[#allocation2 + $0xab8] sm:$0xff]
    %v445 = vld [vmem:[#allocation2 + $0xac0] sm:$0xff]
    %v446 = vld [vmem:[#allocation2 + $0xac8] sm:$0xff]
    %v447 = vld [vmem:[#allocation2 + $0xad0] sm:$0xff]
    %v448 = vld [vmem:[#allocation2 + $0xad8] sm:$0xff]
    %v449 = vld [vmem:[#allocation2 + $0xae0] sm:$0xff]
    %v450 = vld [vmem:[#allocation2 + $0xae8] sm:$0xff]
    %v451 = vld [vmem:[#allocation2 + $0xaf0] sm:$0xff]
    %v452 = vld [vmem:[#allocation2 + $0xaf8] sm:$0xff]
    %v453 = vld [vmem:[#allocation2 + $0xb00] sm:$0xff]
    %v454 = vld [vmem:[#allocation2 + $0xb08] sm:$0xff]
    %v455 = vld [vmem:[#allocation2 + $0xb10] sm:$0xff]
    %v456 = vld [vmem:[#allocation2 + $0xb18] sm:$0xff]
    %v457 = vld [vmem:[#allocation2 + $0xb20] sm:$0xff]
    %v458 = vld [vmem:[#allocation2 + $0xb28] sm:$0xff]
    %v459 = vld [vmem:[#allocation2 + $0xb30] sm:$0xff]
    %v460 = vld [vmem:[#allocation2 + $0xb38] sm:$0xff]
    %v461 = vld [vmem:[#allocation2 + $0xb40] sm:$0xff]
    %v462 = vld [vmem:[#allocation2 + $0xb48] sm:$0xff]
    %v463 = vld [vmem:[#allocation2 + $0xb50] sm:$0xff]
    %v464 = vld [vmem:[#allocation2 + $0xb58] sm:$0xff]
    %v465 = vld [vmem:[#allocation2 + $0xb60] sm:$0xff]
    %v466 = vld [vmem:[#allocation2 + $0xb68] sm:$0xff]
    %v467 = vld [vmem:[#allocation2 + $0xb70] sm:$0xff]
    %v468 = vld [vmem:[#allocation2 + $0xb78] sm:$0xff]
    %v469 = vld [vmem:[#allocation2 + $0xb80] sm:$0xff]
    %v470 = vld [vmem:[#allocation2 + $0xb88] sm:$0xff]
    %v471 = vld [vmem:[#allocation2 + $0xb90] sm:$0xff]
    %v472 = vld [vmem:[#allocation2 + $0xb98] sm:$0xff]
    %v473 = vld [vmem:[#allocation2 + $0xba0] sm:$0xff]
    %v474 = vld [vmem:[#allocation2 + $0xba8] sm:$0xff]
    %v475 = vld [vmem:[#allocation2 + $0xbb0] sm:$0xff]
    %v476 = vld [vmem:[#allocation2 + $0xbb8] sm:$0xff]
    %v477 = vld [vmem:[#allocation2 + $0xbc0] sm:$0xff]
    %v478 = vld [vmem:[#allocation2 + $0xbc8] sm:$0xff]
    %v479 = vld [vmem:[#allocation2 + $0xbd0] sm:$0xff]
    %v480 = vld [vmem:[#allocation2 + $0xbd8] sm:$0xff]
    %v481 = vld [vmem:[#allocation2 + $0xbe0] sm:$0xff]
    %v482 = vld [vmem:[#allocation2 + $0xbe8] sm:$0xff]
    %v483 = vld [vmem:[#allocation2 + $0xbf0] sm:$0xff]
    %v484 = vld [vmem:[#allocation2 + $0xbf8] sm:$0xff]
    %v485 = vld [vmem:[#allocation2 + $0xc00] sm:$0xff]
    %v486 = vld [vmem:[#allocation2 + $0xc08] sm:$0xff]
    %v487 = vld [vmem:[#allocation2 + $0xc10] sm:$0xff]
    %v488 = vld [vmem:[#allocation2 + $0xc18] sm:$0xff]
    %v489 = vld [vmem:[#allocation2 + $0xc20] sm:$0xff]
    %v490 = vld [vmem:[#allocation2 + $0xc28] sm:$0xff]
    %v491 = vld [vmem:[#allocation2 + $0xc30] sm:$0xff]
    %v492 = vld [vmem:[#allocation2 + $0xc38] sm:$0xff]
    %v493 = vld [vmem:[#allocation2 + $0xc40] sm:$0xff]
    %v494 = vld [vmem:[#allocation2 + $0xc48] sm:$0xff]
    %v495 = vld [vmem:[#allocation2 + $0xc50] sm:$0xff]
    %v496 = vld [vmem:[#allocation2 + $0xc58] sm:$0xff]
    %v497 = vld [vmem:[#allocation2 + $0xc60] sm:$0xff]
    %v498 = vld [vmem:[#allocation2 + $0xc68] sm:$0xff]
    %v499 = vld [vmem:[#allocation2 + $0xc70] sm:$0xff]
    %v500 = vld [vmem:[#allocation2 + $0xc78] sm:$0xff]
    %v501 = vld [vmem:[#allocation2 + $0xc80] sm:$0xff]
    %v502 = vld [vmem:[#allocation2 + $0xc88] sm:$0xff]
    %v503 = vld [vmem:[#allocation2 + $0xc90] sm:$0xff]
    %v504 = vld [vmem:[#allocation2 + $0xc98] sm:$0xff]
    %v505 = vld [vmem:[#allocation2 + $0xca0] sm:$0xff]
    %v506 = vld [vmem:[#allocation2 + $0xca8] sm:$0xff]
    %v507 = vld [vmem:[#allocation2 + $0xcb0] sm:$0xff]
    %v508 = vld [vmem:[#allocation2 + $0xcb8] sm:$0xff]
    %v509 = vld [vmem:[#allocation2 + $0xcc0] sm:$0xff]
    %v510 = vld [vmem:[#allocation2 + $0xcc8] sm:$0xff]
    %v511 = vld [vmem:[#allocation2 + $0xcd0] sm:$0xff]
    %v512 = vld [vmem:[#allocation2 + $0xcd8] sm:$0xff]
    %v513 = vld [vmem:[#allocation2 + $0xce0] sm:$0xff]
    %v514 = vld [vmem:[#allocation2 + $0xce8] sm:$0xff]
    %v515 = vld [vmem:[#allocation2 + $0xcf0] sm:$0xff]
    %v516 = vld [vmem:[#allocation2 + $0xcf8] sm:$0xff]
    %v517 = vld [vmem:[#allocation2 + $0xd00] sm:$0xff]
    %v518 = vld [vmem:[#allocation2 + $0xd08] sm:$0xff]
    %v519 = vld [vmem:[#allocation2 + $0xd10] sm:$0xff]
    %v520 = vld [vmem:[#allocation2 + $0xd18] sm:$0xff]
    %v521 = vld [vmem:[#allocation2 + $0xd20] sm:$0xff]
    %v522 = vld [vmem:[#allocation2 + $0xd28] sm:$0xff]
    %v523 = vld [vmem:[#allocation2 + $0xd30] sm:$0xff]
    %v524 = vld [vmem:[#allocation2 + $0xd38] sm:$0xff]
    %v525 = vld [vmem:[#allocation2 + $0xd40] sm:$0xff]
    %v526 = vld [vmem:[#allocation2 + $0xd48] sm:$0xff]
    %v527 = vld [vmem:[#allocation2 + $0xd50] sm:$0xff]
    %v528 = vld [vmem:[#allocation2 + $0xd58] sm:$0xff]
    %v529 = vld [vmem:[#allocation2 + $0xd60] sm:$0xff]
    %v530 = vld [vmem:[#allocation2 + $0xd68] sm:$0xff]
    %v531 = vld [vmem:[#allocation2 + $0xd70] sm:$0xff]
    %v532 = vld [vmem:[#allocation2 + $0xd78] sm:$0xff]
    %v533 = vld [vmem:[#allocation2 + $0xd80] sm:$0xff]
    %v534 = vld [vmem:[#allocation2 + $0xd88] sm:$0xff]
    %v535 = vld [vmem:[#allocation2 + $0xd90] sm:$0xff]
    %v536 = vld [vmem:[#allocation2 + $0xd98] sm:$0xff]
    %v537 = vld [vmem:[#allocation2 + $0xda0] sm:$0xff]
    %v538 = vld [vmem:[#allocation2 + $0xda8] sm:$0xff]
    %v539 = vld [vmem:[#allocation2 + $0xdb0] sm:$0xff]
    %v540 = vld [vmem:[#allocation2 + $0xdb8] sm:$0xff]
    %v541 = vld [vmem:[#allocation2 + $0xdc0] sm:$0xff]
    %v542 = vld [vmem:[#allocation2 + $0xdc8] sm:$0xff]
    %v543 = vld [vmem:[#allocation2 + $0xdd0] sm:$0xff]
    %v544 = vld [vmem:[#allocation2 + $0xdd8] sm:$0xff]
    %v545 = vld [vmem:[#allocation2 + $0xde0] sm:$0xff]
    %v546 = vld [vmem:[#allocation2 + $0xde8] sm:$0xff]
    %v547 = vld [vmem:[#allocation2 + $0xdf0] sm:$0xff]
    %v548 = vld [vmem:[#allocation2 + $0xdf8] sm:$0xff]
    %v549 = vld [vmem:[#allocation2 + $0xe00] sm:$0xff]
    %v550 = vld [vmem:[#allocation2 + $0xe08] sm:$0xff]
    %v551 = vld [vmem:[#allocation2 + $0xe10] sm:$0xff]
    %v552 = vld [vmem:[#allocation2 + $0xe18] sm:$0xff]
    %v553 = vld [vmem:[#allocation2 + $0xe20] sm:$0xff]
    %v554 = vld [vmem:[#allocation2 + $0xe28] sm:$0xff]
    %v555 = vld [vmem:[#allocation2 + $0xe30] sm:$0xff]
    %v556 = vld [vmem:[#allocation2 + $0xe38] sm:$0xff]
    %v557 = vld [vmem:[#allocation2 + $0xe40] sm:$0xff]
    %v558 = vld [vmem:[#allocation2 + $0xe48] sm:$0xff]
    %v559 = vld [vmem:[#allocation2 + $0xe50] sm:$0xff]
    %v560 = vld [vmem:[#allocation2 + $0xe58] sm:$0xff]
    %v561 = vld [vmem:[#allocation2 + $0xe60] sm:$0xff]
    %v562 = vld [vmem:[#allocation2 + $0xe68] sm:$0xff]
    %v563 = vld [vmem:[#allocation2 + $0xe70] sm:$0xff]
    %v564 = vld [vmem:[#allocation2 + $0xe78] sm:$0xff]
    %v565 = vld [vmem:[#allocation2 + $0xe80] sm:$0xff]
    %v566 = vld [vmem:[#allocation2 + $0xe88] sm:$0xff]
    %v567 = vld [vmem:[#allocation2 + $0xe90] sm:$0xff]
    %v568 = vld [vmem:[#allocation2 + $0xe98] sm:$0xff]
    %v569 = vld [vmem:[#allocation2 + $0xea0] sm:$0xff]
    %v570 = vld [vmem:[#allocation2 + $0xea8] sm:$0xff]
    %v571 = vld [vmem:[#allocation2 + $0xeb0] sm:$0xff]
    %v572 = vld [vmem:[#allocation2 + $0xeb8] sm:$0xff]
    %v573 = vld [vmem:[#allocation2 + $0xec0] sm:$0xff]
    %v574 = vld [vmem:[#allocation2 + $0xec8] sm:$0xff]
    %v575 = vld [vmem:[#allocation2 + $0xed0] sm:$0xff]
    %v576 = vld [vmem:[#allocation2 + $0xed8] sm:$0xff]
    %v577 = vld [vmem:[#allocation2 + $0xee0] sm:$0xff]
    %v578 = vld [vmem:[#allocation2 + $0xee8] sm:$0xff]
    %v579 = vld [vmem:[#allocation2 + $0xef0] sm:$0xff]
    %v580 = vld [vmem:[#allocation2 + $0xef8] sm:$0xff]
    %v581 = vld [vmem:[#allocation2 + $0xf00] sm:$0xff]
    %v582 = vld [vmem:[#allocation2 + $0xf08] sm:$0xff]
    %v583 = vld [vmem:[#allocation2 + $0xf10] sm:$0xff]
    %v584 = vld [vmem:[#allocation2 + $0xf18] sm:$0xff]
    %v585 = vld [vmem:[#allocation2 + $0xf20] sm:$0xff]
    %v586 = vld [vmem:[#allocation2 + $0xf28] sm:$0xff]
    %v587 = vld [vmem:[#allocation2 + $0xf30] sm:$0xff]
    %v588 = vld [vmem:[#allocation2 + $0xf38] sm:$0xff]
    %v589 = vld [vmem:[#allocation2 + $0xf40] sm:$0xff]
    %v590 = vld [vmem:[#allocation2 + $0xf48] sm:$0xff]
    %v591 = vld [vmem:[#allocation2 + $0xf50] sm:$0xff]
    %v592 = vld [vmem:[#allocation2 + $0xf58] sm:$0xff]
    %v593 = vld [vmem:[#allocation2 + $0xf60] sm:$0xff]
    %v594 = vld [vmem:[#allocation2 + $0xf68] sm:$0xff]
    %v595 = vld [vmem:[#allocation2 + $0xf70] sm:$0xff]
    %v596 = vld [vmem:[#allocation2 + $0xf78] sm:$0xff]
    %v597 = vld [vmem:[#allocation2 + $0xf80] sm:$0xff]
    %v598 = vld [vmem:[#allocation2 + $0xf88] sm:$0xff]
    %v599 = vld [vmem:[#allocation2 + $0xf90] sm:$0xff]
    %v600 = vld [vmem:[#allocation2 + $0xf98] sm:$0xff]
    %v601 = vld [vmem:[#allocation2 + $0xfa0] sm:$0xff]
    %v602 = vld [vmem:[#allocation2 + $0xfa8] sm:$0xff]
    %v603 = vld [vmem:[#allocation2 + $0xfb0] sm:$0xff]
    %v604 = vld [vmem:[#allocation2 + $0xfb8] sm:$0xff]
    %v605 = vld [vmem:[#allocation2 + $0xfc0] sm:$0xff]
    %v606 = vld [vmem:[#allocation2 + $0xfc8] sm:$0xff]
    %v607 = vld [vmem:[#allocation2 + $0xfd0] sm:$0xff]
    %v608 = vld [vmem:[#allocation2 + $0xfd8] sm:$0xff]
    %v609 = vld [vmem:[#allocation2 + $0xfe0] sm:$0xff]
    %v610 = vld [vmem:[#allocation2 + $0xfe8] sm:$0xff]
    %v611 = vld [vmem:[#allocation2 + $0xff0] sm:$0xff]
    %v612 = vld [vmem:[#allocation2 + $0xff8] sm:$0xff]
    %v613 = vld [vmem:[#allocation2 + $0x1000] sm:$0xff]
    %v614 = vld [vmem:[#allocation2 + $0x1008] sm:$0xff]
    %v615 = vld [vmem:[#allocation2 + $0x1010] sm:$0xff]
    %v616 = vld [vmem:[#allocation2 + $0x1018] sm:$0xff]
    %v617 = vld [vmem:[#allocation2 + $0x1020] sm:$0xff]
    %v618 = vld [vmem:[#allocation2 + $0x1028] sm:$0xff]
    %v619 = vld [vmem:[#allocation2 + $0x1030] sm:$0xff]
    %v620 = vld [vmem:[#allocation2 + $0x1038] sm:$0xff]
    %v621 = vld [vmem:[#allocation2 + $0x1040] sm:$0xff]
    %v622 = vld [vmem:[#allocation2 + $0x1048] sm:$0xff]
    %v623 = vld [vmem:[#allocation2 + $0x1050] sm:$0xff]
    %v624 = vld [vmem:[#allocation2 + $0x1058] sm:$0xff]
    %v625 = vld [vmem:[#allocation2 + $0x1060] sm:$0xff]
    %v626 = vld [vmem:[#allocation2 + $0x1068] sm:$0xff]
    %v627 = vld [vmem:[#allocation2 + $0x1070] sm:$0xff]
    %v628 = vld [vmem:[#allocation2 + $0x1078] sm:$0xff]
    %v629 = vld [vmem:[#allocation2 + $0x1080] sm:$0xff]
    %v630 = vld [vmem:[#allocation2 + $0x1088] sm:$0xff]
    %v631 = vld [vmem:[#allocation2 + $0x1090] sm:$0xff]
    %v632 = vld [vmem:[#allocation2 + $0x1098] sm:$0xff]
    %v633 = vld [vmem:[#allocation2 + $0x10a0] sm:$0xff]
    %v634 = vld [vmem:[#allocation2 + $0x10a8] sm:$0xff]
    %v635 = vld [vmem:[#allocation2 + $0x10b0] sm:$0xff]
    %v636 = vld [vmem:[#allocation2 + $0x10b8] sm:$0xff]
    %v637 = vld [vmem:[#allocation2 + $0x10c0] sm:$0xff]
    %v638 = vld [vmem:[#allocation2 + $0x10c8] sm:$0xff]
    %v639 = vld [vmem:[#allocation2 + $0x10d0] sm:$0xff]
    %v640 = vld [vmem:[#allocation2 + $0x10d8] sm:$0xff]
    %v641 = vld [vmem:[#allocation2 + $0x10e0] sm:$0xff]
    %v642 = vld [vmem:[#allocation2 + $0x10e8] sm:$0xff]
    %v643 = vld [vmem:[#allocation2 + $0x10f0] sm:$0xff]
    %v644 = vld [vmem:[#allocation2 + $0x10f8] sm:$0xff]
    %v645 = vld [vmem:[#allocation2 + $0x1100] sm:$0xff]
    %v646 = vld [vmem:[#allocation2 + $0x1108] sm:$0xff]
    %v647 = vld [vmem:[#allocation2 + $0x1110] sm:$0xff]
    %v648 = vld [vmem:[#allocation2 + $0x1118] sm:$0xff]
    %v649 = vld [vmem:[#allocation2 + $0x1120] sm:$0xff]
    %v650 = vld [vmem:[#allocation2 + $0x1128] sm:$0xff]
    %v651 = vld [vmem:[#allocation2 + $0x1130] sm:$0xff]
    %v652 = vld [vmem:[#allocation2 + $0x1138] sm:$0xff]
    %v653 = vld [vmem:[#allocation2 + $0x1140] sm:$0xff]
    %v654 = vld [vmem:[#allocation2 + $0x1148] sm:$0xff]
    %v655 = vld [vmem:[#allocation2 + $0x1150] sm:$0xff]
    %v656 = vld [vmem:[#allocation2 + $0x1158] sm:$0xff]
    %v657 = vld [vmem:[#allocation2 + $0x1160] sm:$0xff]
    %v658 = vld [vmem:[#allocation2 + $0x1168] sm:$0xff]
    %v659 = vld [vmem:[#allocation2 + $0x1170] sm:$0xff]
    %v660 = vld [vmem:[#allocation2 + $0x1178] sm:$0xff]
    %v661 = vld [vmem:[#allocation2 + $0x1180] sm:$0xff]
    %v662 = vld [vmem:[#allocation2 + $0x1188] sm:$0xff]
    %v663 = vld [vmem:[#allocation2 + $0x1190] sm:$0xff]
    %v664 = vld [vmem:[#allocation2 + $0x1198] sm:$0xff]
    %v665 = vld [vmem:[#allocation2 + $0x11a0] sm:$0xff]
    %v666 = vld [vmem:[#allocation2 + $0x11a8] sm:$0xff]
    %v667 = vld [vmem:[#allocation2 + $0x11b0] sm:$0xff]
    %v668 = vld [vmem:[#allocation2 + $0x11b8] sm:$0xff]
    %v669 = vld [vmem:[#allocation2 + $0x11c0] sm:$0xff]
    %v670 = vld [vmem:[#allocation2 + $0x11c8] sm:$0xff]
    %v671 = vld [vmem:[#allocation2 + $0x11d0] sm:$0xff]
    %v672 = vld [vmem:[#allocation2 + $0x11d8] sm:$0xff]
    %v673 = vld [vmem:[#allocation2 + $0x11e0] sm:$0xff]
    %v674 = vld [vmem:[#allocation2 + $0x11e8] sm:$0xff]
    %v675 = vld [vmem:[#allocation2 + $0x11f0] sm:$0xff]
    %v676 = vld [vmem:[#allocation2 + $0x11f8] sm:$0xff]
    %v677 = vld [vmem:[#allocation2 + $0x1200] sm:$0xff]
    %v678 = vld [vmem:[#allocation2 + $0x1208] sm:$0xff]
    %v679 = vld [vmem:[#allocation2 + $0x1210] sm:$0xff]
    %v680 = vld [vmem:[#allocation2 + $0x1218] sm:$0xff]
    %v681 = vld [vmem:[#allocation2 + $0x1220] sm:$0xff]
    %v682 = vld [vmem:[#allocation2 + $0x1228] sm:$0xff]
    %v683 = vld [vmem:[#allocation2 + $0x1230] sm:$0xff]
    %v684 = vld [vmem:[#allocation2 + $0x1238] sm:$0xff]
    %v685 = vld [vmem:[#allocation2 + $0x1240] sm:$0xff]
    %v686 = vld [vmem:[#allocation2 + $0x1248] sm:$0xff]
    %v687 = vld [vmem:[#allocation2 + $0x1250] sm:$0xff]
    %v688 = vld [vmem:[#allocation2 + $0x1258] sm:$0xff]
    %v689 = vld [vmem:[#allocation2 + $0x1260] sm:$0xff]
    %v690 = vld [vmem:[#allocation2 + $0x1268] sm:$0xff]
    %v691 = vld [vmem:[#allocation2 + $0x1270] sm:$0xff]
    %v692 = vld [vmem:[#allocation2 + $0x1278] sm:$0xff]
    %v693 = vld [vmem:[#allocation2 + $0x1280] sm:$0xff]
    %v694 = vld [vmem:[#allocation2 + $0x1288] sm:$0xff]
    %v695 = vld [vmem:[#allocation2 + $0x1290] sm:$0xff]
    %v696 = vld [vmem:[#allocation2 + $0x1298] sm:$0xff]
    %v697 = vld [vmem:[#allocation2 + $0x12a0] sm:$0xff]
    %v698 = vld [vmem:[#allocation2 + $0x12a8] sm:$0xff]
    %v699 = vld [vmem:[#allocation2 + $0x12b0] sm:$0xff]
    %v700 = vld [vmem:[#allocation2 + $0x12b8] sm:$0xff]
    %v701 = vld [vmem:[#allocation2 + $0x12c0] sm:$0xff]
    %v702 = vld [vmem:[#allocation2 + $0x12c8] sm:$0xff]
    %v703 = vld [vmem:[#allocation2 + $0x12d0] sm:$0xff]
    %v704 = vld [vmem:[#allocation2 + $0x12d8] sm:$0xff]
    %v705 = vld [vmem:[#allocation2 + $0x12e0] sm:$0xff]
    %v706 = vld [vmem:[#allocation2 + $0x12e8] sm:$0xff]
    %v707 = vld [vmem:[#allocation2 + $0x12f0] sm:$0xff]
    %v708 = vld [vmem:[#allocation2 + $0x12f8] sm:$0xff]
    %v709 = vld [vmem:[#allocation2 + $0x1300] sm:$0xff]
    %v710 = vld [vmem:[#allocation2 + $0x1308] sm:$0xff]
    %v711 = vld [vmem:[#allocation2 + $0x1310] sm:$0xff]
    %v712 = vld [vmem:[#allocation2 + $0x1318] sm:$0xff]
    %v713 = vld [vmem:[#allocation2 + $0x1320] sm:$0xff]
    %v714 = vld [vmem:[#allocation2 + $0x1328] sm:$0xff]
    %v715 = vld [vmem:[#allocation2 + $0x1330] sm:$0xff]
    %v716 = vld [vmem:[#allocation2 + $0x1338] sm:$0xff]
    %v717 = vld [vmem:[#allocation2 + $0x1340] sm:$0xff]
    %v718 = vld [vmem:[#allocation2 + $0x1348] sm:$0xff]
    %v719 = vld [vmem:[#allocation2 + $0x1350] sm:$0xff]
    %v720 = vld [vmem:[#allocation2 + $0x1358] sm:$0xff]
    %v721 = vld [vmem:[#allocation2 + $0x1360] sm:$0xff]
    %v722 = vld [vmem:[#allocation2 + $0x1368] sm:$0xff]
    %v723 = vld [vmem:[#allocation2 + $0x1370] sm:$0xff]
    %v724 = vld [vmem:[#allocation2 + $0x1378] sm:$0xff]
    %v725 = vld [vmem:[#allocation2 + $0x1380] sm:$0xff]
    %v726 = vld [vmem:[#allocation2 + $0x1388] sm:$0xff]
    %v727 = vld [vmem:[#allocation2 + $0x1390] sm:$0xff]
    %v728 = vld [vmem:[#allocation2 + $0x1398] sm:$0xff]
    %v729 = vld [vmem:[#allocation2 + $0x13a0] sm:$0xff]
    %v730 = vld [vmem:[#allocation2 + $0x13a8] sm:$0xff]
    %v731 = vld [vmem:[#allocation2 + $0x13b0] sm:$0xff]
    %v732 = vld [vmem:[#allocation2 + $0x13b8] sm:$0xff]
    %v733 = vld [vmem:[#allocation2 + $0x13c0] sm:$0xff]
    %v734 = vld [vmem:[#allocation2 + $0x13c8] sm:$0xff]
    %v735 = vld [vmem:[#allocation2 + $0x13d0] sm:$0xff]
    %v736 = vld [vmem:[#allocation2 + $0x13d8] sm:$0xff]
    %v737 = vld [vmem:[#allocation2 + $0x13e0] sm:$0xff]
    %v738 = vld [vmem:[#allocation2 + $0x13e8] sm:$0xff]
    %v739 = vld [vmem:[#allocation2 + $0x13f0] sm:$0xff]
    %v740 = vld [vmem:[#allocation2 + $0x13f8] sm:$0xff]
    %v741 = vld [vmem:[#allocation2 + $0x1400] sm:$0xff]
    %v742 = vld [vmem:[#allocation2 + $0x1408] sm:$0xff]
    %v743 = vld [vmem:[#allocation2 + $0x1410] sm:$0xff]
    %v744 = vld [vmem:[#allocation2 + $0x1418] sm:$0xff]
    %v745 = vld [vmem:[#allocation2 + $0x1420] sm:$0xff]
    %v746 = vld [vmem:[#allocation2 + $0x1428] sm:$0xff]
    %v747 = vld [vmem:[#allocation2 + $0x1430] sm:$0xff]
    %v748 = vld [vmem:[#allocation2 + $0x1438] sm:$0xff]
    %v749 = vld [vmem:[#allocation2 + $0x1440] sm:$0xff]
    %v750 = vld [vmem:[#allocation2 + $0x1448] sm:$0xff]
    %v751 = vld [vmem:[#allocation2 + $0x1450] sm:$0xff]
    %v752 = vld [vmem:[#allocation2 + $0x1458] sm:$0xff]
    %v753 = vld [vmem:[#allocation2 + $0x1460] sm:$0xff]
    %v754 = vld [vmem:[#allocation2 + $0x1468] sm:$0xff]
    %v755 = vld [vmem:[#allocation2 + $0x1470] sm:$0xff]
    %v756 = vld [vmem:[#allocation2 + $0x1478] sm:$0xff]
    %v757 = vld [vmem:[#allocation2 + $0x1480] sm:$0xff]
    %v758 = vld [vmem:[#allocation2 + $0x1488] sm:$0xff]
    %v759 = vld [vmem:[#allocation2 + $0x1490] sm:$0xff]
    %v760 = vld [vmem:[#allocation2 + $0x1498] sm:$0xff]
    %v761 = vld [vmem:[#allocation2 + $0x14a0] sm:$0xff]
    %v762 = vld [vmem:[#allocation2 + $0x14a8] sm:$0xff]
    %v763 = vld [vmem:[#allocation2 + $0x14b0] sm:$0xff]
    %v764 = vld [vmem:[#allocation2 + $0x14b8] sm:$0xff]
    %v765 = vld [vmem:[#allocation2 + $0x14c0] sm:$0xff]
    %v766 = vld [vmem:[#allocation2 + $0x14c8] sm:$0xff]
    %v767 = vld [vmem:[#allocation2 + $0x14d0] sm:$0xff]
    %v768 = vld [vmem:[#allocation2 + $0x14d8] sm:$0xff]
    %v769 = vld [vmem:[#allocation2 + $0x14e0] sm:$0xff]
    %v770 = vld [vmem:[#allocation2 + $0x14e8] sm:$0xff]
    %v771 = vld [vmem:[#allocation2 + $0x14f0] sm:$0xff]
    %v772 = vld [vmem:[#allocation2 + $0x14f8] sm:$0xff]
    %v773 = vld [vmem:[#allocation2 + $0x1500] sm:$0xff]
    %v774 = vld [vmem:[#allocation2 + $0x1508] sm:$0xff]
    %v775 = vld [vmem:[#allocation2 + $0x1510] sm:$0xff]
    %v776 = vld [vmem:[#allocation2 + $0x1518] sm:$0xff]
    %v777 = vld [vmem:[#allocation2 + $0x1520] sm:$0xff]
    %v778 = vld [vmem:[#allocation2 + $0x1528] sm:$0xff]
    %v779 = vld [vmem:[#allocation2 + $0x1530] sm:$0xff]
    %v780 = vld [vmem:[#allocation2 + $0x1538] sm:$0xff]
    %v781 = vld [vmem:[#allocation2 + $0x1540] sm:$0xff]
    %v782 = vld [vmem:[#allocation2 + $0x1548] sm:$0xff]
    %v783 = vld [vmem:[#allocation2 + $0x1550] sm:$0xff]
    %v784 = vld [vmem:[#allocation2 + $0x1558] sm:$0xff]
    %v785 = vld [vmem:[#allocation2 + $0x1560] sm:$0xff]
    %v786 = vld [vmem:[#allocation2 + $0x1568] sm:$0xff]
    %v787 = vld [vmem:[#allocation2 + $0x1570] sm:$0xff]
    %v788 = vld [vmem:[#allocation2 + $0x1578] sm:$0xff]
    %v789 = vld [vmem:[#allocation2 + $0x1580] sm:$0xff]
    %v790 = vld [vmem:[#allocation2 + $0x1588] sm:$0xff]
    %v791 = vld [vmem:[#allocation2 + $0x1590] sm:$0xff]
    %v792 = vld [vmem:[#allocation2 + $0x1598] sm:$0xff]
    %v793 = vld [vmem:[#allocation2 + $0x15a0] sm:$0xff]
    %v794 = vld [vmem:[#allocation2 + $0x15a8] sm:$0xff]
    %v795 = vld [vmem:[#allocation2 + $0x15b0] sm:$0xff]
    %v796 = vld [vmem:[#allocation2 + $0x15b8] sm:$0xff]
    %v797 = vld [vmem:[#allocation2 + $0x15c0] sm:$0xff]
    %v798 = vld [vmem:[#allocation2 + $0x15c8] sm:$0xff]
    %v799 = vld [vmem:[#allocation2 + $0x15d0] sm:$0xff]
    %v800 = vld [vmem:[#allocation2 + $0x15d8] sm:$0xff]
    %v801 = vld [vmem:[#allocation2 + $0x15e0] sm:$0xff]
    %v802 = vld [vmem:[#allocation2 + $0x15e8] sm:$0xff]
    %v803 = vld [vmem:[#allocation2 + $0x15f0] sm:$0xff]
    %v804 = vld [vmem:[#allocation2 + $0x15f8] sm:$0xff]
    %v805 = vld [vmem:[#allocation2 + $0x1600] sm:$0xff]
    %v806 = vld [vmem:[#allocation2 + $0x1608] sm:$0xff]
    %v807 = vld [vmem:[#allocation2 + $0x1610] sm:$0xff]
    %v808 = vld [vmem:[#allocation2 + $0x1618] sm:$0xff]
    %v809 = vld [vmem:[#allocation2 + $0x1620] sm:$0xff]
    %v810 = vld [vmem:[#allocation2 + $0x1628] sm:$0xff]
    %v811 = vld [vmem:[#allocation2 + $0x1630] sm:$0xff]
    %v812 = vld [vmem:[#allocation2 + $0x1638] sm:$0xff]
    %v813 = vld [vmem:[#allocation2 + $0x1640] sm:$0xff]
    %v814 = vld [vmem:[#allocation2 + $0x1648] sm:$0xff]
    %v815 = vld [vmem:[#allocation2 + $0x1650] sm:$0xff]
    %v816 = vld [vmem:[#allocation2 + $0x1658] sm:$0xff]
    %v817 = vld [vmem:[#allocation2 + $0x1660] sm:$0xff]
    %v818 = vld [vmem:[#allocation2 + $0x1668] sm:$0xff]
    %v819 = vld [vmem:[#allocation2 + $0x1670] sm:$0xff]
    %v820 = vld [vmem:[#allocation2 + $0x1678] sm:$0xff]
    %v821 = vld [vmem:[#allocation2 + $0x1680] sm:$0xff]
    %v822 = vld [vmem:[#allocation2 + $0x1688] sm:$0xff]
    %v823 = vld [vmem:[#allocation2 + $0x1690] sm:$0xff]
    %v824 = vld [vmem:[#allocation2 + $0x1698] sm:$0xff]
    %v825 = vld [vmem:[#allocation2 + $0x16a0] sm:$0xff]
    %v826 = vld [vmem:[#allocation2 + $0x16a8] sm:$0xff]
    %v827 = vld [vmem:[#allocation2 + $0x16b0] sm:$0xff]
    %v828 = vld [vmem:[#allocation2 + $0x16b8] sm:$0xff]
    %v829 = vld [vmem:[#allocation2 + $0x16c0] sm:$0xff]
    %v830 = vld [vmem:[#allocation2 + $0x16c8] sm:$0xff]
    %v831 = vld [vmem:[#allocation2 + $0x16d0] sm:$0xff]
    %v832 = vld [vmem:[#allocation2 + $0x16d8] sm:$0xff]
    %v833 = vld [vmem:[#allocation2 + $0x16e0] sm:$0xff]
    %v834 = vld [vmem:[#allocation2 + $0x16e8] sm:$0xff]
    %v835 = vld [vmem:[#allocation2 + $0x16f0] sm:$0xff]
    %v836 = vld [vmem:[#allocation2 + $0x16f8] sm:$0xff]
    %v837 = vld [vmem:[#allocation2 + $0x1700] sm:$0xff]
    %v838 = vld [vmem:[#allocation2 + $0x1708] sm:$0xff]
    %v839 = vld [vmem:[#allocation2 + $0x1710] sm:$0xff]
    %v840 = vld [vmem:[#allocation2 + $0x1718] sm:$0xff]
    %v841 = vld [vmem:[#allocation2 + $0x1720] sm:$0xff]
    %v842 = vld [vmem:[#allocation2 + $0x1728] sm:$0xff]
    %v843 = vld [vmem:[#allocation2 + $0x1730] sm:$0xff]
    %v844 = vld [vmem:[#allocation2 + $0x1738] sm:$0xff]
    %v845 = vld [vmem:[#allocation2 + $0x1740] sm:$0xff]
    %v846 = vld [vmem:[#allocation2 + $0x1748] sm:$0xff]
    %v847 = vld [vmem:[#allocation2 + $0x1750] sm:$0xff]
    %v848 = vld [vmem:[#allocation2 + $0x1758] sm:$0xff]
    %v849 = vld [vmem:[#allocation2 + $0x1760] sm:$0xff]
    %v850 = vld [vmem:[#allocation2 + $0x1768] sm:$0xff]
    %v851 = vld [vmem:[#allocation2 + $0x1770] sm:$0xff]
    %v852 = vld [vmem:[#allocation2 + $0x1778] sm:$0xff]
    %v853 = vld [vmem:[#allocation2 + $0x1780] sm:$0xff]
    %v854 = vld [vmem:[#allocation2 + $0x1788] sm:$0xff]
    %v855 = vld [vmem:[#allocation2 + $0x1790] sm:$0xff]
    %v856 = vld [vmem:[#allocation2 + $0x1798] sm:$0xff]
    %v857 = vld [vmem:[#allocation2 + $0x17a0] sm:$0xff]
    %v858 = vld [vmem:[#allocation2 + $0x17a8] sm:$0xff]
    %v859 = vld [vmem:[#allocation2 + $0x17b0] sm:$0xff]
    %v860 = vld [vmem:[#allocation2 + $0x17b8] sm:$0xff]
    %v861 = vld [vmem:[#allocation2 + $0x17c0] sm:$0xff]
    %v862 = vld [vmem:[#allocation2 + $0x17c8] sm:$0xff]
    %v863 = vld [vmem:[#allocation2 + $0x17d0] sm:$0xff]
    %v864 = vld [vmem:[#allocation2 + $0x17d8] sm:$0xff]
    %v865 = vld [vmem:[#allocation2 + $0x17e0] sm:$0xff]
    %v866 = vld [vmem:[#allocation2 + $0x17e8] sm:$0xff]
    %v867 = vld [vmem:[#allocation2 + $0x17f0] sm:$0xff]
    %v868 = vld [vmem:[#allocation2 + $0x17f8] sm:$0xff]
    %v869 = vld [vmem:[#allocation2 + $0x1800] sm:$0xff]
    %v870 = vld [vmem:[#allocation2 + $0x1808] sm:$0xff]
    %v871 = vld [vmem:[#allocation2 + $0x1810] sm:$0xff]
    %v872 = vld [vmem:[#allocation2 + $0x1818] sm:$0xff]
    %v873 = vld [vmem:[#allocation2 + $0x1820] sm:$0xff]
    %v874 = vld [vmem:[#allocation2 + $0x1828] sm:$0xff]
    %v875 = vld [vmem:[#allocation2 + $0x1830] sm:$0xff]
    %v876 = vld [vmem:[#allocation2 + $0x1838] sm:$0xff]
    %v877 = vld [vmem:[#allocation2 + $0x1840] sm:$0xff]
    %v878 = vld [vmem:[#allocation2 + $0x1848] sm:$0xff]
    %v879 = vld [vmem:[#allocation2 + $0x1850] sm:$0xff]
    %v880 = vld [vmem:[#allocation2 + $0x1858] sm:$0xff]
    %v881 = vld [vmem:[#allocation2 + $0x1860] sm:$0xff]
    %v882 = vld [vmem:[#allocation2 + $0x1868] sm:$0xff]
    %v883 = vld [vmem:[#allocation2 + $0x1870] sm:$0xff]
    %v884 = vld [vmem:[#allocation2 + $0x1878] sm:$0xff]
    %v885 = vld [vmem:[#allocation4] sm:$0xff]
    %v886 = vld [vmem:[#allocation4 + $0x8] sm:$0xff]
    %v889 = vperm.slane %v885, 0
    %v890 = vperm.slane %v885, 1
    %v891 = vperm.slane %v885, 2
    %v892 = vperm.slane %v885, 3
    %v893 = vperm.slane %v885, 4
    %v894 = vperm.slane %v885, 5
    %v895 = vperm.slane %v885, 6
    %v896 = vperm.slane %v885, 7
    %v897 = vperm.slane %v886, 0
    %v898 = vperm.slane %v886, 1
    %v899 = vperm.slane %v886, 2
    %v900 = vperm.slane %v886, 3
    %v901 = vperm.slane %v886, 4
    %v902 = vperm.slane %v886, 5
    %v903 = vperm.slane %v886, 6
    %v904 = vperm.slane %v886, 7
    %v1705 = vunpack.c.l.b16 %v101
    %v1706 = vunpack.c.h.b16 %v101
    %v1707 = vunpack.c.l.b16 %v102
    %v1708 = vunpack.c.h.b16 %v102
    %v1709 = vunpack.c.l.b16 %v103
    %v1710 = vunpack.c.h.b16 %v103
    %v1711 = vunpack.c.l.b16 %v104
    %v1712 = vunpack.c.h.b16 %v104
    %v1713 = vunpack.c.l.b16 %v105
    %v1714 = vunpack.c.h.b16 %v105
    %v1715 = vunpack.c.l.b16 %v106
    %v1716 = vunpack.c.h.b16 %v106
    %v1717 = vunpack.c.l.b16 %v107
    %v1718 = vunpack.c.h.b16 %v107
    %v1719 = vunpack.c.l.b16 %v108
    %v1720 = vunpack.c.h.b16 %v108
    %v1721 = vunpack.c.l.b16 %v109
    %v1722 = vunpack.c.h.b16 %v109
    %v1723 = vunpack.c.l.b16 %v110
    %v1724 = vunpack.c.h.b16 %v110
    %v1725 = vunpack.c.l.b16 %v111
    %v1726 = vunpack.c.h.b16 %v111
    %v1727 = vunpack.c.l.b16 %v112
    %v1728 = vunpack.c.h.b16 %v112
    %v1729 = vunpack.c.l.b16 %v113
    %v1730 = vunpack.c.h.b16 %v113
    %v1731 = vunpack.c.l.b16 %v114
    %v1732 = vunpack.c.h.b16 %v114
    %v1733 = vunpack.c.l.b16 %v115
    %v1734 = vunpack.c.h.b16 %v115
    %v1735 = vunpack.c.l.b16 %v116
    %v1736 = vunpack.c.h.b16 %v116
    %v1737 = vunpack.c.l.b16 %v117
    %v1738 = vunpack.c.h.b16 %v117
    %v1739 = vunpack.c.l.b16 %v118
    %v1740 = vunpack.c.h.b16 %v118
    %v1741 = vunpack.c.l.b16 %v119
    %v1742 = vunpack.c.h.b16 %v119
    %v1743 = vunpack.c.l.b16 %v120
    %v1744 = vunpack.c.h.b16 %v120
    %v1745 = vunpack.c.l.b16 %v121
    %v1746 = vunpack.c.h.b16 %v121
    %v1747 = vunpack.c.l.b16 %v122
    %v1748 = vunpack.c.h.b16 %v122
    %v1749 = vunpack.c.l.b16 %v123
    %v1750 = vunpack.c.h.b16 %v123
    %v1751 = vunpack.c.l.b16 %v124
    %v1752 = vunpack.c.h.b16 %v124
    %v1753 = vunpack.c.l.b16 %v125
    %v1754 = vunpack.c.h.b16 %v125
    %v1755 = vunpack.c.l.b16 %v126
    %v1756 = vunpack.c.h.b16 %v126
    %v1757 = vunpack.c.l.b16 %v127
    %v1758 = vunpack.c.h.b16 %v127
    %v1759 = vunpack.c.l.b16 %v128
    %v1760 = vunpack.c.h.b16 %v128
    %v1761 = vunpack.c.l.b16 %v129
    %v1762 = vunpack.c.h.b16 %v129
    %v1763 = vunpack.c.l.b16 %v130
    %v1764 = vunpack.c.h.b16 %v130
    %v1765 = vunpack.c.l.b16 %v131
    %v1766 = vunpack.c.h.b16 %v131
    %v1767 = vunpack.c.l.b16 %v132
    %v1768 = vunpack.c.h.b16 %v132
    %v1769 = vunpack.c.l.b16 %v133
    %v1770 = vunpack.c.h.b16 %v133
    %v1771 = vunpack.c.l.b16 %v134
    %v1772 = vunpack.c.h.b16 %v134
    %v1773 = vunpack.c.l.b16 %v135
    %v1774 = vunpack.c.h.b16 %v135
    %v1775 = vunpack.c.l.b16 %v136
    %v1776 = vunpack.c.h.b16 %v136
    %v1777 = vunpack.c.l.b16 %v137
    %v1778 = vunpack.c.h.b16 %v137
    %v1779 = vunpack.c.l.b16 %v138
    %v1780 = vunpack.c.h.b16 %v138
    %v1781 = vunpack.c.l.b16 %v139
    %v1782 = vunpack.c.h.b16 %v139
    %v1783 = vunpack.c.l.b16 %v140
    %v1784 = vunpack.c.h.b16 %v140
    %v1785 = vunpack.c.l.b16 %v141
    %v1786 = vunpack.c.h.b16 %v141
    %v1787 = vunpack.c.l.b16 %v142
    %v1788 = vunpack.c.h.b16 %v142
    %v1789 = vunpack.c.l.b16 %v143
    %v1790 = vunpack.c.h.b16 %v143
    %v1791 = vunpack.c.l.b16 %v144
    %v1792 = vunpack.c.h.b16 %v144
    %v1793 = vunpack.c.l.b16 %v145
    %v1794 = vunpack.c.h.b16 %v145
    %v1795 = vunpack.c.l.b16 %v146
    %v1796 = vunpack.c.h.b16 %v146
    %v1797 = vunpack.c.l.b16 %v147
    %v1798 = vunpack.c.h.b16 %v147
    %v1799 = vunpack.c.l.b16 %v148
    %v1800 = vunpack.c.h.b16 %v148
    %v1801 = vunpack.c.l.b16 %v149
    %v1802 = vunpack.c.h.b16 %v149
    %v1803 = vunpack.c.l.b16 %v150
    %v1804 = vunpack.c.h.b16 %v150
    %v1805 = vunpack.c.l.b16 %v151
    %v1806 = vunpack.c.h.b16 %v151
    %v1807 = vunpack.c.l.b16 %v152
    %v1808 = vunpack.c.h.b16 %v152
    %v1809 = vunpack.c.l.b16 %v153
    %v1810 = vunpack.c.h.b16 %v153
    %v1811 = vunpack.c.l.b16 %v154
    %v1812 = vunpack.c.h.b16 %v154
    %v1813 = vunpack.c.l.b16 %v155
    %v1814 = vunpack.c.h.b16 %v155
    %v1815 = vunpack.c.l.b16 %v156
    %v1816 = vunpack.c.h.b16 %v156
    %v1817 = vunpack.c.l.b16 %v157
    %v1818 = vunpack.c.h.b16 %v157
    %v1819 = vunpack.c.l.b16 %v158
    %v1820 = vunpack.c.h.b16 %v158
    %v1821 = vunpack.c.l.b16 %v159
    %v1822 = vunpack.c.h.b16 %v159
    %v1823 = vunpack.c.l.b16 %v160
    %v1824 = vunpack.c.h.b16 %v160
    %v1825 = vunpack.c.l.b16 %v161
    %v1826 = vunpack.c.h.b16 %v161
    %v1827 = vunpack.c.l.b16 %v162
    %v1828 = vunpack.c.h.b16 %v162
    %v1829 = vunpack.c.l.b16 %v163
    %v1830 = vunpack.c.h.b16 %v163
    %v1831 = vunpack.c.l.b16 %v164
    %v1832 = vunpack.c.h.b16 %v164
    %v1833 = vunpack.c.l.b16 %v165
    %v1834 = vunpack.c.h.b16 %v165
    %v1835 = vunpack.c.l.b16 %v166
    %v1836 = vunpack.c.h.b16 %v166
    %v1837 = vunpack.c.l.b16 %v167
    %v1838 = vunpack.c.h.b16 %v167
    %v1839 = vunpack.c.l.b16 %v168
    %v1840 = vunpack.c.h.b16 %v168
    %v1841 = vunpack.c.l.b16 %v169
    %v1842 = vunpack.c.h.b16 %v169
    %v1843 = vunpack.c.l.b16 %v170
    %v1844 = vunpack.c.h.b16 %v170
    %v1845 = vunpack.c.l.b16 %v171
    %v1846 = vunpack.c.h.b16 %v171
    %v1847 = vunpack.c.l.b16 %v172
    %v1848 = vunpack.c.h.b16 %v172
    %v1849 = vunpack.c.l.b16 %v173
    %v1850 = vunpack.c.h.b16 %v173
    %v1851 = vunpack.c.l.b16 %v174
    %v1852 = vunpack.c.h.b16 %v174
    %v1853 = vunpack.c.l.b16 %v175
    %v1854 = vunpack.c.h.b16 %v175
    %v1855 = vunpack.c.l.b16 %v176
    %v1856 = vunpack.c.h.b16 %v176
    %v1857 = vunpack.c.l.b16 %v177
    %v1858 = vunpack.c.h.b16 %v177
    %v1859 = vunpack.c.l.b16 %v178
    %v1860 = vunpack.c.h.b16 %v178
    %v1861 = vunpack.c.l.b16 %v179
    %v1862 = vunpack.c.h.b16 %v179
    %v1863 = vunpack.c.l.b16 %v180
    %v1864 = vunpack.c.h.b16 %v180
    %v1865 = vunpack.c.l.b16 %v181
    %v1866 = vunpack.c.h.b16 %v181
    %v1867 = vunpack.c.l.b16 %v182
    %v1868 = vunpack.c.h.b16 %v182
    %v1869 = vunpack.c.l.b16 %v183
    %v1870 = vunpack.c.h.b16 %v183
    %v1871 = vunpack.c.l.b16 %v184
    %v1872 = vunpack.c.h.b16 %v184
    %v1873 = vunpack.c.l.b16 %v185
    %v1874 = vunpack.c.h.b16 %v185
    %v1875 = vunpack.c.l.b16 %v186
    %v1876 = vunpack.c.h.b16 %v186
    %v1877 = vunpack.c.l.b16 %v187
    %v1878 = vunpack.c.h.b16 %v187
    %v1879 = vunpack.c.l.b16 %v188
    %v1880 = vunpack.c.h.b16 %v188
    %v1881 = vunpack.c.l.b16 %v189
    %v1882 = vunpack.c.h.b16 %v189
    %v1883 = vunpack.c.l.b16 %v190
    %v1884 = vunpack.c.h.b16 %v190
    %v1885 = vunpack.c.l.b16 %v191
    %v1886 = vunpack.c.h.b16 %v191
    %v1887 = vunpack.c.l.b16 %v192
    %v1888 = vunpack.c.h.b16 %v192
    %v1889 = vunpack.c.l.b16 %v193
    %v1890 = vunpack.c.h.b16 %v193
    %v1891 = vunpack.c.l.b16 %v194
    %v1892 = vunpack.c.h.b16 %v194
    %v1893 = vunpack.c.l.b16 %v195
    %v1894 = vunpack.c.h.b16 %v195
    %v1895 = vunpack.c.l.b16 %v196
    %v1896 = vunpack.c.h.b16 %v196
    %v1897 = vunpack.c.l.b16 %v197
    %v1898 = vunpack.c.h.b16 %v197
    %v1899 = vunpack.c.l.b16 %v198
    %v1900 = vunpack.c.h.b16 %v198
    %v1901 = vunpack.c.l.b16 %v199
    %v1902 = vunpack.c.h.b16 %v199
    %v1903 = vunpack.c.l.b16 %v200
    %v1904 = vunpack.c.h.b16 %v200
    %v1905 = vunpack.c.l.b16 %v201
    %v1906 = vunpack.c.h.b16 %v201
    %v1907 = vunpack.c.l.b16 %v202
    %v1908 = vunpack.c.h.b16 %v202
    %v1909 = vunpack.c.l.b16 %v203
    %v1910 = vunpack.c.h.b16 %v203
    %v1911 = vunpack.c.l.b16 %v204
    %v1912 = vunpack.c.h.b16 %v204
    %v1913 = vunpack.c.l.b16 %v205
    %v1914 = vunpack.c.h.b16 %v205
    %v1915 = vunpack.c.l.b16 %v206
    %v1916 = vunpack.c.h.b16 %v206
    %v1917 = vunpack.c.l.b16 %v207
    %v1918 = vunpack.c.h.b16 %v207
    %v1919 = vunpack.c.l.b16 %v208
    %v1920 = vunpack.c.h.b16 %v208
    %v1921 = vunpack.c.l.b16 %v209
    %v1922 = vunpack.c.h.b16 %v209
    %v1923 = vunpack.c.l.b16 %v210
    %v1924 = vunpack.c.h.b16 %v210
    %v1925 = vunpack.c.l.b16 %v211
    %v1926 = vunpack.c.h.b16 %v211
    %v1927 = vunpack.c.l.b16 %v212
    %v1928 = vunpack.c.h.b16 %v212
    %v1929 = vunpack.c.l.b16 %v213
    %v1930 = vunpack.c.h.b16 %v213
    %v1931 = vunpack.c.l.b16 %v214
    %v1932 = vunpack.c.h.b16 %v214
    %v1933 = vunpack.c.l.b16 %v215
    %v1934 = vunpack.c.h.b16 %v215
    %v1935 = vunpack.c.l.b16 %v216
    %v1936 = vunpack.c.h.b16 %v216
    %v1937 = vunpack.c.l.b16 %v217
    %v1938 = vunpack.c.h.b16 %v217
    %v1939 = vunpack.c.l.b16 %v218
    %v1940 = vunpack.c.h.b16 %v218
    %v1941 = vunpack.c.l.b16 %v219
    %v1942 = vunpack.c.h.b16 %v219
    %v1943 = vunpack.c.l.b16 %v220
    %v1944 = vunpack.c.h.b16 %v220
    %v1945 = vunpack.c.l.b16 %v221
    %v1946 = vunpack.c.h.b16 %v221
    %v1947 = vunpack.c.l.b16 %v222
    %v1948 = vunpack.c.h.b16 %v222
    %v1949 = vunpack.c.l.b16 %v223
    %v1950 = vunpack.c.h.b16 %v223
    %v1951 = vunpack.c.l.b16 %v224
    %v1952 = vunpack.c.h.b16 %v224
    %v1953 = vunpack.c.l.b16 %v225
    %v1954 = vunpack.c.h.b16 %v225
    %v1955 = vunpack.c.l.b16 %v226
    %v1956 = vunpack.c.h.b16 %v226
    %v1957 = vunpack.c.l.b16 %v227
    %v1958 = vunpack.c.h.b16 %v227
    %v1959 = vunpack.c.l.b16 %v228
    %v1960 = vunpack.c.h.b16 %v228
    %v1961 = vunpack.c.l.b16 %v229
    %v1962 = vunpack.c.h.b16 %v229
    %v1963 = vunpack.c.l.b16 %v230
    %v1964 = vunpack.c.h.b16 %v230
    %v1965 = vunpack.c.l.b16 %v231
    %v1966 = vunpack.c.h.b16 %v231
    %v1967 = vunpack.c.l.b16 %v232
    %v1968 = vunpack.c.h.b16 %v232
    %v1969 = vunpack.c.l.b16 %v233
    %v1970 = vunpack.c.h.b16 %v233
    %v1971 = vunpack.c.l.b16 %v234
    %v1972 = vunpack.c.h.b16 %v234
    %v1973 = vunpack.c.l.b16 %v235
    %v1974 = vunpack.c.h.b16 %v235
    %v1975 = vunpack.c.l.b16 %v236
    %v1976 = vunpack.c.h.b16 %v236
    %v1977 = vunpack.c.l.b16 %v237
    %v1978 = vunpack.c.h.b16 %v237
    %v1979 = vunpack.c.l.b16 %v238
    %v1980 = vunpack.c.h.b16 %v238
    %v1981 = vunpack.c.l.b16 %v239
    %v1982 = vunpack.c.h.b16 %v239
    %v1983 = vunpack.c.l.b16 %v240
    %v1984 = vunpack.c.h.b16 %v240
    %v1985 = vunpack.c.l.b16 %v241
    %v1986 = vunpack.c.h.b16 %v241
    %v1987 = vunpack.c.l.b16 %v242
    %v1988 = vunpack.c.h.b16 %v242
    %v1989 = vunpack.c.l.b16 %v243
    %v1990 = vunpack.c.h.b16 %v243
    %v1991 = vunpack.c.l.b16 %v244
    %v1992 = vunpack.c.h.b16 %v244
    %v1993 = vunpack.c.l.b16 %v245
    %v1994 = vunpack.c.h.b16 %v245
    %v1995 = vunpack.c.l.b16 %v246
    %v1996 = vunpack.c.h.b16 %v246
    %v1997 = vunpack.c.l.b16 %v247
    %v1998 = vunpack.c.h.b16 %v247
    %v1999 = vunpack.c.l.b16 %v248
    %v2000 = vunpack.c.h.b16 %v248
    %v2001 = vunpack.c.l.b16 %v249
    %v2002 = vunpack.c.h.b16 %v249
    %v2003 = vunpack.c.l.b16 %v250
    %v2004 = vunpack.c.h.b16 %v250
    %v2005 = vunpack.c.l.b16 %v251
    %v2006 = vunpack.c.h.b16 %v251
    %v2007 = vunpack.c.l.b16 %v252
    %v2008 = vunpack.c.h.b16 %v252
    %v2009 = vunpack.c.l.b16 %v253
    %v2010 = vunpack.c.h.b16 %v253
    %v2011 = vunpack.c.l.b16 %v254
    %v2012 = vunpack.c.h.b16 %v254
    %v2013 = vunpack.c.l.b16 %v255
    %v2014 = vunpack.c.h.b16 %v255
    %v2015 = vunpack.c.l.b16 %v256
    %v2016 = vunpack.c.h.b16 %v256
    %v2017 = vunpack.c.l.b16 %v257
    %v2018 = vunpack.c.h.b16 %v257
    %v2019 = vunpack.c.l.b16 %v258
    %v2020 = vunpack.c.h.b16 %v258
    %v2021 = vunpack.c.l.b16 %v259
    %v2022 = vunpack.c.h.b16 %v259
    %v2023 = vunpack.c.l.b16 %v260
    %v2024 = vunpack.c.h.b16 %v260
    %v2025 = vunpack.c.l.b16 %v261
    %v2026 = vunpack.c.h.b16 %v261
    %v2027 = vunpack.c.l.b16 %v262
    %v2028 = vunpack.c.h.b16 %v262
    %v2029 = vunpack.c.l.b16 %v263
    %v2030 = vunpack.c.h.b16 %v263
    %v2031 = vunpack.c.l.b16 %v264
    %v2032 = vunpack.c.h.b16 %v264
    %v2033 = vunpack.c.l.b16 %v265
    %v2034 = vunpack.c.h.b16 %v265
    %v2035 = vunpack.c.l.b16 %v266
    %v2036 = vunpack.c.h.b16 %v266
    %v2037 = vunpack.c.l.b16 %v267
    %v2038 = vunpack.c.h.b16 %v267
    %v2039 = vunpack.c.l.b16 %v268
    %v2040 = vunpack.c.h.b16 %v268
    %v2041 = vunpack.c.l.b16 %v269
    %v2042 = vunpack.c.h.b16 %v269
    %v2043 = vunpack.c.l.b16 %v270
    %v2044 = vunpack.c.h.b16 %v270
    %v2045 = vunpack.c.l.b16 %v271
    %v2046 = vunpack.c.h.b16 %v271
    %v2047 = vunpack.c.l.b16 %v272
    %v2048 = vunpack.c.h.b16 %v272
    %v2049 = vunpack.c.l.b16 %v273
    %v2050 = vunpack.c.h.b16 %v273
    %v2051 = vunpack.c.l.b16 %v274
    %v2052 = vunpack.c.h.b16 %v274
    %v2053 = vunpack.c.l.b16 %v275
    %v2054 = vunpack.c.h.b16 %v275
    %v2055 = vunpack.c.l.b16 %v276
    %v2056 = vunpack.c.h.b16 %v276
    %v2057 = vunpack.c.l.b16 %v277
    %v2058 = vunpack.c.h.b16 %v277
    %v2059 = vunpack.c.l.b16 %v278
    %v2060 = vunpack.c.h.b16 %v278
    %v2061 = vunpack.c.l.b16 %v279
    %v2062 = vunpack.c.h.b16 %v279
    %v2063 = vunpack.c.l.b16 %v280
    %v2064 = vunpack.c.h.b16 %v280
    %v2065 = vunpack.c.l.b16 %v281
    %v2066 = vunpack.c.h.b16 %v281
    %v2067 = vunpack.c.l.b16 %v282
    %v2068 = vunpack.c.h.b16 %v282
    %v2069 = vunpack.c.l.b16 %v283
    %v2070 = vunpack.c.h.b16 %v283
    %v2071 = vunpack.c.l.b16 %v284
    %v2072 = vunpack.c.h.b16 %v284
    %v2073 = vunpack.c.l.b16 %v285
    %v2074 = vunpack.c.h.b16 %v285
    %v2075 = vunpack.c.l.b16 %v286
    %v2076 = vunpack.c.h.b16 %v286
    %v2077 = vunpack.c.l.b16 %v287
    %v2078 = vunpack.c.h.b16 %v287
    %v2079 = vunpack.c.l.b16 %v288
    %v2080 = vunpack.c.h.b16 %v288
    %v2081 = vunpack.c.l.b16 %v289
    %v2082 = vunpack.c.h.b16 %v289
    %v2083 = vunpack.c.l.b16 %v290
    %v2084 = vunpack.c.h.b16 %v290
    %v2085 = vunpack.c.l.b16 %v291
    %v2086 = vunpack.c.h.b16 %v291
    %v2087 = vunpack.c.l.b16 %v292
    %v2088 = vunpack.c.h.b16 %v292
    %v2089 = vunpack.c.l.b16 %v293
    %v2090 = vunpack.c.h.b16 %v293
    %v2091 = vunpack.c.l.b16 %v294
    %v2092 = vunpack.c.h.b16 %v294
    %v2093 = vunpack.c.l.b16 %v295
    %v2094 = vunpack.c.h.b16 %v295
    %v2095 = vunpack.c.l.b16 %v296
    %v2096 = vunpack.c.h.b16 %v296
    %v2097 = vunpack.c.l.b16 %v297
    %v2098 = vunpack.c.h.b16 %v297
    %v2099 = vunpack.c.l.b16 %v298
    %v2100 = vunpack.c.h.b16 %v298
    %v2101 = vunpack.c.l.b16 %v299
    %v2102 = vunpack.c.h.b16 %v299
    %v2103 = vunpack.c.l.b16 %v300
    %v2104 = vunpack.c.h.b16 %v300
    %v2105 = vunpack.c.l.b16 %v301
    %v2106 = vunpack.c.h.b16 %v301
    %v2107 = vunpack.c.l.b16 %v302
    %v2108 = vunpack.c.h.b16 %v302
    %v2109 = vunpack.c.l.b16 %v303
    %v2110 = vunpack.c.h.b16 %v303
    %v2111 = vunpack.c.l.b16 %v304
    %v2112 = vunpack.c.h.b16 %v304
    %v2113 = vunpack.c.l.b16 %v305
    %v2114 = vunpack.c.h.b16 %v305
    %v2115 = vunpack.c.l.b16 %v306
    %v2116 = vunpack.c.h.b16 %v306
    %v2117 = vunpack.c.l.b16 %v307
    %v2118 = vunpack.c.h.b16 %v307
    %v2119 = vunpack.c.l.b16 %v308
    %v2120 = vunpack.c.h.b16 %v308
    %v2121 = vunpack.c.l.b16 %v309
    %v2122 = vunpack.c.h.b16 %v309
    %v2123 = vunpack.c.l.b16 %v310
    %v2124 = vunpack.c.h.b16 %v310
    %v2125 = vunpack.c.l.b16 %v311
    %v2126 = vunpack.c.h.b16 %v311
    %v2127 = vunpack.c.l.b16 %v312
    %v2128 = vunpack.c.h.b16 %v312
    %v2129 = vunpack.c.l.b16 %v313
    %v2130 = vunpack.c.h.b16 %v313
    %v2131 = vunpack.c.l.b16 %v314
    %v2132 = vunpack.c.h.b16 %v314
    %v2133 = vunpack.c.l.b16 %v315
    %v2134 = vunpack.c.h.b16 %v315
    %v2135 = vunpack.c.l.b16 %v316
    %v2136 = vunpack.c.h.b16 %v316
    %v2137 = vunpack.c.l.b16 %v317
    %v2138 = vunpack.c.h.b16 %v317
    %v2139 = vunpack.c.l.b16 %v318
    %v2140 = vunpack.c.h.b16 %v318
    %v2141 = vunpack.c.l.b16 %v319
    %v2142 = vunpack.c.h.b16 %v319
    %v2143 = vunpack.c.l.b16 %v320
    %v2144 = vunpack.c.h.b16 %v320
    %v2145 = vunpack.c.l.b16 %v321
    %v2146 = vunpack.c.h.b16 %v321
    %v2147 = vunpack.c.l.b16 %v322
    %v2148 = vunpack.c.h.b16 %v322
    %v2149 = vunpack.c.l.b16 %v323
    %v2150 = vunpack.c.h.b16 %v323
    %v2151 = vunpack.c.l.b16 %v324
    %v2152 = vunpack.c.h.b16 %v324
    %v2153 = vunpack.c.l.b16 %v325
    %v2154 = vunpack.c.h.b16 %v325
    %v2155 = vunpack.c.l.b16 %v326
    %v2156 = vunpack.c.h.b16 %v326
    %v2157 = vunpack.c.l.b16 %v327
    %v2158 = vunpack.c.h.b16 %v327
    %v2159 = vunpack.c.l.b16 %v328
    %v2160 = vunpack.c.h.b16 %v328
    %v2161 = vunpack.c.l.b16 %v329
    %v2162 = vunpack.c.h.b16 %v329
    %v2163 = vunpack.c.l.b16 %v330
    %v2164 = vunpack.c.h.b16 %v330
    %v2165 = vunpack.c.l.b16 %v331
    %v2166 = vunpack.c.h.b16 %v331
    %v2167 = vunpack.c.l.b16 %v332
    %v2168 = vunpack.c.h.b16 %v332
    %v2169 = vunpack.c.l.b16 %v333
    %v2170 = vunpack.c.h.b16 %v333
    %v2171 = vunpack.c.l.b16 %v334
    %v2172 = vunpack.c.h.b16 %v334
    %v2173 = vunpack.c.l.b16 %v335
    %v2174 = vunpack.c.h.b16 %v335
    %v2175 = vunpack.c.l.b16 %v336
    %v2176 = vunpack.c.h.b16 %v336
    %v2177 = vunpack.c.l.b16 %v337
    %v2178 = vunpack.c.h.b16 %v337
    %v2179 = vunpack.c.l.b16 %v338
    %v2180 = vunpack.c.h.b16 %v338
    %v2181 = vunpack.c.l.b16 %v339
    %v2182 = vunpack.c.h.b16 %v339
    %v2183 = vunpack.c.l.b16 %v340
    %v2184 = vunpack.c.h.b16 %v340
    %v2185 = vunpack.c.l.b16 %v341
    %v2186 = vunpack.c.h.b16 %v341
    %v2187 = vunpack.c.l.b16 %v342
    %v2188 = vunpack.c.h.b16 %v342
    %v2189 = vunpack.c.l.b16 %v343
    %v2190 = vunpack.c.h.b16 %v343
    %v2191 = vunpack.c.l.b16 %v344
    %v2192 = vunpack.c.h.b16 %v344
    %v2193 = vunpack.c.l.b16 %v345
    %v2194 = vunpack.c.h.b16 %v345
    %v2195 = vunpack.c.l.b16 %v346
    %v2196 = vunpack.c.h.b16 %v346
    %v2197 = vunpack.c.l.b16 %v347
    %v2198 = vunpack.c.h.b16 %v347
    %v2199 = vunpack.c.l.b16 %v348
    %v2200 = vunpack.c.h.b16 %v348
    %v2201 = vunpack.c.l.b16 %v349
    %v2202 = vunpack.c.h.b16 %v349
    %v2203 = vunpack.c.l.b16 %v350
    %v2204 = vunpack.c.h.b16 %v350
    %v2205 = vunpack.c.l.b16 %v351
    %v2206 = vunpack.c.h.b16 %v351
    %v2207 = vunpack.c.l.b16 %v352
    %v2208 = vunpack.c.h.b16 %v352
    %v2209 = vunpack.c.l.b16 %v353
    %v2210 = vunpack.c.h.b16 %v353
    %v2211 = vunpack.c.l.b16 %v354
    %v2212 = vunpack.c.h.b16 %v354
    %v2213 = vunpack.c.l.b16 %v355
    %v2214 = vunpack.c.h.b16 %v355
    %v2215 = vunpack.c.l.b16 %v356
    %v2216 = vunpack.c.h.b16 %v356
    %v2217 = vunpack.c.l.b16 %v357
    %v2218 = vunpack.c.h.b16 %v357
    %v2219 = vunpack.c.l.b16 %v358
    %v2220 = vunpack.c.h.b16 %v358
    %v2221 = vunpack.c.l.b16 %v359
    %v2222 = vunpack.c.h.b16 %v359
    %v2223 = vunpack.c.l.b16 %v360
    %v2224 = vunpack.c.h.b16 %v360
    %v2225 = vunpack.c.l.b16 %v361
    %v2226 = vunpack.c.h.b16 %v361
    %v2227 = vunpack.c.l.b16 %v362
    %v2228 = vunpack.c.h.b16 %v362
    %v2229 = vunpack.c.l.b16 %v363
    %v2230 = vunpack.c.h.b16 %v363
    %v2231 = vunpack.c.l.b16 %v364
    %v2232 = vunpack.c.h.b16 %v364
    %v2233 = vunpack.c.l.b16 %v365
    %v2234 = vunpack.c.h.b16 %v365
    %v2235 = vunpack.c.l.b16 %v366
    %v2236 = vunpack.c.h.b16 %v366
    %v2237 = vunpack.c.l.b16 %v367
    %v2238 = vunpack.c.h.b16 %v367
    %v2239 = vunpack.c.l.b16 %v368
    %v2240 = vunpack.c.h.b16 %v368
    %v2241 = vunpack.c.l.b16 %v369
    %v2242 = vunpack.c.h.b16 %v369
    %v2243 = vunpack.c.l.b16 %v370
    %v2244 = vunpack.c.h.b16 %v370
    %v2245 = vunpack.c.l.b16 %v371
    %v2246 = vunpack.c.h.b16 %v371
    %v2247 = vunpack.c.l.b16 %v372
    %v2248 = vunpack.c.h.b16 %v372
    %v2249 = vunpack.c.l.b16 %v373
    %v2250 = vunpack.c.h.b16 %v373
    %v2251 = vunpack.c.l.b16 %v374
    %v2252 = vunpack.c.h.b16 %v374
    %v2253 = vunpack.c.l.b16 %v375
    %v2254 = vunpack.c.h.b16 %v375
    %v2255 = vunpack.c.l.b16 %v376
    %v2256 = vunpack.c.h.b16 %v376
    %v2257 = vunpack.c.l.b16 %v377
    %v2258 = vunpack.c.h.b16 %v377
    %v2259 = vunpack.c.l.b16 %v378
    %v2260 = vunpack.c.h.b16 %v378
    %v2261 = vunpack.c.l.b16 %v379
    %v2262 = vunpack.c.h.b16 %v379
    %v2263 = vunpack.c.l.b16 %v380
    %v2264 = vunpack.c.h.b16 %v380
    %v2265 = vunpack.c.l.b16 %v381
    %v2266 = vunpack.c.h.b16 %v381
    %v2267 = vunpack.c.l.b16 %v382
    %v2268 = vunpack.c.h.b16 %v382
    %v2269 = vunpack.c.l.b16 %v383
    %v2270 = vunpack.c.h.b16 %v383
    %v2271 = vunpack.c.l.b16 %v384
    %v2272 = vunpack.c.h.b16 %v384
    %v2273 = vunpack.c.l.b16 %v385
    %v2274 = vunpack.c.h.b16 %v385
    %v2275 = vunpack.c.l.b16 %v386
    %v2276 = vunpack.c.h.b16 %v386
    %v2277 = vunpack.c.l.b16 %v387
    %v2278 = vunpack.c.h.b16 %v387
    %v2279 = vunpack.c.l.b16 %v388
    %v2280 = vunpack.c.h.b16 %v388
    %v2281 = vunpack.c.l.b16 %v389
    %v2282 = vunpack.c.h.b16 %v389
    %v2283 = vunpack.c.l.b16 %v390
    %v2284 = vunpack.c.h.b16 %v390
    %v2285 = vunpack.c.l.b16 %v391
    %v2286 = vunpack.c.h.b16 %v391
    %v2287 = vunpack.c.l.b16 %v392
    %v2288 = vunpack.c.h.b16 %v392
    %v2289 = vunpack.c.l.b16 %v393
    %v2290 = vunpack.c.h.b16 %v393
    %v2291 = vunpack.c.l.b16 %v394
    %v2292 = vunpack.c.h.b16 %v394
    %v2293 = vunpack.c.l.b16 %v395
    %v2294 = vunpack.c.h.b16 %v395
    %v2295 = vunpack.c.l.b16 %v396
    %v2296 = vunpack.c.h.b16 %v396
    %v2297 = vunpack.c.l.b16 %v397
    %v2298 = vunpack.c.h.b16 %v397
    %v2299 = vunpack.c.l.b16 %v398
    %v2300 = vunpack.c.h.b16 %v398
    %v2301 = vunpack.c.l.b16 %v399
    %v2302 = vunpack.c.h.b16 %v399
    %v2303 = vunpack.c.l.b16 %v400
    %v2304 = vunpack.c.h.b16 %v400
    %v2305 = vunpack.c.l.b16 %v401
    %v2306 = vunpack.c.h.b16 %v401
    %v2307 = vunpack.c.l.b16 %v402
    %v2308 = vunpack.c.h.b16 %v402
    %v2309 = vunpack.c.l.b16 %v403
    %v2310 = vunpack.c.h.b16 %v403
    %v2311 = vunpack.c.l.b16 %v404
    %v2312 = vunpack.c.h.b16 %v404
    %v2313 = vunpack.c.l.b16 %v405
    %v2314 = vunpack.c.h.b16 %v405
    %v2315 = vunpack.c.l.b16 %v406
    %v2316 = vunpack.c.h.b16 %v406
    %v2317 = vunpack.c.l.b16 %v407
    %v2318 = vunpack.c.h.b16 %v407
    %v2319 = vunpack.c.l.b16 %v408
    %v2320 = vunpack.c.h.b16 %v408
    %v2321 = vunpack.c.l.b16 %v409
    %v2322 = vunpack.c.h.b16 %v409
    %v2323 = vunpack.c.l.b16 %v410
    %v2324 = vunpack.c.h.b16 %v410
    %v2325 = vunpack.c.l.b16 %v411
    %v2326 = vunpack.c.h.b16 %v411
    %v2327 = vunpack.c.l.b16 %v412
    %v2328 = vunpack.c.h.b16 %v412
    %v2329 = vunpack.c.l.b16 %v413
    %v2330 = vunpack.c.h.b16 %v413
    %v2331 = vunpack.c.l.b16 %v414
    %v2332 = vunpack.c.h.b16 %v414
    %v2333 = vunpack.c.l.b16 %v415
    %v2334 = vunpack.c.h.b16 %v415
    %v2335 = vunpack.c.l.b16 %v416
    %v2336 = vunpack.c.h.b16 %v416
    %v2337 = vunpack.c.l.b16 %v417
    %v2338 = vunpack.c.h.b16 %v417
    %v2339 = vunpack.c.l.b16 %v418
    %v2340 = vunpack.c.h.b16 %v418
    %v2341 = vunpack.c.l.b16 %v419
    %v2342 = vunpack.c.h.b16 %v419
    %v2343 = vunpack.c.l.b16 %v420
    %v2344 = vunpack.c.h.b16 %v420
    %v2345 = vunpack.c.l.b16 %v421
    %v2346 = vunpack.c.h.b16 %v421
    %v2347 = vunpack.c.l.b16 %v422
    %v2348 = vunpack.c.h.b16 %v422
    %v2349 = vunpack.c.l.b16 %v423
    %v2350 = vunpack.c.h.b16 %v423
    %v2351 = vunpack.c.l.b16 %v424
    %v2352 = vunpack.c.h.b16 %v424
    %v2353 = vunpack.c.l.b16 %v425
    %v2354 = vunpack.c.h.b16 %v425
    %v2355 = vunpack.c.l.b16 %v426
    %v2356 = vunpack.c.h.b16 %v426
    %v2357 = vunpack.c.l.b16 %v427
    %v2358 = vunpack.c.h.b16 %v427
    %v2359 = vunpack.c.l.b16 %v428
    %v2360 = vunpack.c.h.b16 %v428
    %v2361 = vunpack.c.l.b16 %v429
    %v2362 = vunpack.c.h.b16 %v429
    %v2363 = vunpack.c.l.b16 %v430
    %v2364 = vunpack.c.h.b16 %v430
    %v2365 = vunpack.c.l.b16 %v431
    %v2366 = vunpack.c.h.b16 %v431
    %v2367 = vunpack.c.l.b16 %v432
    %v2368 = vunpack.c.h.b16 %v432
    %v2369 = vunpack.c.l.b16 %v433
    %v2370 = vunpack.c.h.b16 %v433
    %v2371 = vunpack.c.l.b16 %v434
    %v2372 = vunpack.c.h.b16 %v434
    %v2373 = vunpack.c.l.b16 %v435
    %v2374 = vunpack.c.h.b16 %v435
    %v2375 = vunpack.c.l.b16 %v436
    %v2376 = vunpack.c.h.b16 %v436
    %v2377 = vunpack.c.l.b16 %v437
    %v2378 = vunpack.c.h.b16 %v437
    %v2379 = vunpack.c.l.b16 %v438
    %v2380 = vunpack.c.h.b16 %v438
    %v2381 = vunpack.c.l.b16 %v439
    %v2382 = vunpack.c.h.b16 %v439
    %v2383 = vunpack.c.l.b16 %v440
    %v2384 = vunpack.c.h.b16 %v440
    %v2385 = vunpack.c.l.b16 %v441
    %v2386 = vunpack.c.h.b16 %v441
    %v2387 = vunpack.c.l.b16 %v442
    %v2388 = vunpack.c.h.b16 %v442
    %v2389 = vunpack.c.l.b16 %v443
    %v2390 = vunpack.c.h.b16 %v443
    %v2391 = vunpack.c.l.b16 %v444
    %v2392 = vunpack.c.h.b16 %v444
    %v2393 = vunpack.c.l.b16 %v445
    %v2394 = vunpack.c.h.b16 %v445
    %v2395 = vunpack.c.l.b16 %v446
    %v2396 = vunpack.c.h.b16 %v446
    %v2397 = vunpack.c.l.b16 %v447
    %v2398 = vunpack.c.h.b16 %v447
    %v2399 = vunpack.c.l.b16 %v448
    %v2400 = vunpack.c.h.b16 %v448
    %v2401 = vunpack.c.l.b16 %v449
    %v2402 = vunpack.c.h.b16 %v449
    %v2403 = vunpack.c.l.b16 %v450
    %v2404 = vunpack.c.h.b16 %v450
    %v2405 = vunpack.c.l.b16 %v451
    %v2406 = vunpack.c.h.b16 %v451
    %v2407 = vunpack.c.l.b16 %v452
    %v2408 = vunpack.c.h.b16 %v452
    %v2409 = vunpack.c.l.b16 %v453
    %v2410 = vunpack.c.h.b16 %v453
    %v2411 = vunpack.c.l.b16 %v454
    %v2412 = vunpack.c.h.b16 %v454
    %v2413 = vunpack.c.l.b16 %v455
    %v2414 = vunpack.c.h.b16 %v455
    %v2415 = vunpack.c.l.b16 %v456
    %v2416 = vunpack.c.h.b16 %v456
    %v2417 = vunpack.c.l.b16 %v457
    %v2418 = vunpack.c.h.b16 %v457
    %v2419 = vunpack.c.l.b16 %v458
    %v2420 = vunpack.c.h.b16 %v458
    %v2421 = vunpack.c.l.b16 %v459
    %v2422 = vunpack.c.h.b16 %v459
    %v2423 = vunpack.c.l.b16 %v460
    %v2424 = vunpack.c.h.b16 %v460
    %v2425 = vunpack.c.l.b16 %v461
    %v2426 = vunpack.c.h.b16 %v461
    %v2427 = vunpack.c.l.b16 %v462
    %v2428 = vunpack.c.h.b16 %v462
    %v2429 = vunpack.c.l.b16 %v463
    %v2430 = vunpack.c.h.b16 %v463
    %v2431 = vunpack.c.l.b16 %v464
    %v2432 = vunpack.c.h.b16 %v464
    %v2433 = vunpack.c.l.b16 %v465
    %v2434 = vunpack.c.h.b16 %v465
    %v2435 = vunpack.c.l.b16 %v466
    %v2436 = vunpack.c.h.b16 %v466
    %v2437 = vunpack.c.l.b16 %v467
    %v2438 = vunpack.c.h.b16 %v467
    %v2439 = vunpack.c.l.b16 %v468
    %v2440 = vunpack.c.h.b16 %v468
    %v2441 = vunpack.c.l.b16 %v469
    %v2442 = vunpack.c.h.b16 %v469
    %v2443 = vunpack.c.l.b16 %v470
    %v2444 = vunpack.c.h.b16 %v470
    %v2445 = vunpack.c.l.b16 %v471
    %v2446 = vunpack.c.h.b16 %v471
    %v2447 = vunpack.c.l.b16 %v472
    %v2448 = vunpack.c.h.b16 %v472
    %v2449 = vunpack.c.l.b16 %v473
    %v2450 = vunpack.c.h.b16 %v473
    %v2451 = vunpack.c.l.b16 %v474
    %v2452 = vunpack.c.h.b16 %v474
    %v2453 = vunpack.c.l.b16 %v475
    %v2454 = vunpack.c.h.b16 %v475
    %v2455 = vunpack.c.l.b16 %v476
    %v2456 = vunpack.c.h.b16 %v476
    %v2457 = vunpack.c.l.b16 %v477
    %v2458 = vunpack.c.h.b16 %v477
    %v2459 = vunpack.c.l.b16 %v478
    %v2460 = vunpack.c.h.b16 %v478
    %v2461 = vunpack.c.l.b16 %v479
    %v2462 = vunpack.c.h.b16 %v479
    %v2463 = vunpack.c.l.b16 %v480
    %v2464 = vunpack.c.h.b16 %v480
    %v2465 = vunpack.c.l.b16 %v481
    %v2466 = vunpack.c.h.b16 %v481
    %v2467 = vunpack.c.l.b16 %v482
    %v2468 = vunpack.c.h.b16 %v482
    %v2469 = vunpack.c.l.b16 %v483
    %v2470 = vunpack.c.h.b16 %v483
    %v2471 = vunpack.c.l.b16 %v484
    %v2472 = vunpack.c.h.b16 %v484
    %v2473 = vunpack.c.l.b16 %v485
    %v2474 = vunpack.c.h.b16 %v485
    %v2475 = vunpack.c.l.b16 %v486
    %v2476 = vunpack.c.h.b16 %v486
    %v2477 = vunpack.c.l.b16 %v487
    %v2478 = vunpack.c.h.b16 %v487
    %v2479 = vunpack.c.l.b16 %v488
    %v2480 = vunpack.c.h.b16 %v488
    %v2481 = vunpack.c.l.b16 %v489
    %v2482 = vunpack.c.h.b16 %v489
    %v2483 = vunpack.c.l.b16 %v490
    %v2484 = vunpack.c.h.b16 %v490
    %v2485 = vunpack.c.l.b16 %v491
    %v2486 = vunpack.c.h.b16 %v491
    %v2487 = vunpack.c.l.b16 %v492
    %v2488 = vunpack.c.h.b16 %v492
    %v2489 = vunpack.c.l.b16 %v493
    %v2490 = vunpack.c.h.b16 %v493
    %v2491 = vunpack.c.l.b16 %v494
    %v2492 = vunpack.c.h.b16 %v494
    %v2493 = vunpack.c.l.b16 %v495
    %v2494 = vunpack.c.h.b16 %v495
    %v2495 = vunpack.c.l.b16 %v496
    %v2496 = vunpack.c.h.b16 %v496
    %v2497 = vunpack.c.l.b16 %v497
    %v2498 = vunpack.c.h.b16 %v497
    %v2499 = vunpack.c.l.b16 %v498
    %v2500 = vunpack.c.h.b16 %v498
    %v2501 = vunpack.c.l.b16 %v499
    %v2502 = vunpack.c.h.b16 %v499
    %v2503 = vunpack.c.l.b16 %v500
    %v2504 = vunpack.c.h.b16 %v500
    %v2505 = vunpack.c.l.b16 %v501
    %v2506 = vunpack.c.h.b16 %v501
    %v2507 = vunpack.c.l.b16 %v502
    %v2508 = vunpack.c.h.b16 %v502
    %v2509 = vunpack.c.l.b16 %v503
    %v2510 = vunpack.c.h.b16 %v503
    %v2511 = vunpack.c.l.b16 %v504
    %v2512 = vunpack.c.h.b16 %v504
    %v2513 = vunpack.c.l.b16 %v505
    %v2514 = vunpack.c.h.b16 %v505
    %v2515 = vunpack.c.l.b16 %v506
    %v2516 = vunpack.c.h.b16 %v506
    %v2517 = vunpack.c.l.b16 %v507
    %v2518 = vunpack.c.h.b16 %v507
    %v2519 = vunpack.c.l.b16 %v508
    %v2520 = vunpack.c.h.b16 %v508
    %v2521 = vunpack.c.l.b16 %v509
    %v2522 = vunpack.c.h.b16 %v509
    %v2523 = vunpack.c.l.b16 %v510
    %v2524 = vunpack.c.h.b16 %v510
    %v2525 = vunpack.c.l.b16 %v511
    %v2526 = vunpack.c.h.b16 %v511
    %v2527 = vunpack.c.l.b16 %v512
    %v2528 = vunpack.c.h.b16 %v512
    %v2529 = vunpack.c.l.b16 %v513
    %v2530 = vunpack.c.h.b16 %v513
    %v2531 = vunpack.c.l.b16 %v514
    %v2532 = vunpack.c.h.b16 %v514
    %v2533 = vunpack.c.l.b16 %v515
    %v2534 = vunpack.c.h.b16 %v515
    %v2535 = vunpack.c.l.b16 %v516
    %v2536 = vunpack.c.h.b16 %v516
    %v2537 = vunpack.c.l.b16 %v517
    %v2538 = vunpack.c.h.b16 %v517
    %v2539 = vunpack.c.l.b16 %v518
    %v2540 = vunpack.c.h.b16 %v518
    %v2541 = vunpack.c.l.b16 %v519
    %v2542 = vunpack.c.h.b16 %v519
    %v2543 = vunpack.c.l.b16 %v520
    %v2544 = vunpack.c.h.b16 %v520
    %v2545 = vunpack.c.l.b16 %v521
    %v2546 = vunpack.c.h.b16 %v521
    %v2547 = vunpack.c.l.b16 %v522
    %v2548 = vunpack.c.h.b16 %v522
    %v2549 = vunpack.c.l.b16 %v523
    %v2550 = vunpack.c.h.b16 %v523
    %v2551 = vunpack.c.l.b16 %v524
    %v2552 = vunpack.c.h.b16 %v524
    %v2553 = vunpack.c.l.b16 %v525
    %v2554 = vunpack.c.h.b16 %v525
    %v2555 = vunpack.c.l.b16 %v526
    %v2556 = vunpack.c.h.b16 %v526
    %v2557 = vunpack.c.l.b16 %v527
    %v2558 = vunpack.c.h.b16 %v527
    %v2559 = vunpack.c.l.b16 %v528
    %v2560 = vunpack.c.h.b16 %v528
    %v2561 = vunpack.c.l.b16 %v529
    %v2562 = vunpack.c.h.b16 %v529
    %v2563 = vunpack.c.l.b16 %v530
    %v2564 = vunpack.c.h.b16 %v530
    %v2565 = vunpack.c.l.b16 %v531
    %v2566 = vunpack.c.h.b16 %v531
    %v2567 = vunpack.c.l.b16 %v532
    %v2568 = vunpack.c.h.b16 %v532
    %v2569 = vunpack.c.l.b16 %v533
    %v2570 = vunpack.c.h.b16 %v533
    %v2571 = vunpack.c.l.b16 %v534
    %v2572 = vunpack.c.h.b16 %v534
    %v2573 = vunpack.c.l.b16 %v535
    %v2574 = vunpack.c.h.b16 %v535
    %v2575 = vunpack.c.l.b16 %v536
    %v2576 = vunpack.c.h.b16 %v536
    %v2577 = vunpack.c.l.b16 %v537
    %v2578 = vunpack.c.h.b16 %v537
    %v2579 = vunpack.c.l.b16 %v538
    %v2580 = vunpack.c.h.b16 %v538
    %v2581 = vunpack.c.l.b16 %v539
    %v2582 = vunpack.c.h.b16 %v539
    %v2583 = vunpack.c.l.b16 %v540
    %v2584 = vunpack.c.h.b16 %v540
    %v2585 = vunpack.c.l.b16 %v541
    %v2586 = vunpack.c.h.b16 %v541
    %v2587 = vunpack.c.l.b16 %v542
    %v2588 = vunpack.c.h.b16 %v542
    %v2589 = vunpack.c.l.b16 %v543
    %v2590 = vunpack.c.h.b16 %v543
    %v2591 = vunpack.c.l.b16 %v544
    %v2592 = vunpack.c.h.b16 %v544
    %v2593 = vunpack.c.l.b16 %v545
    %v2594 = vunpack.c.h.b16 %v545
    %v2595 = vunpack.c.l.b16 %v546
    %v2596 = vunpack.c.h.b16 %v546
    %v2597 = vunpack.c.l.b16 %v547
    %v2598 = vunpack.c.h.b16 %v547
    %v2599 = vunpack.c.l.b16 %v548
    %v2600 = vunpack.c.h.b16 %v548
    %v2601 = vunpack.c.l.b16 %v549
    %v2602 = vunpack.c.h.b16 %v549
    %v2603 = vunpack.c.l.b16 %v550
    %v2604 = vunpack.c.h.b16 %v550
    %v2605 = vunpack.c.l.b16 %v551
    %v2606 = vunpack.c.h.b16 %v551
    %v2607 = vunpack.c.l.b16 %v552
    %v2608 = vunpack.c.h.b16 %v552
    %v2609 = vunpack.c.l.b16 %v553
    %v2610 = vunpack.c.h.b16 %v553
    %v2611 = vunpack.c.l.b16 %v554
    %v2612 = vunpack.c.h.b16 %v554
    %v2613 = vunpack.c.l.b16 %v555
    %v2614 = vunpack.c.h.b16 %v555
    %v2615 = vunpack.c.l.b16 %v556
    %v2616 = vunpack.c.h.b16 %v556
    %v2617 = vunpack.c.l.b16 %v557
    %v2618 = vunpack.c.h.b16 %v557
    %v2619 = vunpack.c.l.b16 %v558
    %v2620 = vunpack.c.h.b16 %v558
    %v2621 = vunpack.c.l.b16 %v559
    %v2622 = vunpack.c.h.b16 %v559
    %v2623 = vunpack.c.l.b16 %v560
    %v2624 = vunpack.c.h.b16 %v560
    %v2625 = vunpack.c.l.b16 %v561
    %v2626 = vunpack.c.h.b16 %v561
    %v2627 = vunpack.c.l.b16 %v562
    %v2628 = vunpack.c.h.b16 %v562
    %v2629 = vunpack.c.l.b16 %v563
    %v2630 = vunpack.c.h.b16 %v563
    %v2631 = vunpack.c.l.b16 %v564
    %v2632 = vunpack.c.h.b16 %v564
    %v2633 = vunpack.c.l.b16 %v565
    %v2634 = vunpack.c.h.b16 %v565
    %v2635 = vunpack.c.l.b16 %v566
    %v2636 = vunpack.c.h.b16 %v566
    %v2637 = vunpack.c.l.b16 %v567
    %v2638 = vunpack.c.h.b16 %v567
    %v2639 = vunpack.c.l.b16 %v568
    %v2640 = vunpack.c.h.b16 %v568
    %v2641 = vunpack.c.l.b16 %v569
    %v2642 = vunpack.c.h.b16 %v569
    %v2643 = vunpack.c.l.b16 %v570
    %v2644 = vunpack.c.h.b16 %v570
    %v2645 = vunpack.c.l.b16 %v571
    %v2646 = vunpack.c.h.b16 %v571
    %v2647 = vunpack.c.l.b16 %v572
    %v2648 = vunpack.c.h.b16 %v572
    %v2649 = vunpack.c.l.b16 %v573
    %v2650 = vunpack.c.h.b16 %v573
    %v2651 = vunpack.c.l.b16 %v574
    %v2652 = vunpack.c.h.b16 %v574
    %v2653 = vunpack.c.l.b16 %v575
    %v2654 = vunpack.c.h.b16 %v575
    %v2655 = vunpack.c.l.b16 %v576
    %v2656 = vunpack.c.h.b16 %v576
    %v2657 = vunpack.c.l.b16 %v577
    %v2658 = vunpack.c.h.b16 %v577
    %v2659 = vunpack.c.l.b16 %v578
    %v2660 = vunpack.c.h.b16 %v578
    %v2661 = vunpack.c.l.b16 %v579
    %v2662 = vunpack.c.h.b16 %v579
    %v2663 = vunpack.c.l.b16 %v580
    %v2664 = vunpack.c.h.b16 %v580
    %v2665 = vunpack.c.l.b16 %v581
    %v2666 = vunpack.c.h.b16 %v581
    %v2667 = vunpack.c.l.b16 %v582
    %v2668 = vunpack.c.h.b16 %v582
    %v2669 = vunpack.c.l.b16 %v583
    %v2670 = vunpack.c.h.b16 %v583
    %v2671 = vunpack.c.l.b16 %v584
    %v2672 = vunpack.c.h.b16 %v584
    %v2673 = vunpack.c.l.b16 %v585
    %v2674 = vunpack.c.h.b16 %v585
    %v2675 = vunpack.c.l.b16 %v586
    %v2676 = vunpack.c.h.b16 %v586
    %v2677 = vunpack.c.l.b16 %v587
    %v2678 = vunpack.c.h.b16 %v587
    %v2679 = vunpack.c.l.b16 %v588
    %v2680 = vunpack.c.h.b16 %v588
    %v2681 = vunpack.c.l.b16 %v589
    %v2682 = vunpack.c.h.b16 %v589
    %v2683 = vunpack.c.l.b16 %v590
    %v2684 = vunpack.c.h.b16 %v590
    %v2685 = vunpack.c.l.b16 %v591
    %v2686 = vunpack.c.h.b16 %v591
    %v2687 = vunpack.c.l.b16 %v592
    %v2688 = vunpack.c.h.b16 %v592
    %v2689 = vunpack.c.l.b16 %v593
    %v2690 = vunpack.c.h.b16 %v593
    %v2691 = vunpack.c.l.b16 %v594
    %v2692 = vunpack.c.h.b16 %v594
    %v2693 = vunpack.c.l.b16 %v595
    %v2694 = vunpack.c.h.b16 %v595
    %v2695 = vunpack.c.l.b16 %v596
    %v2696 = vunpack.c.h.b16 %v596
    %v2697 = vunpack.c.l.b16 %v597
    %v2698 = vunpack.c.h.b16 %v597
    %v2699 = vunpack.c.l.b16 %v598
    %v2700 = vunpack.c.h.b16 %v598
    %v2701 = vunpack.c.l.b16 %v599
    %v2702 = vunpack.c.h.b16 %v599
    %v2703 = vunpack.c.l.b16 %v600
    %v2704 = vunpack.c.h.b16 %v600
    %v2705 = vunpack.c.l.b16 %v601
    %v2706 = vunpack.c.h.b16 %v601
    %v2707 = vunpack.c.l.b16 %v602
    %v2708 = vunpack.c.h.b16 %v602
    %v2709 = vunpack.c.l.b16 %v603
    %v2710 = vunpack.c.h.b16 %v603
    %v2711 = vunpack.c.l.b16 %v604
    %v2712 = vunpack.c.h.b16 %v604
    %v2713 = vunpack.c.l.b16 %v605
    %v2714 = vunpack.c.h.b16 %v605
    %v2715 = vunpack.c.l.b16 %v606
    %v2716 = vunpack.c.h.b16 %v606
    %v2717 = vunpack.c.l.b16 %v607
    %v2718 = vunpack.c.h.b16 %v607
    %v2719 = vunpack.c.l.b16 %v608
    %v2720 = vunpack.c.h.b16 %v608
    %v2721 = vunpack.c.l.b16 %v609
    %v2722 = vunpack.c.h.b16 %v609
    %v2723 = vunpack.c.l.b16 %v610
    %v2724 = vunpack.c.h.b16 %v610
    %v2725 = vunpack.c.l.b16 %v611
    %v2726 = vunpack.c.h.b16 %v611
    %v2727 = vunpack.c.l.b16 %v612
    %v2728 = vunpack.c.h.b16 %v612
    %v2729 = vunpack.c.l.b16 %v613
    %v2730 = vunpack.c.h.b16 %v613
    %v2731 = vunpack.c.l.b16 %v614
    %v2732 = vunpack.c.h.b16 %v614
    %v2733 = vunpack.c.l.b16 %v615
    %v2734 = vunpack.c.h.b16 %v615
    %v2735 = vunpack.c.l.b16 %v616
    %v2736 = vunpack.c.h.b16 %v616
    %v2737 = vunpack.c.l.b16 %v617
    %v2738 = vunpack.c.h.b16 %v617
    %v2739 = vunpack.c.l.b16 %v618
    %v2740 = vunpack.c.h.b16 %v618
    %v2741 = vunpack.c.l.b16 %v619
    %v2742 = vunpack.c.h.b16 %v619
    %v2743 = vunpack.c.l.b16 %v620
    %v2744 = vunpack.c.h.b16 %v620
    %v2745 = vunpack.c.l.b16 %v621
    %v2746 = vunpack.c.h.b16 %v621
    %v2747 = vunpack.c.l.b16 %v622
    %v2748 = vunpack.c.h.b16 %v622
    %v2749 = vunpack.c.l.b16 %v623
    %v2750 = vunpack.c.h.b16 %v623
    %v2751 = vunpack.c.l.b16 %v624
    %v2752 = vunpack.c.h.b16 %v624
    %v2753 = vunpack.c.l.b16 %v625
    %v2754 = vunpack.c.h.b16 %v625
    %v2755 = vunpack.c.l.b16 %v626
    %v2756 = vunpack.c.h.b16 %v626
    %v2757 = vunpack.c.l.b16 %v627
    %v2758 = vunpack.c.h.b16 %v627
    %v2759 = vunpack.c.l.b16 %v628
    %v2760 = vunpack.c.h.b16 %v628
    %v2761 = vunpack.c.l.b16 %v629
    %v2762 = vunpack.c.h.b16 %v629
    %v2763 = vunpack.c.l.b16 %v630
    %v2764 = vunpack.c.h.b16 %v630
    %v2765 = vunpack.c.l.b16 %v631
    %v2766 = vunpack.c.h.b16 %v631
    %v2767 = vunpack.c.l.b16 %v632
    %v2768 = vunpack.c.h.b16 %v632
    %v2769 = vunpack.c.l.b16 %v633
    %v2770 = vunpack.c.h.b16 %v633
    %v2771 = vunpack.c.l.b16 %v634
    %v2772 = vunpack.c.h.b16 %v634
    %v2773 = vunpack.c.l.b16 %v635
    %v2774 = vunpack.c.h.b16 %v635
    %v2775 = vunpack.c.l.b16 %v636
    %v2776 = vunpack.c.h.b16 %v636
    %v2777 = vunpack.c.l.b16 %v637
    %v2778 = vunpack.c.h.b16 %v637
    %v2779 = vunpack.c.l.b16 %v638
    %v2780 = vunpack.c.h.b16 %v638
    %v2781 = vunpack.c.l.b16 %v639
    %v2782 = vunpack.c.h.b16 %v639
    %v2783 = vunpack.c.l.b16 %v640
    %v2784 = vunpack.c.h.b16 %v640
    %v2785 = vunpack.c.l.b16 %v641
    %v2786 = vunpack.c.h.b16 %v641
    %v2787 = vunpack.c.l.b16 %v642
    %v2788 = vunpack.c.h.b16 %v642
    %v2789 = vunpack.c.l.b16 %v643
    %v2790 = vunpack.c.h.b16 %v643
    %v2791 = vunpack.c.l.b16 %v644
    %v2792 = vunpack.c.h.b16 %v644
    %v2793 = vunpack.c.l.b16 %v645
    %v2794 = vunpack.c.h.b16 %v645
    %v2795 = vunpack.c.l.b16 %v646
    %v2796 = vunpack.c.h.b16 %v646
    %v2797 = vunpack.c.l.b16 %v647
    %v2798 = vunpack.c.h.b16 %v647
    %v2799 = vunpack.c.l.b16 %v648
    %v2800 = vunpack.c.h.b16 %v648
    %v2801 = vunpack.c.l.b16 %v649
    %v2802 = vunpack.c.h.b16 %v649
    %v2803 = vunpack.c.l.b16 %v650
    %v2804 = vunpack.c.h.b16 %v650
    %v2805 = vunpack.c.l.b16 %v651
    %v2806 = vunpack.c.h.b16 %v651
    %v2807 = vunpack.c.l.b16 %v652
    %v2808 = vunpack.c.h.b16 %v652
    %v2809 = vunpack.c.l.b16 %v653
    %v2810 = vunpack.c.h.b16 %v653
    %v2811 = vunpack.c.l.b16 %v654
    %v2812 = vunpack.c.h.b16 %v654
    %v2813 = vunpack.c.l.b16 %v655
    %v2814 = vunpack.c.h.b16 %v655
    %v2815 = vunpack.c.l.b16 %v656
    %v2816 = vunpack.c.h.b16 %v656
    %v2817 = vunpack.c.l.b16 %v657
    %v2818 = vunpack.c.h.b16 %v657
    %v2819 = vunpack.c.l.b16 %v658
    %v2820 = vunpack.c.h.b16 %v658
    %v2821 = vunpack.c.l.b16 %v659
    %v2822 = vunpack.c.h.b16 %v659
    %v2823 = vunpack.c.l.b16 %v660
    %v2824 = vunpack.c.h.b16 %v660
    %v2825 = vunpack.c.l.b16 %v661
    %v2826 = vunpack.c.h.b16 %v661
    %v2827 = vunpack.c.l.b16 %v662
    %v2828 = vunpack.c.h.b16 %v662
    %v2829 = vunpack.c.l.b16 %v663
    %v2830 = vunpack.c.h.b16 %v663
    %v2831 = vunpack.c.l.b16 %v664
    %v2832 = vunpack.c.h.b16 %v664
    %v2833 = vunpack.c.l.b16 %v665
    %v2834 = vunpack.c.h.b16 %v665
    %v2835 = vunpack.c.l.b16 %v666
    %v2836 = vunpack.c.h.b16 %v666
    %v2837 = vunpack.c.l.b16 %v667
    %v2838 = vunpack.c.h.b16 %v667
    %v2839 = vunpack.c.l.b16 %v668
    %v2840 = vunpack.c.h.b16 %v668
    %v2841 = vunpack.c.l.b16 %v669
    %v2842 = vunpack.c.h.b16 %v669
    %v2843 = vunpack.c.l.b16 %v670
    %v2844 = vunpack.c.h.b16 %v670
    %v2845 = vunpack.c.l.b16 %v671
    %v2846 = vunpack.c.h.b16 %v671
    %v2847 = vunpack.c.l.b16 %v672
    %v2848 = vunpack.c.h.b16 %v672
    %v2849 = vunpack.c.l.b16 %v673
    %v2850 = vunpack.c.h.b16 %v673
    %v2851 = vunpack.c.l.b16 %v674
    %v2852 = vunpack.c.h.b16 %v674
    %v2853 = vunpack.c.l.b16 %v675
    %v2854 = vunpack.c.h.b16 %v675
    %v2855 = vunpack.c.l.b16 %v676
    %v2856 = vunpack.c.h.b16 %v676
    %v2857 = vunpack.c.l.b16 %v677
    %v2858 = vunpack.c.h.b16 %v677
    %v2859 = vunpack.c.l.b16 %v678
    %v2860 = vunpack.c.h.b16 %v678
    %v2861 = vunpack.c.l.b16 %v679
    %v2862 = vunpack.c.h.b16 %v679
    %v2863 = vunpack.c.l.b16 %v680
    %v2864 = vunpack.c.h.b16 %v680
    %v2865 = vunpack.c.l.b16 %v681
    %v2866 = vunpack.c.h.b16 %v681
    %v2867 = vunpack.c.l.b16 %v682
    %v2868 = vunpack.c.h.b16 %v682
    %v2869 = vunpack.c.l.b16 %v683
    %v2870 = vunpack.c.h.b16 %v683
    %v2871 = vunpack.c.l.b16 %v684
    %v2872 = vunpack.c.h.b16 %v684
    %v2873 = vunpack.c.l.b16 %v685
    %v2874 = vunpack.c.h.b16 %v685
    %v2875 = vunpack.c.l.b16 %v686
    %v2876 = vunpack.c.h.b16 %v686
    %v2877 = vunpack.c.l.b16 %v687
    %v2878 = vunpack.c.h.b16 %v687
    %v2879 = vunpack.c.l.b16 %v688
    %v2880 = vunpack.c.h.b16 %v688
    %v2881 = vunpack.c.l.b16 %v689
    %v2882 = vunpack.c.h.b16 %v689
    %v2883 = vunpack.c.l.b16 %v690
    %v2884 = vunpack.c.h.b16 %v690
    %v2885 = vunpack.c.l.b16 %v691
    %v2886 = vunpack.c.h.b16 %v691
    %v2887 = vunpack.c.l.b16 %v692
    %v2888 = vunpack.c.h.b16 %v692
    %v2889 = vunpack.c.l.b16 %v693
    %v2890 = vunpack.c.h.b16 %v693
    %v2891 = vunpack.c.l.b16 %v694
    %v2892 = vunpack.c.h.b16 %v694
    %v2893 = vunpack.c.l.b16 %v695
    %v2894 = vunpack.c.h.b16 %v695
    %v2895 = vunpack.c.l.b16 %v696
    %v2896 = vunpack.c.h.b16 %v696
    %v2897 = vunpack.c.l.b16 %v697
    %v2898 = vunpack.c.h.b16 %v697
    %v2899 = vunpack.c.l.b16 %v698
    %v2900 = vunpack.c.h.b16 %v698
    %v2901 = vunpack.c.l.b16 %v699
    %v2902 = vunpack.c.h.b16 %v699
    %v2903 = vunpack.c.l.b16 %v700
    %v2904 = vunpack.c.h.b16 %v700
    %v2905 = vunpack.c.l.b16 %v701
    %v2906 = vunpack.c.h.b16 %v701
    %v2907 = vunpack.c.l.b16 %v702
    %v2908 = vunpack.c.h.b16 %v702
    %v2909 = vunpack.c.l.b16 %v703
    %v2910 = vunpack.c.h.b16 %v703
    %v2911 = vunpack.c.l.b16 %v704
    %v2912 = vunpack.c.h.b16 %v704
    %v2913 = vunpack.c.l.b16 %v705
    %v2914 = vunpack.c.h.b16 %v705
    %v2915 = vunpack.c.l.b16 %v706
    %v2916 = vunpack.c.h.b16 %v706
    %v2917 = vunpack.c.l.b16 %v707
    %v2918 = vunpack.c.h.b16 %v707
    %v2919 = vunpack.c.l.b16 %v708
    %v2920 = vunpack.c.h.b16 %v708
    %v2921 = vunpack.c.l.b16 %v709
    %v2922 = vunpack.c.h.b16 %v709
    %v2923 = vunpack.c.l.b16 %v710
    %v2924 = vunpack.c.h.b16 %v710
    %v2925 = vunpack.c.l.b16 %v711
    %v2926 = vunpack.c.h.b16 %v711
    %v2927 = vunpack.c.l.b16 %v712
    %v2928 = vunpack.c.h.b16 %v712
    %v2929 = vunpack.c.l.b16 %v713
    %v2930 = vunpack.c.h.b16 %v713
    %v2931 = vunpack.c.l.b16 %v714
    %v2932 = vunpack.c.h.b16 %v714
    %v2933 = vunpack.c.l.b16 %v715
    %v2934 = vunpack.c.h.b16 %v715
    %v2935 = vunpack.c.l.b16 %v716
    %v2936 = vunpack.c.h.b16 %v716
    %v2937 = vunpack.c.l.b16 %v717
    %v2938 = vunpack.c.h.b16 %v717
    %v2939 = vunpack.c.l.b16 %v718
    %v2940 = vunpack.c.h.b16 %v718
    %v2941 = vunpack.c.l.b16 %v719
    %v2942 = vunpack.c.h.b16 %v719
    %v2943 = vunpack.c.l.b16 %v720
    %v2944 = vunpack.c.h.b16 %v720
    %v2945 = vunpack.c.l.b16 %v721
    %v2946 = vunpack.c.h.b16 %v721
    %v2947 = vunpack.c.l.b16 %v722
    %v2948 = vunpack.c.h.b16 %v722
    %v2949 = vunpack.c.l.b16 %v723
    %v2950 = vunpack.c.h.b16 %v723
    %v2951 = vunpack.c.l.b16 %v724
    %v2952 = vunpack.c.h.b16 %v724
    %v2953 = vunpack.c.l.b16 %v725
    %v2954 = vunpack.c.h.b16 %v725
    %v2955 = vunpack.c.l.b16 %v726
    %v2956 = vunpack.c.h.b16 %v726
    %v2957 = vunpack.c.l.b16 %v727
    %v2958 = vunpack.c.h.b16 %v727
    %v2959 = vunpack.c.l.b16 %v728
    %v2960 = vunpack.c.h.b16 %v728
    %v2961 = vunpack.c.l.b16 %v729
    %v2962 = vunpack.c.h.b16 %v729
    %v2963 = vunpack.c.l.b16 %v730
    %v2964 = vunpack.c.h.b16 %v730
    %v2965 = vunpack.c.l.b16 %v731
    %v2966 = vunpack.c.h.b16 %v731
    %v2967 = vunpack.c.l.b16 %v732
    %v2968 = vunpack.c.h.b16 %v732
    %v2969 = vunpack.c.l.b16 %v733
    %v2970 = vunpack.c.h.b16 %v733
    %v2971 = vunpack.c.l.b16 %v734
    %v2972 = vunpack.c.h.b16 %v734
    %v2973 = vunpack.c.l.b16 %v735
    %v2974 = vunpack.c.h.b16 %v735
    %v2975 = vunpack.c.l.b16 %v736
    %v2976 = vunpack.c.h.b16 %v736
    %v2977 = vunpack.c.l.b16 %v737
    %v2978 = vunpack.c.h.b16 %v737
    %v2979 = vunpack.c.l.b16 %v738
    %v2980 = vunpack.c.h.b16 %v738
    %v2981 = vunpack.c.l.b16 %v739
    %v2982 = vunpack.c.h.b16 %v739
    %v2983 = vunpack.c.l.b16 %v740
    %v2984 = vunpack.c.h.b16 %v740
    %v2985 = vunpack.c.l.b16 %v741
    %v2986 = vunpack.c.h.b16 %v741
    %v2987 = vunpack.c.l.b16 %v742
    %v2988 = vunpack.c.h.b16 %v742
    %v2989 = vunpack.c.l.b16 %v743
    %v2990 = vunpack.c.h.b16 %v743
    %v2991 = vunpack.c.l.b16 %v744
    %v2992 = vunpack.c.h.b16 %v744
    %v2993 = vunpack.c.l.b16 %v745
    %v2994 = vunpack.c.h.b16 %v745
    %v2995 = vunpack.c.l.b16 %v746
    %v2996 = vunpack.c.h.b16 %v746
    %v2997 = vunpack.c.l.b16 %v747
    %v2998 = vunpack.c.h.b16 %v747
    %v2999 = vunpack.c.l.b16 %v748
    %v3000 = vunpack.c.h.b16 %v748
    %v3001 = vunpack.c.l.b16 %v749
    %v3002 = vunpack.c.h.b16 %v749
    %v3003 = vunpack.c.l.b16 %v750
    %v3004 = vunpack.c.h.b16 %v750
    %v3005 = vunpack.c.l.b16 %v751
    %v3006 = vunpack.c.h.b16 %v751
    %v3007 = vunpack.c.l.b16 %v752
    %v3008 = vunpack.c.h.b16 %v752
    %v3009 = vunpack.c.l.b16 %v753
    %v3010 = vunpack.c.h.b16 %v753
    %v3011 = vunpack.c.l.b16 %v754
    %v3012 = vunpack.c.h.b16 %v754
    %v3013 = vunpack.c.l.b16 %v755
    %v3014 = vunpack.c.h.b16 %v755
    %v3015 = vunpack.c.l.b16 %v756
    %v3016 = vunpack.c.h.b16 %v756
    %v3017 = vunpack.c.l.b16 %v757
    %v3018 = vunpack.c.h.b16 %v757
    %v3019 = vunpack.c.l.b16 %v758
    %v3020 = vunpack.c.h.b16 %v758
    %v3021 = vunpack.c.l.b16 %v759
    %v3022 = vunpack.c.h.b16 %v759
    %v3023 = vunpack.c.l.b16 %v760
    %v3024 = vunpack.c.h.b16 %v760
    %v3025 = vunpack.c.l.b16 %v761
    %v3026 = vunpack.c.h.b16 %v761
    %v3027 = vunpack.c.l.b16 %v762
    %v3028 = vunpack.c.h.b16 %v762
    %v3029 = vunpack.c.l.b16 %v763
    %v3030 = vunpack.c.h.b16 %v763
    %v3031 = vunpack.c.l.b16 %v764
    %v3032 = vunpack.c.h.b16 %v764
    %v3033 = vunpack.c.l.b16 %v765
    %v3034 = vunpack.c.h.b16 %v765
    %v3035 = vunpack.c.l.b16 %v766
    %v3036 = vunpack.c.h.b16 %v766
    %v3037 = vunpack.c.l.b16 %v767
    %v3038 = vunpack.c.h.b16 %v767
    %v3039 = vunpack.c.l.b16 %v768
    %v3040 = vunpack.c.h.b16 %v768
    %v3041 = vunpack.c.l.b16 %v769
    %v3042 = vunpack.c.h.b16 %v769
    %v3043 = vunpack.c.l.b16 %v770
    %v3044 = vunpack.c.h.b16 %v770
    %v3045 = vunpack.c.l.b16 %v771
    %v3046 = vunpack.c.h.b16 %v771
    %v3047 = vunpack.c.l.b16 %v772
    %v3048 = vunpack.c.h.b16 %v772
    %v3049 = vunpack.c.l.b16 %v773
    %v3050 = vunpack.c.h.b16 %v773
    %v3051 = vunpack.c.l.b16 %v774
    %v3052 = vunpack.c.h.b16 %v774
    %v3053 = vunpack.c.l.b16 %v775
    %v3054 = vunpack.c.h.b16 %v775
    %v3055 = vunpack.c.l.b16 %v776
    %v3056 = vunpack.c.h.b16 %v776
    %v3057 = vunpack.c.l.b16 %v777
    %v3058 = vunpack.c.h.b16 %v777
    %v3059 = vunpack.c.l.b16 %v778
    %v3060 = vunpack.c.h.b16 %v778
    %v3061 = vunpack.c.l.b16 %v779
    %v3062 = vunpack.c.h.b16 %v779
    %v3063 = vunpack.c.l.b16 %v780
    %v3064 = vunpack.c.h.b16 %v780
    %v3065 = vunpack.c.l.b16 %v781
    %v3066 = vunpack.c.h.b16 %v781
    %v3067 = vunpack.c.l.b16 %v782
    %v3068 = vunpack.c.h.b16 %v782
    %v3069 = vunpack.c.l.b16 %v783
    %v3070 = vunpack.c.h.b16 %v783
    %v3071 = vunpack.c.l.b16 %v784
    %v3072 = vunpack.c.h.b16 %v784
    %v3073 = vunpack.c.l.b16 %v785
    %v3074 = vunpack.c.h.b16 %v785
    %v3075 = vunpack.c.l.b16 %v786
    %v3076 = vunpack.c.h.b16 %v786
    %v3077 = vunpack.c.l.b16 %v787
    %v3078 = vunpack.c.h.b16 %v787
    %v3079 = vunpack.c.l.b16 %v788
    %v3080 = vunpack.c.h.b16 %v788
    %v3081 = vunpack.c.l.b16 %v789
    %v3082 = vunpack.c.h.b16 %v789
    %v3083 = vunpack.c.l.b16 %v790
    %v3084 = vunpack.c.h.b16 %v790
    %v3085 = vunpack.c.l.b16 %v791
    %v3086 = vunpack.c.h.b16 %v791
    %v3087 = vunpack.c.l.b16 %v792
    %v3088 = vunpack.c.h.b16 %v792
    %v3089 = vunpack.c.l.b16 %v793
    %v3090 = vunpack.c.h.b16 %v793
    %v3091 = vunpack.c.l.b16 %v794
    %v3092 = vunpack.c.h.b16 %v794
    %v3093 = vunpack.c.l.b16 %v795
    %v3094 = vunpack.c.h.b16 %v795
    %v3095 = vunpack.c.l.b16 %v796
    %v3096 = vunpack.c.h.b16 %v796
    %v3097 = vunpack.c.l.b16 %v797
    %v3098 = vunpack.c.h.b16 %v797
    %v3099 = vunpack.c.l.b16 %v798
    %v3100 = vunpack.c.h.b16 %v798
    %v3101 = vunpack.c.l.b16 %v799
    %v3102 = vunpack.c.h.b16 %v799
    %v3103 = vunpack.c.l.b16 %v800
    %v3104 = vunpack.c.h.b16 %v800
    %v3105 = vunpack.c.l.b16 %v801
    %v3106 = vunpack.c.h.b16 %v801
    %v3107 = vunpack.c.l.b16 %v802
    %v3108 = vunpack.c.h.b16 %v802
    %v3109 = vunpack.c.l.b16 %v803
    %v3110 = vunpack.c.h.b16 %v803
    %v3111 = vunpack.c.l.b16 %v804
    %v3112 = vunpack.c.h.b16 %v804
    %v3113 = vunpack.c.l.b16 %v805
    %v3114 = vunpack.c.h.b16 %v805
    %v3115 = vunpack.c.l.b16 %v806
    %v3116 = vunpack.c.h.b16 %v806
    %v3117 = vunpack.c.l.b16 %v807
    %v3118 = vunpack.c.h.b16 %v807
    %v3119 = vunpack.c.l.b16 %v808
    %v3120 = vunpack.c.h.b16 %v808
    %v3121 = vunpack.c.l.b16 %v809
    %v3122 = vunpack.c.h.b16 %v809
    %v3123 = vunpack.c.l.b16 %v810
    %v3124 = vunpack.c.h.b16 %v810
    %v3125 = vunpack.c.l.b16 %v811
    %v3126 = vunpack.c.h.b16 %v811
    %v3127 = vunpack.c.l.b16 %v812
    %v3128 = vunpack.c.h.b16 %v812
    %v3129 = vunpack.c.l.b16 %v813
    %v3130 = vunpack.c.h.b16 %v813
    %v3131 = vunpack.c.l.b16 %v814
    %v3132 = vunpack.c.h.b16 %v814
    %v3133 = vunpack.c.l.b16 %v815
    %v3134 = vunpack.c.h.b16 %v815
    %v3135 = vunpack.c.l.b16 %v816
    %v3136 = vunpack.c.h.b16 %v816
    %v3137 = vunpack.c.l.b16 %v817
    %v3138 = vunpack.c.h.b16 %v817
    %v3139 = vunpack.c.l.b16 %v818
    %v3140 = vunpack.c.h.b16 %v818
    %v3141 = vunpack.c.l.b16 %v819
    %v3142 = vunpack.c.h.b16 %v819
    %v3143 = vunpack.c.l.b16 %v820
    %v3144 = vunpack.c.h.b16 %v820
    %v3145 = vunpack.c.l.b16 %v821
    %v3146 = vunpack.c.h.b16 %v821
    %v3147 = vunpack.c.l.b16 %v822
    %v3148 = vunpack.c.h.b16 %v822
    %v3149 = vunpack.c.l.b16 %v823
    %v3150 = vunpack.c.h.b16 %v823
    %v3151 = vunpack.c.l.b16 %v824
    %v3152 = vunpack.c.h.b16 %v824
    %v3153 = vunpack.c.l.b16 %v825
    %v3154 = vunpack.c.h.b16 %v825
    %v3155 = vunpack.c.l.b16 %v826
    %v3156 = vunpack.c.h.b16 %v826
    %v3157 = vunpack.c.l.b16 %v827
    %v3158 = vunpack.c.h.b16 %v827
    %v3159 = vunpack.c.l.b16 %v828
    %v3160 = vunpack.c.h.b16 %v828
    %v3161 = vunpack.c.l.b16 %v829
    %v3162 = vunpack.c.h.b16 %v829
    %v3163 = vunpack.c.l.b16 %v830
    %v3164 = vunpack.c.h.b16 %v830
    %v3165 = vunpack.c.l.b16 %v831
    %v3166 = vunpack.c.h.b16 %v831
    %v3167 = vunpack.c.l.b16 %v832
    %v3168 = vunpack.c.h.b16 %v832
    %v3169 = vunpack.c.l.b16 %v833
    %v3170 = vunpack.c.h.b16 %v833
    %v3171 = vunpack.c.l.b16 %v834
    %v3172 = vunpack.c.h.b16 %v834
    %v3173 = vunpack.c.l.b16 %v835
    %v3174 = vunpack.c.h.b16 %v835
    %v3175 = vunpack.c.l.b16 %v836
    %v3176 = vunpack.c.h.b16 %v836
    %v3177 = vunpack.c.l.b16 %v837
    %v3178 = vunpack.c.h.b16 %v837
    %v3179 = vunpack.c.l.b16 %v838
    %v3180 = vunpack.c.h.b16 %v838
    %v3181 = vunpack.c.l.b16 %v839
    %v3182 = vunpack.c.h.b16 %v839
    %v3183 = vunpack.c.l.b16 %v840
    %v3184 = vunpack.c.h.b16 %v840
    %v3185 = vunpack.c.l.b16 %v841
    %v3186 = vunpack.c.h.b16 %v841
    %v3187 = vunpack.c.l.b16 %v842
    %v3188 = vunpack.c.h.b16 %v842
    %v3189 = vunpack.c.l.b16 %v843
    %v3190 = vunpack.c.h.b16 %v843
    %v3191 = vunpack.c.l.b16 %v844
    %v3192 = vunpack.c.h.b16 %v844
    %v3193 = vunpack.c.l.b16 %v845
    %v3194 = vunpack.c.h.b16 %v845
    %v3195 = vunpack.c.l.b16 %v846
    %v3196 = vunpack.c.h.b16 %v846
    %v3197 = vunpack.c.l.b16 %v847
    %v3198 = vunpack.c.h.b16 %v847
    %v3199 = vunpack.c.l.b16 %v848
    %v3200 = vunpack.c.h.b16 %v848
    %v3201 = vunpack.c.l.b16 %v849
    %v3202 = vunpack.c.h.b16 %v849
    %v3203 = vunpack.c.l.b16 %v850
    %v3204 = vunpack.c.h.b16 %v850
    %v3205 = vunpack.c.l.b16 %v851
    %v3206 = vunpack.c.h.b16 %v851
    %v3207 = vunpack.c.l.b16 %v852
    %v3208 = vunpack.c.h.b16 %v852
    %v3209 = vunpack.c.l.b16 %v853
    %v3210 = vunpack.c.h.b16 %v853
    %v3211 = vunpack.c.l.b16 %v854
    %v3212 = vunpack.c.h.b16 %v854
    %v3213 = vunpack.c.l.b16 %v855
    %v3214 = vunpack.c.h.b16 %v855
    %v3215 = vunpack.c.l.b16 %v856
    %v3216 = vunpack.c.h.b16 %v856
    %v3217 = vunpack.c.l.b16 %v857
    %v3218 = vunpack.c.h.b16 %v857
    %v3219 = vunpack.c.l.b16 %v858
    %v3220 = vunpack.c.h.b16 %v858
    %v3221 = vunpack.c.l.b16 %v859
    %v3222 = vunpack.c.h.b16 %v859
    %v3223 = vunpack.c.l.b16 %v860
    %v3224 = vunpack.c.h.b16 %v860
    %v3225 = vunpack.c.l.b16 %v861
    %v3226 = vunpack.c.h.b16 %v861
    %v3227 = vunpack.c.l.b16 %v862
    %v3228 = vunpack.c.h.b16 %v862
    %v3229 = vunpack.c.l.b16 %v863
    %v3230 = vunpack.c.h.b16 %v863
    %v3231 = vunpack.c.l.b16 %v864
    %v3232 = vunpack.c.h.b16 %v864
    %v3233 = vunpack.c.l.b16 %v865
    %v3234 = vunpack.c.h.b16 %v865
    %v3235 = vunpack.c.l.b16 %v866
    %v3236 = vunpack.c.h.b16 %v866
    %v3237 = vunpack.c.l.b16 %v867
    %v3238 = vunpack.c.h.b16 %v867
    %v3239 = vunpack.c.l.b16 %v868
    %v3240 = vunpack.c.h.b16 %v868
    %v3241 = vunpack.c.l.b16 %v869
    %v3242 = vunpack.c.h.b16 %v869
    %v3243 = vunpack.c.l.b16 %v870
    %v3244 = vunpack.c.h.b16 %v870
    %v3245 = vunpack.c.l.b16 %v871
    %v3246 = vunpack.c.h.b16 %v871
    %v3247 = vunpack.c.l.b16 %v872
    %v3248 = vunpack.c.h.b16 %v872
    %v3249 = vunpack.c.l.b16 %v873
    %v3250 = vunpack.c.h.b16 %v873
    %v3251 = vunpack.c.l.b16 %v874
    %v3252 = vunpack.c.h.b16 %v874
    %v3253 = vunpack.c.l.b16 %v875
    %v3254 = vunpack.c.h.b16 %v875
    %v3255 = vunpack.c.l.b16 %v876
    %v3256 = vunpack.c.h.b16 %v876
    %v3257 = vunpack.c.l.b16 %v877
    %v3258 = vunpack.c.h.b16 %v877
    %v3259 = vunpack.c.l.b16 %v878
    %v3260 = vunpack.c.h.b16 %v878
    %v3261 = vunpack.c.l.b16 %v879
    %v3262 = vunpack.c.h.b16 %v879
    %v3263 = vunpack.c.l.b16 %v880
    %v3264 = vunpack.c.h.b16 %v880
    %v3265 = vunpack.c.l.b16 %v881
    %v3266 = vunpack.c.h.b16 %v881
    %v3267 = vunpack.c.l.b16 %v882
    %v3268 = vunpack.c.h.b16 %v882
    %v3269 = vunpack.c.l.b16 %v883
    %v3270 = vunpack.c.h.b16 %v883
    %v3271 = vunpack.c.l.b16 %v884
    %v3272 = vunpack.c.h.b16 %v884
    %v3273 = vpack.c.b16 %v1721, %v1705
    %v3274 = vpack.c.b16 %v1722, %v1706
    %v3275 = vpack.c.b16 %v1723, %v1707
    %v3276 = vpack.c.b16 %v1724, %v1708
    %v3277 = vpack.c.b16 %v1725, %v1709
    %v3278 = vpack.c.b16 %v1726, %v1710
    %v3279 = vpack.c.b16 %v1727, %v1711
    %v3280 = vpack.c.b16 %v1728, %v1712
    %v3281 = vpack.c.b16 %v1729, %v1713
    %v3282 = vpack.c.b16 %v1730, %v1714
    %v3283 = vpack.c.b16 %v1731, %v1715
    %v3284 = vpack.c.b16 %v1732, %v1716
    %v3285 = vpack.c.b16 %v1733, %v1717
    %v3286 = vpack.c.b16 %v1734, %v1718
    %v3287 = vpack.c.b16 %v1735, %v1719
    %v3288 = vpack.c.b16 %v1736, %v1720
    %v3289 = vpack.c.b16 %v1753, %v1737
    %v3290 = vpack.c.b16 %v1754, %v1738
    %v3291 = vpack.c.b16 %v1755, %v1739
    %v3292 = vpack.c.b16 %v1756, %v1740
    %v3293 = vpack.c.b16 %v1757, %v1741
    %v3294 = vpack.c.b16 %v1758, %v1742
    %v3295 = vpack.c.b16 %v1759, %v1743
    %v3296 = vpack.c.b16 %v1760, %v1744
    %v3297 = vpack.c.b16 %v1761, %v1745
    %v3298 = vpack.c.b16 %v1762, %v1746
    %v3299 = vpack.c.b16 %v1763, %v1747
    %v3300 = vpack.c.b16 %v1764, %v1748
    %v3301 = vpack.c.b16 %v1765, %v1749
    %v3302 = vpack.c.b16 %v1766, %v1750
    %v3303 = vpack.c.b16 %v1767, %v1751
    %v3304 = vpack.c.b16 %v1768, %v1752
    %v3305 = vpack.c.b16 %v1785, %v1769
    %v3306 = vpack.c.b16 %v1786, %v1770
    %v3307 = vpack.c.b16 %v1787, %v1771
    %v3308 = vpack.c.b16 %v1788, %v1772
    %v3309 = vpack.c.b16 %v1789, %v1773
    %v3310 = vpack.c.b16 %v1790, %v1774
    %v3311 = vpack.c.b16 %v1791, %v1775
    %v3312 = vpack.c.b16 %v1792, %v1776
    %v3313 = vpack.c.b16 %v1793, %v1777
    %v3314 = vpack.c.b16 %v1794, %v1778
    %v3315 = vpack.c.b16 %v1795, %v1779
    %v3316 = vpack.c.b16 %v1796, %v1780
    %v3317 = vpack.c.b16 %v1797, %v1781
    %v3318 = vpack.c.b16 %v1798, %v1782
    %v3319 = vpack.c.b16 %v1799, %v1783
    %v3320 = vpack.c.b16 %v1800, %v1784
    %v3321 = vpack.c.b16 %v1817, %v1801
    %v3322 = vpack.c.b16 %v1818, %v1802
    %v3323 = vpack.c.b16 %v1819, %v1803
    %v3324 = vpack.c.b16 %v1820, %v1804
    %v3325 = vpack.c.b16 %v1821, %v1805
    %v3326 = vpack.c.b16 %v1822, %v1806
    %v3327 = vpack.c.b16 %v1823, %v1807
    %v3328 = vpack.c.b16 %v1824, %v1808
    %v3329 = vpack.c.b16 %v1825, %v1809
    %v3330 = vpack.c.b16 %v1826, %v1810
    %v3331 = vpack.c.b16 %v1827, %v1811
    %v3332 = vpack.c.b16 %v1828, %v1812
    %v3333 = vpack.c.b16 %v1829, %v1813
    %v3334 = vpack.c.b16 %v1830, %v1814
    %v3335 = vpack.c.b16 %v1831, %v1815
    %v3336 = vpack.c.b16 %v1832, %v1816
    %v3337 = vpack.c.b16 %v1849, %v1833
    %v3338 = vpack.c.b16 %v1850, %v1834
    %v3339 = vpack.c.b16 %v1851, %v1835
    %v3340 = vpack.c.b16 %v1852, %v1836
    %v3341 = vpack.c.b16 %v1853, %v1837
    %v3342 = vpack.c.b16 %v1854, %v1838
    %v3343 = vpack.c.b16 %v1855, %v1839
    %v3344 = vpack.c.b16 %v1856, %v1840
    %v3345 = vpack.c.b16 %v1857, %v1841
    %v3346 = vpack.c.b16 %v1858, %v1842
    %v3347 = vpack.c.b16 %v1859, %v1843
    %v3348 = vpack.c.b16 %v1860, %v1844
    %v3349 = vpack.c.b16 %v1861, %v1845
    %v3350 = vpack.c.b16 %v1862, %v1846
    %v3351 = vpack.c.b16 %v1863, %v1847
    %v3352 = vpack.c.b16 %v1864, %v1848
    %v3353 = vpack.c.b16 %v1881, %v1865
    %v3354 = vpack.c.b16 %v1882, %v1866
    %v3355 = vpack.c.b16 %v1883, %v1867
    %v3356 = vpack.c.b16 %v1884, %v1868
    %v3357 = vpack.c.b16 %v1885, %v1869
    %v3358 = vpack.c.b16 %v1886, %v1870
    %v3359 = vpack.c.b16 %v1887, %v1871
    %v3360 = vpack.c.b16 %v1888, %v1872
    %v3361 = vpack.c.b16 %v1889, %v1873
    %v3362 = vpack.c.b16 %v1890, %v1874
    %v3363 = vpack.c.b16 %v1891, %v1875
    %v3364 = vpack.c.b16 %v1892, %v1876
    %v3365 = vpack.c.b16 %v1893, %v1877
    %v3366 = vpack.c.b16 %v1894, %v1878
    %v3367 = vpack.c.b16 %v1895, %v1879
    %v3368 = vpack.c.b16 %v1896, %v1880
    %v3369 = vpack.c.b16 %v1913, %v1897
    %v3370 = vpack.c.b16 %v1914, %v1898
    %v3371 = vpack.c.b16 %v1915, %v1899
    %v3372 = vpack.c.b16 %v1916, %v1900
    %v3373 = vpack.c.b16 %v1917, %v1901
    %v3374 = vpack.c.b16 %v1918, %v1902
    %v3375 = vpack.c.b16 %v1919, %v1903
    %v3376 = vpack.c.b16 %v1920, %v1904
    %v3377 = vpack.c.b16 %v1921, %v1905
    %v3378 = vpack.c.b16 %v1922, %v1906
    %v3379 = vpack.c.b16 %v1923, %v1907
    %v3380 = vpack.c.b16 %v1924, %v1908
    %v3381 = vpack.c.b16 %v1925, %v1909
    %v3382 = vpack.c.b16 %v1926, %v1910
    %v3383 = vpack.c.b16 %v1927, %v1911
    %v3384 = vpack.c.b16 %v1928, %v1912
    %v3385 = vpack.c.b16 %v1945, %v1929
    %v3386 = vpack.c.b16 %v1946, %v1930
    %v3387 = vpack.c.b16 %v1947, %v1931
    %v3388 = vpack.c.b16 %v1948, %v1932
    %v3389 = vpack.c.b16 %v1949, %v1933
    %v3390 = vpack.c.b16 %v1950, %v1934
    %v3391 = vpack.c.b16 %v1951, %v1935
    %v3392 = vpack.c.b16 %v1952, %v1936
    %v3393 = vpack.c.b16 %v1953, %v1937
    %v3394 = vpack.c.b16 %v1954, %v1938
    %v3395 = vpack.c.b16 %v1955, %v1939
    %v3396 = vpack.c.b16 %v1956, %v1940
    %v3397 = vpack.c.b16 %v1957, %v1941
    %v3398 = vpack.c.b16 %v1958, %v1942
    %v3399 = vpack.c.b16 %v1959, %v1943
    %v3400 = vpack.c.b16 %v1960, %v1944
    %v3401 = vpack.c.b16 %v1977, %v1961
    %v3402 = vpack.c.b16 %v1978, %v1962
    %v3403 = vpack.c.b16 %v1979, %v1963
    %v3404 = vpack.c.b16 %v1980, %v1964
    %v3405 = vpack.c.b16 %v1981, %v1965
    %v3406 = vpack.c.b16 %v1982, %v1966
    %v3407 = vpack.c.b16 %v1983, %v1967
    %v3408 = vpack.c.b16 %v1984, %v1968
    %v3409 = vpack.c.b16 %v1985, %v1969
    %v3410 = vpack.c.b16 %v1986, %v1970
    %v3411 = vpack.c.b16 %v1987, %v1971
    %v3412 = vpack.c.b16 %v1988, %v1972
    %v3413 = vpack.c.b16 %v1989, %v1973
    %v3414 = vpack.c.b16 %v1990, %v1974
    %v3415 = vpack.c.b16 %v1991, %v1975
    %v3416 = vpack.c.b16 %v1992, %v1976
    %v3417 = vpack.c.b16 %v2009, %v1993
    %v3418 = vpack.c.b16 %v2010, %v1994
    %v3419 = vpack.c.b16 %v2011, %v1995
    %v3420 = vpack.c.b16 %v2012, %v1996
    %v3421 = vpack.c.b16 %v2013, %v1997
    %v3422 = vpack.c.b16 %v2014, %v1998
    %v3423 = vpack.c.b16 %v2015, %v1999
    %v3424 = vpack.c.b16 %v2016, %v2000
    %v3425 = vpack.c.b16 %v2017, %v2001
    %v3426 = vpack.c.b16 %v2018, %v2002
    %v3427 = vpack.c.b16 %v2019, %v2003
    %v3428 = vpack.c.b16 %v2020, %v2004
    %v3429 = vpack.c.b16 %v2021, %v2005
    %v3430 = vpack.c.b16 %v2022, %v2006
    %v3431 = vpack.c.b16 %v2023, %v2007
    %v3432 = vpack.c.b16 %v2024, %v2008
    %v3433 = vpack.c.b16 %v2041, %v2025
    %v3434 = vpack.c.b16 %v2042, %v2026
    %v3435 = vpack.c.b16 %v2043, %v2027
    %v3436 = vpack.c.b16 %v2044, %v2028
    %v3437 = vpack.c.b16 %v2045, %v2029
    %v3438 = vpack.c.b16 %v2046, %v2030
    %v3439 = vpack.c.b16 %v2047, %v2031
    %v3440 = vpack.c.b16 %v2048, %v2032
    %v3441 = vpack.c.b16 %v2049, %v2033
    %v3442 = vpack.c.b16 %v2050, %v2034
    %v3443 = vpack.c.b16 %v2051, %v2035
    %v3444 = vpack.c.b16 %v2052, %v2036
    %v3445 = vpack.c.b16 %v2053, %v2037
    %v3446 = vpack.c.b16 %v2054, %v2038
    %v3447 = vpack.c.b16 %v2055, %v2039
    %v3448 = vpack.c.b16 %v2056, %v2040
    %v3449 = vpack.c.b16 %v2073, %v2057
    %v3450 = vpack.c.b16 %v2074, %v2058
    %v3451 = vpack.c.b16 %v2075, %v2059
    %v3452 = vpack.c.b16 %v2076, %v2060
    %v3453 = vpack.c.b16 %v2077, %v2061
    %v3454 = vpack.c.b16 %v2078, %v2062
    %v3455 = vpack.c.b16 %v2079, %v2063
    %v3456 = vpack.c.b16 %v2080, %v2064
    %v3457 = vpack.c.b16 %v2081, %v2065
    %v3458 = vpack.c.b16 %v2082, %v2066
    %v3459 = vpack.c.b16 %v2083, %v2067
    %v3460 = vpack.c.b16 %v2084, %v2068
    %v3461 = vpack.c.b16 %v2085, %v2069
    %v3462 = vpack.c.b16 %v2086, %v2070
    %v3463 = vpack.c.b16 %v2087, %v2071
    %v3464 = vpack.c.b16 %v2088, %v2072
    %v3465 = vpack.c.b16 %v2105, %v2089
    %v3466 = vpack.c.b16 %v2106, %v2090
    %v3467 = vpack.c.b16 %v2107, %v2091
    %v3468 = vpack.c.b16 %v2108, %v2092
    %v3469 = vpack.c.b16 %v2109, %v2093
    %v3470 = vpack.c.b16 %v2110, %v2094
    %v3471 = vpack.c.b16 %v2111, %v2095
    %v3472 = vpack.c.b16 %v2112, %v2096
    %v3473 = vpack.c.b16 %v2113, %v2097
    %v3474 = vpack.c.b16 %v2114, %v2098
    %v3475 = vpack.c.b16 %v2115, %v2099
    %v3476 = vpack.c.b16 %v2116, %v2100
    %v3477 = vpack.c.b16 %v2117, %v2101
    %v3478 = vpack.c.b16 %v2118, %v2102
    %v3479 = vpack.c.b16 %v2119, %v2103
    %v3480 = vpack.c.b16 %v2120, %v2104
    %v3481 = vpack.c.b16 %v2137, %v2121
    %v3482 = vpack.c.b16 %v2138, %v2122
    %v3483 = vpack.c.b16 %v2139, %v2123
    %v3484 = vpack.c.b16 %v2140, %v2124
    %v3485 = vpack.c.b16 %v2141, %v2125
    %v3486 = vpack.c.b16 %v2142, %v2126
    %v3487 = vpack.c.b16 %v2143, %v2127
    %v3488 = vpack.c.b16 %v2144, %v2128
    %v3489 = vpack.c.b16 %v2145, %v2129
    %v3490 = vpack.c.b16 %v2146, %v2130
    %v3491 = vpack.c.b16 %v2147, %v2131
    %v3492 = vpack.c.b16 %v2148, %v2132
    %v3493 = vpack.c.b16 %v2149, %v2133
    %v3494 = vpack.c.b16 %v2150, %v2134
    %v3495 = vpack.c.b16 %v2151, %v2135
    %v3496 = vpack.c.b16 %v2152, %v2136
    %v3497 = vpack.c.b16 %v2169, %v2153
    %v3498 = vpack.c.b16 %v2170, %v2154
    %v3499 = vpack.c.b16 %v2171, %v2155
    %v3500 = vpack.c.b16 %v2172, %v2156
    %v3501 = vpack.c.b16 %v2173, %v2157
    %v3502 = vpack.c.b16 %v2174, %v2158
    %v3503 = vpack.c.b16 %v2175, %v2159
    %v3504 = vpack.c.b16 %v2176, %v2160
    %v3505 = vpack.c.b16 %v2177, %v2161
    %v3506 = vpack.c.b16 %v2178, %v2162
    %v3507 = vpack.c.b16 %v2179, %v2163
    %v3508 = vpack.c.b16 %v2180, %v2164
    %v3509 = vpack.c.b16 %v2181, %v2165
    %v3510 = vpack.c.b16 %v2182, %v2166
    %v3511 = vpack.c.b16 %v2183, %v2167
    %v3512 = vpack.c.b16 %v2184, %v2168
    %v3513 = vpack.c.b16 %v2201, %v2185
    %v3514 = vpack.c.b16 %v2202, %v2186
    %v3515 = vpack.c.b16 %v2203, %v2187
    %v3516 = vpack.c.b16 %v2204, %v2188
    %v3517 = vpack.c.b16 %v2205, %v2189
    %v3518 = vpack.c.b16 %v2206, %v2190
    %v3519 = vpack.c.b16 %v2207, %v2191
    %v3520 = vpack.c.b16 %v2208, %v2192
    %v3521 = vpack.c.b16 %v2209, %v2193
    %v3522 = vpack.c.b16 %v2210, %v2194
    %v3523 = vpack.c.b16 %v2211, %v2195
    %v3524 = vpack.c.b16 %v2212, %v2196
    %v3525 = vpack.c.b16 %v2213, %v2197
    %v3526 = vpack.c.b16 %v2214, %v2198
    %v3527 = vpack.c.b16 %v2215, %v2199
    %v3528 = vpack.c.b16 %v2216, %v2200
    %v3529 = vpack.c.b16 %v2233, %v2217
    %v3530 = vpack.c.b16 %v2234, %v2218
    %v3531 = vpack.c.b16 %v2235, %v2219
    %v3532 = vpack.c.b16 %v2236, %v2220
    %v3533 = vpack.c.b16 %v2237, %v2221
    %v3534 = vpack.c.b16 %v2238, %v2222
    %v3535 = vpack.c.b16 %v2239, %v2223
    %v3536 = vpack.c.b16 %v2240, %v2224
    %v3537 = vpack.c.b16 %v2241, %v2225
    %v3538 = vpack.c.b16 %v2242, %v2226
    %v3539 = vpack.c.b16 %v2243, %v2227
    %v3540 = vpack.c.b16 %v2244, %v2228
    %v3541 = vpack.c.b16 %v2245, %v2229
    %v3542 = vpack.c.b16 %v2246, %v2230
    %v3543 = vpack.c.b16 %v2247, %v2231
    %v3544 = vpack.c.b16 %v2248, %v2232
    %v3545 = vpack.c.b16 %v2265, %v2249
    %v3546 = vpack.c.b16 %v2266, %v2250
    %v3547 = vpack.c.b16 %v2267, %v2251
    %v3548 = vpack.c.b16 %v2268, %v2252
    %v3549 = vpack.c.b16 %v2269, %v2253
    %v3550 = vpack.c.b16 %v2270, %v2254
    %v3551 = vpack.c.b16 %v2271, %v2255
    %v3552 = vpack.c.b16 %v2272, %v2256
    %v3553 = vpack.c.b16 %v2273, %v2257
    %v3554 = vpack.c.b16 %v2274, %v2258
    %v3555 = vpack.c.b16 %v2275, %v2259
    %v3556 = vpack.c.b16 %v2276, %v2260
    %v3557 = vpack.c.b16 %v2277, %v2261
    %v3558 = vpack.c.b16 %v2278, %v2262
    %v3559 = vpack.c.b16 %v2279, %v2263
    %v3560 = vpack.c.b16 %v2280, %v2264
    %v3561 = vpack.c.b16 %v2297, %v2281
    %v3562 = vpack.c.b16 %v2298, %v2282
    %v3563 = vpack.c.b16 %v2299, %v2283
    %v3564 = vpack.c.b16 %v2300, %v2284
    %v3565 = vpack.c.b16 %v2301, %v2285
    %v3566 = vpack.c.b16 %v2302, %v2286
    %v3567 = vpack.c.b16 %v2303, %v2287
    %v3568 = vpack.c.b16 %v2304, %v2288
    %v3569 = vpack.c.b16 %v2305, %v2289
    %v3570 = vpack.c.b16 %v2306, %v2290
    %v3571 = vpack.c.b16 %v2307, %v2291
    %v3572 = vpack.c.b16 %v2308, %v2292
    %v3573 = vpack.c.b16 %v2309, %v2293
    %v3574 = vpack.c.b16 %v2310, %v2294
    %v3575 = vpack.c.b16 %v2311, %v2295
    %v3576 = vpack.c.b16 %v2312, %v2296
    %v3577 = vpack.c.b16 %v2329, %v2313
    %v3578 = vpack.c.b16 %v2330, %v2314
    %v3579 = vpack.c.b16 %v2331, %v2315
    %v3580 = vpack.c.b16 %v2332, %v2316
    %v3581 = vpack.c.b16 %v2333, %v2317
    %v3582 = vpack.c.b16 %v2334, %v2318
    %v3583 = vpack.c.b16 %v2335, %v2319
    %v3584 = vpack.c.b16 %v2336, %v2320
    %v3585 = vpack.c.b16 %v2337, %v2321
    %v3586 = vpack.c.b16 %v2338, %v2322
    %v3587 = vpack.c.b16 %v2339, %v2323
    %v3588 = vpack.c.b16 %v2340, %v2324
    %v3589 = vpack.c.b16 %v2341, %v2325
    %v3590 = vpack.c.b16 %v2342, %v2326
    %v3591 = vpack.c.b16 %v2343, %v2327
    %v3592 = vpack.c.b16 %v2344, %v2328
    %v3593 = vpack.c.b16 %v2361, %v2345
    %v3594 = vpack.c.b16 %v2362, %v2346
    %v3595 = vpack.c.b16 %v2363, %v2347
    %v3596 = vpack.c.b16 %v2364, %v2348
    %v3597 = vpack.c.b16 %v2365, %v2349
    %v3598 = vpack.c.b16 %v2366, %v2350
    %v3599 = vpack.c.b16 %v2367, %v2351
    %v3600 = vpack.c.b16 %v2368, %v2352
    %v3601 = vpack.c.b16 %v2369, %v2353
    %v3602 = vpack.c.b16 %v2370, %v2354
    %v3603 = vpack.c.b16 %v2371, %v2355
    %v3604 = vpack.c.b16 %v2372, %v2356
    %v3605 = vpack.c.b16 %v2373, %v2357
    %v3606 = vpack.c.b16 %v2374, %v2358
    %v3607 = vpack.c.b16 %v2375, %v2359
    %v3608 = vpack.c.b16 %v2376, %v2360
    %v3609 = vpack.c.b16 %v2393, %v2377
    %v3610 = vpack.c.b16 %v2394, %v2378
    %v3611 = vpack.c.b16 %v2395, %v2379
    %v3612 = vpack.c.b16 %v2396, %v2380
    %v3613 = vpack.c.b16 %v2397, %v2381
    %v3614 = vpack.c.b16 %v2398, %v2382
    %v3615 = vpack.c.b16 %v2399, %v2383
    %v3616 = vpack.c.b16 %v2400, %v2384
    %v3617 = vpack.c.b16 %v2401, %v2385
    %v3618 = vpack.c.b16 %v2402, %v2386
    %v3619 = vpack.c.b16 %v2403, %v2387
    %v3620 = vpack.c.b16 %v2404, %v2388
    %v3621 = vpack.c.b16 %v2405, %v2389
    %v3622 = vpack.c.b16 %v2406, %v2390
    %v3623 = vpack.c.b16 %v2407, %v2391
    %v3624 = vpack.c.b16 %v2408, %v2392
    %v3625 = vpack.c.b16 %v2425, %v2409
    %v3626 = vpack.c.b16 %v2426, %v2410
    %v3627 = vpack.c.b16 %v2427, %v2411
    %v3628 = vpack.c.b16 %v2428, %v2412
    %v3629 = vpack.c.b16 %v2429, %v2413
    %v3630 = vpack.c.b16 %v2430, %v2414
    %v3631 = vpack.c.b16 %v2431, %v2415
    %v3632 = vpack.c.b16 %v2432, %v2416
    %v3633 = vpack.c.b16 %v2433, %v2417
    %v3634 = vpack.c.b16 %v2434, %v2418
    %v3635 = vpack.c.b16 %v2435, %v2419
    %v3636 = vpack.c.b16 %v2436, %v2420
    %v3637 = vpack.c.b16 %v2437, %v2421
    %v3638 = vpack.c.b16 %v2438, %v2422
    %v3639 = vpack.c.b16 %v2439, %v2423
    %v3640 = vpack.c.b16 %v2440, %v2424
    %v3641 = vpack.c.b16 %v2457, %v2441
    %v3642 = vpack.c.b16 %v2458, %v2442
    %v3643 = vpack.c.b16 %v2459, %v2443
    %v3644 = vpack.c.b16 %v2460, %v2444
    %v3645 = vpack.c.b16 %v2461, %v2445
    %v3646 = vpack.c.b16 %v2462, %v2446
    %v3647 = vpack.c.b16 %v2463, %v2447
    %v3648 = vpack.c.b16 %v2464, %v2448
    %v3649 = vpack.c.b16 %v2465, %v2449
    %v3650 = vpack.c.b16 %v2466, %v2450
    %v3651 = vpack.c.b16 %v2467, %v2451
    %v3652 = vpack.c.b16 %v2468, %v2452
    %v3653 = vpack.c.b16 %v2469, %v2453
    %v3654 = vpack.c.b16 %v2470, %v2454
    %v3655 = vpack.c.b16 %v2471, %v2455
    %v3656 = vpack.c.b16 %v2472, %v2456
    %v3657 = vpack.c.b16 %v2489, %v2473
    %v3658 = vpack.c.b16 %v2490, %v2474
    %v3659 = vpack.c.b16 %v2491, %v2475
    %v3660 = vpack.c.b16 %v2492, %v2476
    %v3661 = vpack.c.b16 %v2493, %v2477
    %v3662 = vpack.c.b16 %v2494, %v2478
    %v3663 = vpack.c.b16 %v2495, %v2479
    %v3664 = vpack.c.b16 %v2496, %v2480
    %v3665 = vpack.c.b16 %v2497, %v2481
    %v3666 = vpack.c.b16 %v2498, %v2482
    %v3667 = vpack.c.b16 %v2499, %v2483
    %v3668 = vpack.c.b16 %v2500, %v2484
    %v3669 = vpack.c.b16 %v2501, %v2485
    %v3670 = vpack.c.b16 %v2502, %v2486
    %v3671 = vpack.c.b16 %v2503, %v2487
    %v3672 = vpack.c.b16 %v2504, %v2488
    %v3673 = vpack.c.b16 %v2521, %v2505
    %v3674 = vpack.c.b16 %v2522, %v2506
    %v3675 = vpack.c.b16 %v2523, %v2507
    %v3676 = vpack.c.b16 %v2524, %v2508
    %v3677 = vpack.c.b16 %v2525, %v2509
    %v3678 = vpack.c.b16 %v2526, %v2510
    %v3679 = vpack.c.b16 %v2527, %v2511
    %v3680 = vpack.c.b16 %v2528, %v2512
    %v3681 = vpack.c.b16 %v2529, %v2513
    %v3682 = vpack.c.b16 %v2530, %v2514
    %v3683 = vpack.c.b16 %v2531, %v2515
    %v3684 = vpack.c.b16 %v2532, %v2516
    %v3685 = vpack.c.b16 %v2533, %v2517
    %v3686 = vpack.c.b16 %v2534, %v2518
    %v3687 = vpack.c.b16 %v2535, %v2519
    %v3688 = vpack.c.b16 %v2536, %v2520
    %v3689 = vpack.c.b16 %v2553, %v2537
    %v3690 = vpack.c.b16 %v2554, %v2538
    %v3691 = vpack.c.b16 %v2555, %v2539
    %v3692 = vpack.c.b16 %v2556, %v2540
    %v3693 = vpack.c.b16 %v2557, %v2541
    %v3694 = vpack.c.b16 %v2558, %v2542
    %v3695 = vpack.c.b16 %v2559, %v2543
    %v3696 = vpack.c.b16 %v2560, %v2544
    %v3697 = vpack.c.b16 %v2561, %v2545
    %v3698 = vpack.c.b16 %v2562, %v2546
    %v3699 = vpack.c.b16 %v2563, %v2547
    %v3700 = vpack.c.b16 %v2564, %v2548
    %v3701 = vpack.c.b16 %v2565, %v2549
    %v3702 = vpack.c.b16 %v2566, %v2550
    %v3703 = vpack.c.b16 %v2567, %v2551
    %v3704 = vpack.c.b16 %v2568, %v2552
    %v3705 = vpack.c.b16 %v2585, %v2569
    %v3706 = vpack.c.b16 %v2586, %v2570
    %v3707 = vpack.c.b16 %v2587, %v2571
    %v3708 = vpack.c.b16 %v2588, %v2572
    %v3709 = vpack.c.b16 %v2589, %v2573
    %v3710 = vpack.c.b16 %v2590, %v2574
    %v3711 = vpack.c.b16 %v2591, %v2575
    %v3712 = vpack.c.b16 %v2592, %v2576
    %v3713 = vpack.c.b16 %v2593, %v2577
    %v3714 = vpack.c.b16 %v2594, %v2578
    %v3715 = vpack.c.b16 %v2595, %v2579
    %v3716 = vpack.c.b16 %v2596, %v2580
    %v3717 = vpack.c.b16 %v2597, %v2581
    %v3718 = vpack.c.b16 %v2598, %v2582
    %v3719 = vpack.c.b16 %v2599, %v2583
    %v3720 = vpack.c.b16 %v2600, %v2584
    %v3721 = vpack.c.b16 %v2617, %v2601
    %v3722 = vpack.c.b16 %v2618, %v2602
    %v3723 = vpack.c.b16 %v2619, %v2603
    %v3724 = vpack.c.b16 %v2620, %v2604
    %v3725 = vpack.c.b16 %v2621, %v2605
    %v3726 = vpack.c.b16 %v2622, %v2606
    %v3727 = vpack.c.b16 %v2623, %v2607
    %v3728 = vpack.c.b16 %v2624, %v2608
    %v3729 = vpack.c.b16 %v2625, %v2609
    %v3730 = vpack.c.b16 %v2626, %v2610
    %v3731 = vpack.c.b16 %v2627, %v2611
    %v3732 = vpack.c.b16 %v2628, %v2612
    %v3733 = vpack.c.b16 %v2629, %v2613
    %v3734 = vpack.c.b16 %v2630, %v2614
    %v3735 = vpack.c.b16 %v2631, %v2615
    %v3736 = vpack.c.b16 %v2632, %v2616
    %v3737 = vpack.c.b16 %v2649, %v2633
    %v3738 = vpack.c.b16 %v2650, %v2634
    %v3739 = vpack.c.b16 %v2651, %v2635
    %v3740 = vpack.c.b16 %v2652, %v2636
    %v3741 = vpack.c.b16 %v2653, %v2637
    %v3742 = vpack.c.b16 %v2654, %v2638
    %v3743 = vpack.c.b16 %v2655, %v2639
    %v3744 = vpack.c.b16 %v2656, %v2640
    %v3745 = vpack.c.b16 %v2657, %v2641
    %v3746 = vpack.c.b16 %v2658, %v2642
    %v3747 = vpack.c.b16 %v2659, %v2643
    %v3748 = vpack.c.b16 %v2660, %v2644
    %v3749 = vpack.c.b16 %v2661, %v2645
    %v3750 = vpack.c.b16 %v2662, %v2646
    %v3751 = vpack.c.b16 %v2663, %v2647
    %v3752 = vpack.c.b16 %v2664, %v2648
    %v3753 = vpack.c.b16 %v2681, %v2665
    %v3754 = vpack.c.b16 %v2682, %v2666
    %v3755 = vpack.c.b16 %v2683, %v2667
    %v3756 = vpack.c.b16 %v2684, %v2668
    %v3757 = vpack.c.b16 %v2685, %v2669
    %v3758 = vpack.c.b16 %v2686, %v2670
    %v3759 = vpack.c.b16 %v2687, %v2671
    %v3760 = vpack.c.b16 %v2688, %v2672
    %v3761 = vpack.c.b16 %v2689, %v2673
    %v3762 = vpack.c.b16 %v2690, %v2674
    %v3763 = vpack.c.b16 %v2691, %v2675
    %v3764 = vpack.c.b16 %v2692, %v2676
    %v3765 = vpack.c.b16 %v2693, %v2677
    %v3766 = vpack.c.b16 %v2694, %v2678
    %v3767 = vpack.c.b16 %v2695, %v2679
    %v3768 = vpack.c.b16 %v2696, %v2680
    %v3769 = vpack.c.b16 %v2713, %v2697
    %v3770 = vpack.c.b16 %v2714, %v2698
    %v3771 = vpack.c.b16 %v2715, %v2699
    %v3772 = vpack.c.b16 %v2716, %v2700
    %v3773 = vpack.c.b16 %v2717, %v2701
    %v3774 = vpack.c.b16 %v2718, %v2702
    %v3775 = vpack.c.b16 %v2719, %v2703
    %v3776 = vpack.c.b16 %v2720, %v2704
    %v3777 = vpack.c.b16 %v2721, %v2705
    %v3778 = vpack.c.b16 %v2722, %v2706
    %v3779 = vpack.c.b16 %v2723, %v2707
    %v3780 = vpack.c.b16 %v2724, %v2708
    %v3781 = vpack.c.b16 %v2725, %v2709
    %v3782 = vpack.c.b16 %v2726, %v2710
    %v3783 = vpack.c.b16 %v2727, %v2711
    %v3784 = vpack.c.b16 %v2728, %v2712
    %v3785 = vpack.c.b16 %v2745, %v2729
    %v3786 = vpack.c.b16 %v2746, %v2730
    %v3787 = vpack.c.b16 %v2747, %v2731
    %v3788 = vpack.c.b16 %v2748, %v2732
    %v3789 = vpack.c.b16 %v2749, %v2733
    %v3790 = vpack.c.b16 %v2750, %v2734
    %v3791 = vpack.c.b16 %v2751, %v2735
    %v3792 = vpack.c.b16 %v2752, %v2736
    %v3793 = vpack.c.b16 %v2753, %v2737
    %v3794 = vpack.c.b16 %v2754, %v2738
    %v3795 = vpack.c.b16 %v2755, %v2739
    %v3796 = vpack.c.b16 %v2756, %v2740
    %v3797 = vpack.c.b16 %v2757, %v2741
    %v3798 = vpack.c.b16 %v2758, %v2742
    %v3799 = vpack.c.b16 %v2759, %v2743
    %v3800 = vpack.c.b16 %v2760, %v2744
    %v3801 = vpack.c.b16 %v2777, %v2761
    %v3802 = vpack.c.b16 %v2778, %v2762
    %v3803 = vpack.c.b16 %v2779, %v2763
    %v3804 = vpack.c.b16 %v2780, %v2764
    %v3805 = vpack.c.b16 %v2781, %v2765
    %v3806 = vpack.c.b16 %v2782, %v2766
    %v3807 = vpack.c.b16 %v2783, %v2767
    %v3808 = vpack.c.b16 %v2784, %v2768
    %v3809 = vpack.c.b16 %v2785, %v2769
    %v3810 = vpack.c.b16 %v2786, %v2770
    %v3811 = vpack.c.b16 %v2787, %v2771
    %v3812 = vpack.c.b16 %v2788, %v2772
    %v3813 = vpack.c.b16 %v2789, %v2773
    %v3814 = vpack.c.b16 %v2790, %v2774
    %v3815 = vpack.c.b16 %v2791, %v2775
    %v3816 = vpack.c.b16 %v2792, %v2776
    %v3817 = vpack.c.b16 %v2809, %v2793
    %v3818 = vpack.c.b16 %v2810, %v2794
    %v3819 = vpack.c.b16 %v2811, %v2795
    %v3820 = vpack.c.b16 %v2812, %v2796
    %v3821 = vpack.c.b16 %v2813, %v2797
    %v3822 = vpack.c.b16 %v2814, %v2798
    %v3823 = vpack.c.b16 %v2815, %v2799
    %v3824 = vpack.c.b16 %v2816, %v2800
    %v3825 = vpack.c.b16 %v2817, %v2801
    %v3826 = vpack.c.b16 %v2818, %v2802
    %v3827 = vpack.c.b16 %v2819, %v2803
    %v3828 = vpack.c.b16 %v2820, %v2804
    %v3829 = vpack.c.b16 %v2821, %v2805
    %v3830 = vpack.c.b16 %v2822, %v2806
    %v3831 = vpack.c.b16 %v2823, %v2807
    %v3832 = vpack.c.b16 %v2824, %v2808
    %v3833 = vpack.c.b16 %v2841, %v2825
    %v3834 = vpack.c.b16 %v2842, %v2826
    %v3835 = vpack.c.b16 %v2843, %v2827
    %v3836 = vpack.c.b16 %v2844, %v2828
    %v3837 = vpack.c.b16 %v2845, %v2829
    %v3838 = vpack.c.b16 %v2846, %v2830
    %v3839 = vpack.c.b16 %v2847, %v2831
    %v3840 = vpack.c.b16 %v2848, %v2832
    %v3841 = vpack.c.b16 %v2849, %v2833
    %v3842 = vpack.c.b16 %v2850, %v2834
    %v3843 = vpack.c.b16 %v2851, %v2835
    %v3844 = vpack.c.b16 %v2852, %v2836
    %v3845 = vpack.c.b16 %v2853, %v2837
    %v3846 = vpack.c.b16 %v2854, %v2838
    %v3847 = vpack.c.b16 %v2855, %v2839
    %v3848 = vpack.c.b16 %v2856, %v2840
    %v3849 = vpack.c.b16 %v2873, %v2857
    %v3850 = vpack.c.b16 %v2874, %v2858
    %v3851 = vpack.c.b16 %v2875, %v2859
    %v3852 = vpack.c.b16 %v2876, %v2860
    %v3853 = vpack.c.b16 %v2877, %v2861
    %v3854 = vpack.c.b16 %v2878, %v2862
    %v3855 = vpack.c.b16 %v2879, %v2863
    %v3856 = vpack.c.b16 %v2880, %v2864
    %v3857 = vpack.c.b16 %v2881, %v2865
    %v3858 = vpack.c.b16 %v2882, %v2866
    %v3859 = vpack.c.b16 %v2883, %v2867
    %v3860 = vpack.c.b16 %v2884, %v2868
    %v3861 = vpack.c.b16 %v2885, %v2869
    %v3862 = vpack.c.b16 %v2886, %v2870
    %v3863 = vpack.c.b16 %v2887, %v2871
    %v3864 = vpack.c.b16 %v2888, %v2872
    %v3865 = vpack.c.b16 %v2905, %v2889
    %v3866 = vpack.c.b16 %v2906, %v2890
    %v3867 = vpack.c.b16 %v2907, %v2891
    %v3868 = vpack.c.b16 %v2908, %v2892
    %v3869 = vpack.c.b16 %v2909, %v2893
    %v3870 = vpack.c.b16 %v2910, %v2894
    %v3871 = vpack.c.b16 %v2911, %v2895
    %v3872 = vpack.c.b16 %v2912, %v2896
    %v3873 = vpack.c.b16 %v2913, %v2897
    %v3874 = vpack.c.b16 %v2914, %v2898
    %v3875 = vpack.c.b16 %v2915, %v2899
    %v3876 = vpack.c.b16 %v2916, %v2900
    %v3877 = vpack.c.b16 %v2917, %v2901
    %v3878 = vpack.c.b16 %v2918, %v2902
    %v3879 = vpack.c.b16 %v2919, %v2903
    %v3880 = vpack.c.b16 %v2920, %v2904
    %v3881 = vpack.c.b16 %v2937, %v2921
    %v3882 = vpack.c.b16 %v2938, %v2922
    %v3883 = vpack.c.b16 %v2939, %v2923
    %v3884 = vpack.c.b16 %v2940, %v2924
    %v3885 = vpack.c.b16 %v2941, %v2925
    %v3886 = vpack.c.b16 %v2942, %v2926
    %v3887 = vpack.c.b16 %v2943, %v2927
    %v3888 = vpack.c.b16 %v2944, %v2928
    %v3889 = vpack.c.b16 %v2945, %v2929
    %v3890 = vpack.c.b16 %v2946, %v2930
    %v3891 = vpack.c.b16 %v2947, %v2931
    %v3892 = vpack.c.b16 %v2948, %v2932
    %v3893 = vpack.c.b16 %v2949, %v2933
    %v3894 = vpack.c.b16 %v2950, %v2934
    %v3895 = vpack.c.b16 %v2951, %v2935
    %v3896 = vpack.c.b16 %v2952, %v2936
    %v3897 = vpack.c.b16 %v2969, %v2953
    %v3898 = vpack.c.b16 %v2970, %v2954
    %v3899 = vpack.c.b16 %v2971, %v2955
    %v3900 = vpack.c.b16 %v2972, %v2956
    %v3901 = vpack.c.b16 %v2973, %v2957
    %v3902 = vpack.c.b16 %v2974, %v2958
    %v3903 = vpack.c.b16 %v2975, %v2959
    %v3904 = vpack.c.b16 %v2976, %v2960
    %v3905 = vpack.c.b16 %v2977, %v2961
    %v3906 = vpack.c.b16 %v2978, %v2962
    %v3907 = vpack.c.b16 %v2979, %v2963
    %v3908 = vpack.c.b16 %v2980, %v2964
    %v3909 = vpack.c.b16 %v2981, %v2965
    %v3910 = vpack.c.b16 %v2982, %v2966
    %v3911 = vpack.c.b16 %v2983, %v2967
    %v3912 = vpack.c.b16 %v2984, %v2968
    %v3913 = vpack.c.b16 %v3001, %v2985
    %v3914 = vpack.c.b16 %v3002, %v2986
    %v3915 = vpack.c.b16 %v3003, %v2987
    %v3916 = vpack.c.b16 %v3004, %v2988
    %v3917 = vpack.c.b16 %v3005, %v2989
    %v3918 = vpack.c.b16 %v3006, %v2990
    %v3919 = vpack.c.b16 %v3007, %v2991
    %v3920 = vpack.c.b16 %v3008, %v2992
    %v3921 = vpack.c.b16 %v3009, %v2993
    %v3922 = vpack.c.b16 %v3010, %v2994
    %v3923 = vpack.c.b16 %v3011, %v2995
    %v3924 = vpack.c.b16 %v3012, %v2996
    %v3925 = vpack.c.b16 %v3013, %v2997
    %v3926 = vpack.c.b16 %v3014, %v2998
    %v3927 = vpack.c.b16 %v3015, %v2999
    %v3928 = vpack.c.b16 %v3016, %v3000
    %v3929 = vpack.c.b16 %v3033, %v3017
    %v3930 = vpack.c.b16 %v3034, %v3018
    %v3931 = vpack.c.b16 %v3035, %v3019
    %v3932 = vpack.c.b16 %v3036, %v3020
    %v3933 = vpack.c.b16 %v3037, %v3021
    %v3934 = vpack.c.b16 %v3038, %v3022
    %v3935 = vpack.c.b16 %v3039, %v3023
    %v3936 = vpack.c.b16 %v3040, %v3024
    %v3937 = vpack.c.b16 %v3041, %v3025
    %v3938 = vpack.c.b16 %v3042, %v3026
    %v3939 = vpack.c.b16 %v3043, %v3027
    %v3940 = vpack.c.b16 %v3044, %v3028
    %v3941 = vpack.c.b16 %v3045, %v3029
    %v3942 = vpack.c.b16 %v3046, %v3030
    %v3943 = vpack.c.b16 %v3047, %v3031
    %v3944 = vpack.c.b16 %v3048, %v3032
    %v3945 = vpack.c.b16 %v3065, %v3049
    %v3946 = vpack.c.b16 %v3066, %v3050
    %v3947 = vpack.c.b16 %v3067, %v3051
    %v3948 = vpack.c.b16 %v3068, %v3052
    %v3949 = vpack.c.b16 %v3069, %v3053
    %v3950 = vpack.c.b16 %v3070, %v3054
    %v3951 = vpack.c.b16 %v3071, %v3055
    %v3952 = vpack.c.b16 %v3072, %v3056
    %v3953 = vpack.c.b16 %v3073, %v3057
    %v3954 = vpack.c.b16 %v3074, %v3058
    %v3955 = vpack.c.b16 %v3075, %v3059
    %v3956 = vpack.c.b16 %v3076, %v3060
    %v3957 = vpack.c.b16 %v3077, %v3061
    %v3958 = vpack.c.b16 %v3078, %v3062
    %v3959 = vpack.c.b16 %v3079, %v3063
    %v3960 = vpack.c.b16 %v3080, %v3064
    %v3961 = vpack.c.b16 %v3097, %v3081
    %v3962 = vpack.c.b16 %v3098, %v3082
    %v3963 = vpack.c.b16 %v3099, %v3083
    %v3964 = vpack.c.b16 %v3100, %v3084
    %v3965 = vpack.c.b16 %v3101, %v3085
    %v3966 = vpack.c.b16 %v3102, %v3086
    %v3967 = vpack.c.b16 %v3103, %v3087
    %v3968 = vpack.c.b16 %v3104, %v3088
    %v3969 = vpack.c.b16 %v3105, %v3089
    %v3970 = vpack.c.b16 %v3106, %v3090
    %v3971 = vpack.c.b16 %v3107, %v3091
    %v3972 = vpack.c.b16 %v3108, %v3092
    %v3973 = vpack.c.b16 %v3109, %v3093
    %v3974 = vpack.c.b16 %v3110, %v3094
    %v3975 = vpack.c.b16 %v3111, %v3095
    %v3976 = vpack.c.b16 %v3112, %v3096
    %v3977 = vpack.c.b16 %v3129, %v3113
    %v3978 = vpack.c.b16 %v3130, %v3114
    %v3979 = vpack.c.b16 %v3131, %v3115
    %v3980 = vpack.c.b16 %v3132, %v3116
    %v3981 = vpack.c.b16 %v3133, %v3117
    %v3982 = vpack.c.b16 %v3134, %v3118
    %v3983 = vpack.c.b16 %v3135, %v3119
    %v3984 = vpack.c.b16 %v3136, %v3120
    %v3985 = vpack.c.b16 %v3137, %v3121
    %v3986 = vpack.c.b16 %v3138, %v3122
    %v3987 = vpack.c.b16 %v3139, %v3123
    %v3988 = vpack.c.b16 %v3140, %v3124
    %v3989 = vpack.c.b16 %v3141, %v3125
    %v3990 = vpack.c.b16 %v3142, %v3126
    %v3991 = vpack.c.b16 %v3143, %v3127
    %v3992 = vpack.c.b16 %v3144, %v3128
    %v3993 = vpack.c.b16 %v3161, %v3145
    %v3994 = vpack.c.b16 %v3162, %v3146
    %v3995 = vpack.c.b16 %v3163, %v3147
    %v3996 = vpack.c.b16 %v3164, %v3148
    %v3997 = vpack.c.b16 %v3165, %v3149
    %v3998 = vpack.c.b16 %v3166, %v3150
    %v3999 = vpack.c.b16 %v3167, %v3151
    %v4000 = vpack.c.b16 %v3168, %v3152
    %v4001 = vpack.c.b16 %v3169, %v3153
    %v4002 = vpack.c.b16 %v3170, %v3154
    %v4003 = vpack.c.b16 %v3171, %v3155
    %v4004 = vpack.c.b16 %v3172, %v3156
    %v4005 = vpack.c.b16 %v3173, %v3157
    %v4006 = vpack.c.b16 %v3174, %v3158
    %v4007 = vpack.c.b16 %v3175, %v3159
    %v4008 = vpack.c.b16 %v3176, %v3160
    %v4009 = vpack.c.b16 %v3193, %v3177
    %v4010 = vpack.c.b16 %v3194, %v3178
    %v4011 = vpack.c.b16 %v3195, %v3179
    %v4012 = vpack.c.b16 %v3196, %v3180
    %v4013 = vpack.c.b16 %v3197, %v3181
    %v4014 = vpack.c.b16 %v3198, %v3182
    %v4015 = vpack.c.b16 %v3199, %v3183
    %v4016 = vpack.c.b16 %v3200, %v3184
    %v4017 = vpack.c.b16 %v3201, %v3185
    %v4018 = vpack.c.b16 %v3202, %v3186
    %v4019 = vpack.c.b16 %v3203, %v3187
    %v4020 = vpack.c.b16 %v3204, %v3188
    %v4021 = vpack.c.b16 %v3205, %v3189
    %v4022 = vpack.c.b16 %v3206, %v3190
    %v4023 = vpack.c.b16 %v3207, %v3191
    %v4024 = vpack.c.b16 %v3208, %v3192
    %v4025 = vpack.c.b16 %v3225, %v3209
    %v4026 = vpack.c.b16 %v3226, %v3210
    %v4027 = vpack.c.b16 %v3227, %v3211
    %v4028 = vpack.c.b16 %v3228, %v3212
    %v4029 = vpack.c.b16 %v3229, %v3213
    %v4030 = vpack.c.b16 %v3230, %v3214
    %v4031 = vpack.c.b16 %v3231, %v3215
    %v4032 = vpack.c.b16 %v3232, %v3216
    %v4033 = vpack.c.b16 %v3233, %v3217
    %v4034 = vpack.c.b16 %v3234, %v3218
    %v4035 = vpack.c.b16 %v3235, %v3219
    %v4036 = vpack.c.b16 %v3236, %v3220
    %v4037 = vpack.c.b16 %v3237, %v3221
    %v4038 = vpack.c.b16 %v3238, %v3222
    %v4039 = vpack.c.b16 %v3239, %v3223
    %v4040 = vpack.c.b16 %v3240, %v3224
    %v4041 = vpack.c.b16 %v3257, %v3241
    %v4042 = vpack.c.b16 %v3258, %v3242
    %v4043 = vpack.c.b16 %v3259, %v3243
    %v4044 = vpack.c.b16 %v3260, %v3244
    %v4045 = vpack.c.b16 %v3261, %v3245
    %v4046 = vpack.c.b16 %v3262, %v3246
    %v4047 = vpack.c.b16 %v3263, %v3247
    %v4048 = vpack.c.b16 %v3264, %v3248
    %v4049 = vpack.c.b16 %v3265, %v3249
    %v4050 = vpack.c.b16 %v3266, %v3250
    %v4051 = vpack.c.b16 %v3267, %v3251
    %v4052 = vpack.c.b16 %v3268, %v3252
    %v4053 = vpack.c.b16 %v3269, %v3253
    %v4054 = vpack.c.b16 %v3270, %v3254
    %v4055 = vpack.c.b16 %v3271, %v3255
    %v4056 = vpack.c.b16 %v3272, %v3256
    %vm4841 = vcmask 130048
    %v4843 = vsel %vm4841, %v100, 0
    %4845 = vmatpush.bf16.msra.mxu0 %v3385
    %4846 = vmatpush.bf16.msra.mxu0 %v3369
    %4847 = vmatpush.bf16.msra.mxu0 %v3353
    %4848 = vmatpush.bf16.msra.mxu0 %v3337
    %4849 = vmatpush.bf16.msra.mxu0 %v3321
    %4850 = vmatpush.bf16.msra.mxu0 %v3305
    %4851 = vmatpush.bf16.msra.mxu0 %v3289
    %4852 = vmatpush.bf16.msra.mxu0 %v3273
    %4853 = vmatmul.bf16.gmra.mxu0 %v94
    %v4854 = vpop.f32.mrf.mxu0
    %v4855 = vadd.f32 %v889, %v4854
    %v4856 = vpop.f32.mrf.mxu0
    %v4857 = vadd.f32 %v889, %v4856
    %4858 = vdwg.mxu0
    %4859 = vmatpush.bf16.msra.mxu0 %v3513
    %4860 = vmatpush.bf16.msra.mxu0 %v3497
    %4861 = vmatpush.bf16.msra.mxu0 %v3481
    %4862 = vmatpush.bf16.msra.mxu0 %v3465
    %4863 = vmatpush.bf16.msra.mxu0 %v3449
    %4864 = vmatpush.bf16.msra.mxu0 %v3433
    %4865 = vmatpush.bf16.msra.mxu0 %v3417
    %4866 = vmatpush.bf16.msra.mxu0 %v3401
    %4867 = vmatmul.bf16.gmra.mxu0 %v95
    %v4868 = vpop.f32.mrf.mxu0
    %v4869 = vadd.f32 %v4855, %v4868
    %v4870 = vpop.f32.mrf.mxu0
    %v4871 = vadd.f32 %v4857, %v4870
    %4872 = vdwg.mxu0
    %4873 = vmatpush.bf16.msra.mxu0 %v3641
    %4874 = vmatpush.bf16.msra.mxu0 %v3625
    %4875 = vmatpush.bf16.msra.mxu0 %v3609
    %4876 = vmatpush.bf16.msra.mxu0 %v3593
    %4877 = vmatpush.bf16.msra.mxu0 %v3577
    %4878 = vmatpush.bf16.msra.mxu0 %v3561
    %4879 = vmatpush.bf16.msra.mxu0 %v3545
    %4880 = vmatpush.bf16.msra.mxu0 %v3529
    %4881 = vmatmul.bf16.gmra.mxu0 %v96
    %v4882 = vpop.f32.mrf.mxu0
    %v4883 = vadd.f32 %v4869, %v4882
    %v4884 = vpop.f32.mrf.mxu0
    %v4885 = vadd.f32 %v4871, %v4884
    %4886 = vdwg.mxu0
    %4887 = vmatpush.bf16.msra.mxu0 %v3769
    %4888 = vmatpush.bf16.msra.mxu0 %v3753
    %4889 = vmatpush.bf16.msra.mxu0 %v3737
    %4890 = vmatpush.bf16.msra.mxu0 %v3721
    %4891 = vmatpush.bf16.msra.mxu0 %v3705
    %4892 = vmatpush.bf16.msra.mxu0 %v3689
    %4893 = vmatpush.bf16.msra.mxu0 %v3673
    %4894 = vmatpush.bf16.msra.mxu0 %v3657
    %4895 = vmatmul.bf16.gmra.mxu0 %v97
    %v4896 = vpop.f32.mrf.mxu0
    %v4897 = vadd.f32 %v4883, %v4896
    %v4898 = vpop.f32.mrf.mxu0
    %v4899 = vadd.f32 %v4885, %v4898
    %4900 = vdwg.mxu0
    %4901 = vmatpush.bf16.msra.mxu0 %v3897
    %4902 = vmatpush.bf16.msra.mxu0 %v3881
    %4903 = vmatpush.bf16.msra.mxu0 %v3865
    %4904 = vmatpush.bf16.msra.mxu0 %v3849
    %4905 = vmatpush.bf16.msra.mxu0 %v3833
    %4906 = vmatpush.bf16.msra.mxu0 %v3817
    %4907 = vmatpush.bf16.msra.mxu0 %v3801
    %4908 = vmatpush.bf16.msra.mxu0 %v3785
    %4909 = vmatmul.bf16.gmra.mxu0 %v98
    %v4910 = vpop.f32.mrf.mxu0
    %v4911 = vadd.f32 %v4897, %v4910
    %v4912 = vpop.f32.mrf.mxu0
    %v4913 = vadd.f32 %v4899, %v4912
    %4914 = vdwg.mxu0
    %4915 = vmatpush.bf16.msra.mxu0 %v4025
    %4916 = vmatpush.bf16.msra.mxu0 %v4009
    %4917 = vmatpush.bf16.msra.mxu0 %v3993
    %4918 = vmatpush.bf16.msra.mxu0 %v3977
    %4919 = vmatpush.bf16.msra.mxu0 %v3961
    %4920 = vmatpush.bf16.msra.mxu0 %v3945
    %4921 = vmatpush.bf16.msra.mxu0 %v3929
    %4922 = vmatpush.bf16.msra.mxu0 %v3913
    %4923 = vmatmul.bf16.gmra.mxu0 %v99
    %v4924 = vpop.f32.mrf.mxu0
    %v4925 = vadd.f32 %v4911, %v4924
    %v4926 = vpop.f32.mrf.mxu0
    %v4927 = vadd.f32 %v4913, %v4926
    %4928 = vdwg.mxu0
    %4929 = vmatpush.bf16.msra.mxu0 0
    %4930 = vmatpush.bf16.msra.mxu0 0
    %4931 = vmatpush.bf16.msra.mxu0 0
    %4932 = vmatpush.bf16.msra.mxu0 0
    %4933 = vmatpush.bf16.msra.mxu0 0
    %4934 = vmatpush.bf16.msra.mxu0 0
    %4935 = vmatpush.bf16.msra.mxu0 0
    %4936 = vmatpush.bf16.msra.mxu0 %v4041
    %4937 = vmatmul.bf16.gmra.mxu0 %v4843
    %v4938 = vpop.f32.mrf.mxu0
    %v4939 = vadd.f32 %v4925, %v4938
    %v4940 = vpop.f32.mrf.mxu0
    %v4941 = vadd.f32 %v4927, %v4940
    %4942 = vdwg.mxu0
    %4943 = vmatpush.bf16.msra.mxu0 %v3386
    %4944 = vmatpush.bf16.msra.mxu0 %v3370
    %4945 = vmatpush.bf16.msra.mxu0 %v3354
    %4946 = vmatpush.bf16.msra.mxu0 %v3338
    %4947 = vmatpush.bf16.msra.mxu0 %v3322
    %4948 = vmatpush.bf16.msra.mxu0 %v3306
    %4949 = vmatpush.bf16.msra.mxu0 %v3290
    %4950 = vmatpush.bf16.msra.mxu0 %v3274
    %4951 = vmatmul.bf16.gmra.mxu0 %v94
    %v4952 = vpop.f32.mrf.mxu0
    %v4953 = vadd.f32 %v890, %v4952
    %v4954 = vpop.f32.mrf.mxu0
    %v4955 = vadd.f32 %v890, %v4954
    %4956 = vdwg.mxu0
    %4957 = vmatpush.bf16.msra.mxu0 %v3514
    %4958 = vmatpush.bf16.msra.mxu0 %v3498
    %4959 = vmatpush.bf16.msra.mxu0 %v3482
    %4960 = vmatpush.bf16.msra.mxu0 %v3466
    %4961 = vmatpush.bf16.msra.mxu0 %v3450
    %4962 = vmatpush.bf16.msra.mxu0 %v3434
    %4963 = vmatpush.bf16.msra.mxu0 %v3418
    %4964 = vmatpush.bf16.msra.mxu0 %v3402
    %4965 = vmatmul.bf16.gmra.mxu0 %v95
    %v4966 = vpop.f32.mrf.mxu0
    %v4967 = vadd.f32 %v4953, %v4966
    %v4968 = vpop.f32.mrf.mxu0
    %v4969 = vadd.f32 %v4955, %v4968
    %4970 = vdwg.mxu0
    %4971 = vmatpush.bf16.msra.mxu0 %v3642
    %4972 = vmatpush.bf16.msra.mxu0 %v3626
    %4973 = vmatpush.bf16.msra.mxu0 %v3610
    %4974 = vmatpush.bf16.msra.mxu0 %v3594
    %4975 = vmatpush.bf16.msra.mxu0 %v3578
    %4976 = vmatpush.bf16.msra.mxu0 %v3562
    %4977 = vmatpush.bf16.msra.mxu0 %v3546
    %4978 = vmatpush.bf16.msra.mxu0 %v3530
    %4979 = vmatmul.bf16.gmra.mxu0 %v96
    %v4980 = vpop.f32.mrf.mxu0
    %v4981 = vadd.f32 %v4967, %v4980
    %v4982 = vpop.f32.mrf.mxu0
    %v4983 = vadd.f32 %v4969, %v4982
    %4984 = vdwg.mxu0
    %4985 = vmatpush.bf16.msra.mxu0 %v3770
    %4986 = vmatpush.bf16.msra.mxu0 %v3754
    %4987 = vmatpush.bf16.msra.mxu0 %v3738
    %4988 = vmatpush.bf16.msra.mxu0 %v3722
    %4989 = vmatpush.bf16.msra.mxu0 %v3706
    %4990 = vmatpush.bf16.msra.mxu0 %v3690
    %4991 = vmatpush.bf16.msra.mxu0 %v3674
    %4992 = vmatpush.bf16.msra.mxu0 %v3658
    %4993 = vmatmul.bf16.gmra.mxu0 %v97
    %v4994 = vpop.f32.mrf.mxu0
    %v4995 = vadd.f32 %v4981, %v4994
    %v4996 = vpop.f32.mrf.mxu0
    %v4997 = vadd.f32 %v4983, %v4996
    %4998 = vdwg.mxu0
    %4999 = vmatpush.bf16.msra.mxu0 %v3898
    %5000 = vmatpush.bf16.msra.mxu0 %v3882
    %5001 = vmatpush.bf16.msra.mxu0 %v3866
    %5002 = vmatpush.bf16.msra.mxu0 %v3850
    %5003 = vmatpush.bf16.msra.mxu0 %v3834
    %5004 = vmatpush.bf16.msra.mxu0 %v3818
    %5005 = vmatpush.bf16.msra.mxu0 %v3802
    %5006 = vmatpush.bf16.msra.mxu0 %v3786
    %5007 = vmatmul.bf16.gmra.mxu0 %v98
    %v5008 = vpop.f32.mrf.mxu0
    %v5009 = vadd.f32 %v4995, %v5008
    %v5010 = vpop.f32.mrf.mxu0
    %v5011 = vadd.f32 %v4997, %v5010
    %5012 = vdwg.mxu0
    %5013 = vmatpush.bf16.msra.mxu0 %v4026
    %5014 = vmatpush.bf16.msra.mxu0 %v4010
    %5015 = vmatpush.bf16.msra.mxu0 %v3994
    %5016 = vmatpush.bf16.msra.mxu0 %v3978
    %5017 = vmatpush.bf16.msra.mxu0 %v3962
    %5018 = vmatpush.bf16.msra.mxu0 %v3946
    %5019 = vmatpush.bf16.msra.mxu0 %v3930
    %5020 = vmatpush.bf16.msra.mxu0 %v3914
    %5021 = vmatmul.bf16.gmra.mxu0 %v99
    %v5022 = vpop.f32.mrf.mxu0
    %v5023 = vadd.f32 %v5009, %v5022
    %v5024 = vpop.f32.mrf.mxu0
    %v5025 = vadd.f32 %v5011, %v5024
    %5026 = vdwg.mxu0
    %5027 = vmatpush.bf16.msra.mxu0 0
    %5028 = vmatpush.bf16.msra.mxu0 0
    %5029 = vmatpush.bf16.msra.mxu0 0
    %5030 = vmatpush.bf16.msra.mxu0 0
    %5031 = vmatpush.bf16.msra.mxu0 0
    %5032 = vmatpush.bf16.msra.mxu0 0
    %5033 = vmatpush.bf16.msra.mxu0 0
    %5034 = vmatpush.bf16.msra.mxu0 %v4042
    %5035 = vmatmul.bf16.gmra.mxu0 %v4843
    %v5036 = vpop.f32.mrf.mxu0
    %v5037 = vadd.f32 %v5023, %v5036
    %v5038 = vpop.f32.mrf.mxu0
    %v5039 = vadd.f32 %v5025, %v5038
    %5040 = vdwg.mxu0
    %5041 = vmatpush.bf16.msra.mxu0 %v3387
    %5042 = vmatpush.bf16.msra.mxu0 %v3371
    %5043 = vmatpush.bf16.msra.mxu0 %v3355
    %5044 = vmatpush.bf16.msra.mxu0 %v3339
    %5045 = vmatpush.bf16.msra.mxu0 %v3323
    %5046 = vmatpush.bf16.msra.mxu0 %v3307
    %5047 = vmatpush.bf16.msra.mxu0 %v3291
    %5048 = vmatpush.bf16.msra.mxu0 %v3275
    %5049 = vmatmul.bf16.gmra.mxu0 %v94
    %v5050 = vpop.f32.mrf.mxu0
    %v5051 = vadd.f32 %v891, %v5050
    %v5052 = vpop.f32.mrf.mxu0
    %v5053 = vadd.f32 %v891, %v5052
    %5054 = vdwg.mxu0
    %5055 = vmatpush.bf16.msra.mxu0 %v3515
    %5056 = vmatpush.bf16.msra.mxu0 %v3499
    %5057 = vmatpush.bf16.msra.mxu0 %v3483
    %5058 = vmatpush.bf16.msra.mxu0 %v3467
    %5059 = vmatpush.bf16.msra.mxu0 %v3451
    %5060 = vmatpush.bf16.msra.mxu0 %v3435
    %5061 = vmatpush.bf16.msra.mxu0 %v3419
    %5062 = vmatpush.bf16.msra.mxu0 %v3403
    %5063 = vmatmul.bf16.gmra.mxu0 %v95
    %v5064 = vpop.f32.mrf.mxu0
    %v5065 = vadd.f32 %v5051, %v5064
    %v5066 = vpop.f32.mrf.mxu0
    %v5067 = vadd.f32 %v5053, %v5066
    %5068 = vdwg.mxu0
    %5069 = vmatpush.bf16.msra.mxu0 %v3643
    %5070 = vmatpush.bf16.msra.mxu0 %v3627
    %5071 = vmatpush.bf16.msra.mxu0 %v3611
    %5072 = vmatpush.bf16.msra.mxu0 %v3595
    %5073 = vmatpush.bf16.msra.mxu0 %v3579
    %5074 = vmatpush.bf16.msra.mxu0 %v3563
    %5075 = vmatpush.bf16.msra.mxu0 %v3547
    %5076 = vmatpush.bf16.msra.mxu0 %v3531
    %5077 = vmatmul.bf16.gmra.mxu0 %v96
    %v5078 = vpop.f32.mrf.mxu0
    %v5079 = vadd.f32 %v5065, %v5078
    %v5080 = vpop.f32.mrf.mxu0
    %v5081 = vadd.f32 %v5067, %v5080
    %5082 = vdwg.mxu0
    %5083 = vmatpush.bf16.msra.mxu0 %v3771
    %5084 = vmatpush.bf16.msra.mxu0 %v3755
    %5085 = vmatpush.bf16.msra.mxu0 %v3739
    %5086 = vmatpush.bf16.msra.mxu0 %v3723
    %5087 = vmatpush.bf16.msra.mxu0 %v3707
    %5088 = vmatpush.bf16.msra.mxu0 %v3691
    %5089 = vmatpush.bf16.msra.mxu0 %v3675
    %5090 = vmatpush.bf16.msra.mxu0 %v3659
    %5091 = vmatmul.bf16.gmra.mxu0 %v97
    %v5092 = vpop.f32.mrf.mxu0
    %v5093 = vadd.f32 %v5079, %v5092
    %v5094 = vpop.f32.mrf.mxu0
    %v5095 = vadd.f32 %v5081, %v5094
    %5096 = vdwg.mxu0
    %5097 = vmatpush.bf16.msra.mxu0 %v3899
    %5098 = vmatpush.bf16.msra.mxu0 %v3883
    %5099 = vmatpush.bf16.msra.mxu0 %v3867
    %5100 = vmatpush.bf16.msra.mxu0 %v3851
    %5101 = vmatpush.bf16.msra.mxu0 %v3835
    %5102 = vmatpush.bf16.msra.mxu0 %v3819
    %5103 = vmatpush.bf16.msra.mxu0 %v3803
    %5104 = vmatpush.bf16.msra.mxu0 %v3787
    %5105 = vmatmul.bf16.gmra.mxu0 %v98
    %v5106 = vpop.f32.mrf.mxu0
    %v5107 = vadd.f32 %v5093, %v5106
    %v5108 = vpop.f32.mrf.mxu0
    %v5109 = vadd.f32 %v5095, %v5108
    %5110 = vdwg.mxu0
    %5111 = vmatpush.bf16.msra.mxu0 %v4027
    %5112 = vmatpush.bf16.msra.mxu0 %v4011
    %5113 = vmatpush.bf16.msra.mxu0 %v3995
    %5114 = vmatpush.bf16.msra.mxu0 %v3979
    %5115 = vmatpush.bf16.msra.mxu0 %v3963
    %5116 = vmatpush.bf16.msra.mxu0 %v3947
    %5117 = vmatpush.bf16.msra.mxu0 %v3931
    %5118 = vmatpush.bf16.msra.mxu0 %v3915
    %5119 = vmatmul.bf16.gmra.mxu0 %v99
    %v5120 = vpop.f32.mrf.mxu0
    %v5121 = vadd.f32 %v5107, %v5120
    %v5122 = vpop.f32.mrf.mxu0
    %v5123 = vadd.f32 %v5109, %v5122
    %5124 = vdwg.mxu0
    %5125 = vmatpush.bf16.msra.mxu0 0
    %5126 = vmatpush.bf16.msra.mxu0 0
    %5127 = vmatpush.bf16.msra.mxu0 0
    %5128 = vmatpush.bf16.msra.mxu0 0
    %5129 = vmatpush.bf16.msra.mxu0 0
    %5130 = vmatpush.bf16.msra.mxu0 0
    %5131 = vmatpush.bf16.msra.mxu0 0
    %5132 = vmatpush.bf16.msra.mxu0 %v4043
    %5133 = vmatmul.bf16.gmra.mxu0 %v4843
    %v5134 = vpop.f32.mrf.mxu0
    %v5135 = vadd.f32 %v5121, %v5134
    %v5136 = vpop.f32.mrf.mxu0
    %v5137 = vadd.f32 %v5123, %v5136
    %5138 = vdwg.mxu0
    %5139 = vmatpush.bf16.msra.mxu0 %v3388
    %5140 = vmatpush.bf16.msra.mxu0 %v3372
    %5141 = vmatpush.bf16.msra.mxu0 %v3356
    %5142 = vmatpush.bf16.msra.mxu0 %v3340
    %5143 = vmatpush.bf16.msra.mxu0 %v3324
    %5144 = vmatpush.bf16.msra.mxu0 %v3308
    %5145 = vmatpush.bf16.msra.mxu0 %v3292
    %5146 = vmatpush.bf16.msra.mxu0 %v3276
    %5147 = vmatmul.bf16.gmra.mxu0 %v94
    %v5148 = vpop.f32.mrf.mxu0
    %v5149 = vadd.f32 %v892, %v5148
    %v5150 = vpop.f32.mrf.mxu0
    %v5151 = vadd.f32 %v892, %v5150
    %5152 = vdwg.mxu0
    %5153 = vmatpush.bf16.msra.mxu0 %v3516
    %5154 = vmatpush.bf16.msra.mxu0 %v3500
    %5155 = vmatpush.bf16.msra.mxu0 %v3484
    %5156 = vmatpush.bf16.msra.mxu0 %v3468
    %5157 = vmatpush.bf16.msra.mxu0 %v3452
    %5158 = vmatpush.bf16.msra.mxu0 %v3436
    %5159 = vmatpush.bf16.msra.mxu0 %v3420
    %5160 = vmatpush.bf16.msra.mxu0 %v3404
    %5161 = vmatmul.bf16.gmra.mxu0 %v95
    %v5162 = vpop.f32.mrf.mxu0
    %v5163 = vadd.f32 %v5149, %v5162
    %v5164 = vpop.f32.mrf.mxu0
    %v5165 = vadd.f32 %v5151, %v5164
    %5166 = vdwg.mxu0
    %5167 = vmatpush.bf16.msra.mxu0 %v3644
    %5168 = vmatpush.bf16.msra.mxu0 %v3628
    %5169 = vmatpush.bf16.msra.mxu0 %v3612
    %5170 = vmatpush.bf16.msra.mxu0 %v3596
    %5171 = vmatpush.bf16.msra.mxu0 %v3580
    %5172 = vmatpush.bf16.msra.mxu0 %v3564
    %5173 = vmatpush.bf16.msra.mxu0 %v3548
    %5174 = vmatpush.bf16.msra.mxu0 %v3532
    %5175 = vmatmul.bf16.gmra.mxu0 %v96
    %v5176 = vpop.f32.mrf.mxu0
    %v5177 = vadd.f32 %v5163, %v5176
    %v5178 = vpop.f32.mrf.mxu0
    %v5179 = vadd.f32 %v5165, %v5178
    %5180 = vdwg.mxu0
    %5181 = vmatpush.bf16.msra.mxu0 %v3772
    %5182 = vmatpush.bf16.msra.mxu0 %v3756
    %5183 = vmatpush.bf16.msra.mxu0 %v3740
    %5184 = vmatpush.bf16.msra.mxu0 %v3724
    %5185 = vmatpush.bf16.msra.mxu0 %v3708
    %5186 = vmatpush.bf16.msra.mxu0 %v3692
    %5187 = vmatpush.bf16.msra.mxu0 %v3676
    %5188 = vmatpush.bf16.msra.mxu0 %v3660
    %5189 = vmatmul.bf16.gmra.mxu0 %v97
    %v5190 = vpop.f32.mrf.mxu0
    %v5191 = vadd.f32 %v5177, %v5190
    %v5192 = vpop.f32.mrf.mxu0
    %v5193 = vadd.f32 %v5179, %v5192
    %5194 = vdwg.mxu0
    %5195 = vmatpush.bf16.msra.mxu0 %v3900
    %5196 = vmatpush.bf16.msra.mxu0 %v3884
    %5197 = vmatpush.bf16.msra.mxu0 %v3868
    %5198 = vmatpush.bf16.msra.mxu0 %v3852
    %5199 = vmatpush.bf16.msra.mxu0 %v3836
    %5200 = vmatpush.bf16.msra.mxu0 %v3820
    %5201 = vmatpush.bf16.msra.mxu0 %v3804
    %5202 = vmatpush.bf16.msra.mxu0 %v3788
    %5203 = vmatmul.bf16.gmra.mxu0 %v98
    %v5204 = vpop.f32.mrf.mxu0
    %v5205 = vadd.f32 %v5191, %v5204
    %v5206 = vpop.f32.mrf.mxu0
    %v5207 = vadd.f32 %v5193, %v5206
    %5208 = vdwg.mxu0
    %5209 = vmatpush.bf16.msra.mxu0 %v4028
    %5210 = vmatpush.bf16.msra.mxu0 %v4012
    %5211 = vmatpush.bf16.msra.mxu0 %v3996
    %5212 = vmatpush.bf16.msra.mxu0 %v3980
    %5213 = vmatpush.bf16.msra.mxu0 %v3964
    %5214 = vmatpush.bf16.msra.mxu0 %v3948
    %5215 = vmatpush.bf16.msra.mxu0 %v3932
    %5216 = vmatpush.bf16.msra.mxu0 %v3916
    %5217 = vmatmul.bf16.gmra.mxu0 %v99
    %v5218 = vpop.f32.mrf.mxu0
    %v5219 = vadd.f32 %v5205, %v5218
    %v5220 = vpop.f32.mrf.mxu0
    %v5221 = vadd.f32 %v5207, %v5220
    %5222 = vdwg.mxu0
    %5223 = vmatpush.bf16.msra.mxu0 0
    %5224 = vmatpush.bf16.msra.mxu0 0
    %5225 = vmatpush.bf16.msra.mxu0 0
    %5226 = vmatpush.bf16.msra.mxu0 0
    %5227 = vmatpush.bf16.msra.mxu0 0
    %5228 = vmatpush.bf16.msra.mxu0 0
    %5229 = vmatpush.bf16.msra.mxu0 0
    %5230 = vmatpush.bf16.msra.mxu0 %v4044
    %5231 = vmatmul.bf16.gmra.mxu0 %v4843
    %v5232 = vpop.f32.mrf.mxu0
    %v5233 = vadd.f32 %v5219, %v5232
    %v5234 = vpop.f32.mrf.mxu0
    %v5235 = vadd.f32 %v5221, %v5234
    %5236 = vdwg.mxu0
    %5237 = vmatpush.bf16.msra.mxu0 %v3389
    %5238 = vmatpush.bf16.msra.mxu0 %v3373
    %5239 = vmatpush.bf16.msra.mxu0 %v3357
    %5240 = vmatpush.bf16.msra.mxu0 %v3341
    %5241 = vmatpush.bf16.msra.mxu0 %v3325
    %5242 = vmatpush.bf16.msra.mxu0 %v3309
    %5243 = vmatpush.bf16.msra.mxu0 %v3293
    %5244 = vmatpush.bf16.msra.mxu0 %v3277
    %5245 = vmatmul.bf16.gmra.mxu0 %v94
    %v5246 = vpop.f32.mrf.mxu0
    %v5247 = vadd.f32 %v893, %v5246
    %v5248 = vpop.f32.mrf.mxu0
    %v5249 = vadd.f32 %v893, %v5248
    %5250 = vdwg.mxu0
    %5251 = vmatpush.bf16.msra.mxu0 %v3517
    %5252 = vmatpush.bf16.msra.mxu0 %v3501
    %5253 = vmatpush.bf16.msra.mxu0 %v3485
    %5254 = vmatpush.bf16.msra.mxu0 %v3469
    %5255 = vmatpush.bf16.msra.mxu0 %v3453
    %5256 = vmatpush.bf16.msra.mxu0 %v3437
    %5257 = vmatpush.bf16.msra.mxu0 %v3421
    %5258 = vmatpush.bf16.msra.mxu0 %v3405
    %5259 = vmatmul.bf16.gmra.mxu0 %v95
    %v5260 = vpop.f32.mrf.mxu0
    %v5261 = vadd.f32 %v5247, %v5260
    %v5262 = vpop.f32.mrf.mxu0
    %v5263 = vadd.f32 %v5249, %v5262
    %5264 = vdwg.mxu0
    %5265 = vmatpush.bf16.msra.mxu0 %v3645
    %5266 = vmatpush.bf16.msra.mxu0 %v3629
    %5267 = vmatpush.bf16.msra.mxu0 %v3613
    %5268 = vmatpush.bf16.msra.mxu0 %v3597
    %5269 = vmatpush.bf16.msra.mxu0 %v3581
    %5270 = vmatpush.bf16.msra.mxu0 %v3565
    %5271 = vmatpush.bf16.msra.mxu0 %v3549
    %5272 = vmatpush.bf16.msra.mxu0 %v3533
    %5273 = vmatmul.bf16.gmra.mxu0 %v96
    %v5274 = vpop.f32.mrf.mxu0
    %v5275 = vadd.f32 %v5261, %v5274
    %v5276 = vpop.f32.mrf.mxu0
    %v5277 = vadd.f32 %v5263, %v5276
    %5278 = vdwg.mxu0
    %5279 = vmatpush.bf16.msra.mxu0 %v3773
    %5280 = vmatpush.bf16.msra.mxu0 %v3757
    %5281 = vmatpush.bf16.msra.mxu0 %v3741
    %5282 = vmatpush.bf16.msra.mxu0 %v3725
    %5283 = vmatpush.bf16.msra.mxu0 %v3709
    %5284 = vmatpush.bf16.msra.mxu0 %v3693
    %5285 = vmatpush.bf16.msra.mxu0 %v3677
    %5286 = vmatpush.bf16.msra.mxu0 %v3661
    %5287 = vmatmul.bf16.gmra.mxu0 %v97
    %v5288 = vpop.f32.mrf.mxu0
    %v5289 = vadd.f32 %v5275, %v5288
    %v5290 = vpop.f32.mrf.mxu0
    %v5291 = vadd.f32 %v5277, %v5290
    %5292 = vdwg.mxu0
    %5293 = vmatpush.bf16.msra.mxu0 %v3901
    %5294 = vmatpush.bf16.msra.mxu0 %v3885
    %5295 = vmatpush.bf16.msra.mxu0 %v3869
    %5296 = vmatpush.bf16.msra.mxu0 %v3853
    %5297 = vmatpush.bf16.msra.mxu0 %v3837
    %5298 = vmatpush.bf16.msra.mxu0 %v3821
    %5299 = vmatpush.bf16.msra.mxu0 %v3805
    %5300 = vmatpush.bf16.msra.mxu0 %v3789
    %5301 = vmatmul.bf16.gmra.mxu0 %v98
    %v5302 = vpop.f32.mrf.mxu0
    %v5303 = vadd.f32 %v5289, %v5302
    %v5304 = vpop.f32.mrf.mxu0
    %v5305 = vadd.f32 %v5291, %v5304
    %5306 = vdwg.mxu0
    %5307 = vmatpush.bf16.msra.mxu0 %v4029
    %5308 = vmatpush.bf16.msra.mxu0 %v4013
    %5309 = vmatpush.bf16.msra.mxu0 %v3997
    %5310 = vmatpush.bf16.msra.mxu0 %v3981
    %5311 = vmatpush.bf16.msra.mxu0 %v3965
    %5312 = vmatpush.bf16.msra.mxu0 %v3949
    %5313 = vmatpush.bf16.msra.mxu0 %v3933
    %5314 = vmatpush.bf16.msra.mxu0 %v3917
    %5315 = vmatmul.bf16.gmra.mxu0 %v99
    %v5316 = vpop.f32.mrf.mxu0
    %v5317 = vadd.f32 %v5303, %v5316
    %v5318 = vpop.f32.mrf.mxu0
    %v5319 = vadd.f32 %v5305, %v5318
    %5320 = vdwg.mxu0
    %5321 = vmatpush.bf16.msra.mxu0 0
    %5322 = vmatpush.bf16.msra.mxu0 0
    %5323 = vmatpush.bf16.msra.mxu0 0
    %5324 = vmatpush.bf16.msra.mxu0 0
    %5325 = vmatpush.bf16.msra.mxu0 0
    %5326 = vmatpush.bf16.msra.mxu0 0
    %5327 = vmatpush.bf16.msra.mxu0 0
    %5328 = vmatpush.bf16.msra.mxu0 %v4045
    %5329 = vmatmul.bf16.gmra.mxu0 %v4843
    %v5330 = vpop.f32.mrf.mxu0
    %v5331 = vadd.f32 %v5317, %v5330
    %v5332 = vpop.f32.mrf.mxu0
    %v5333 = vadd.f32 %v5319, %v5332
    %5334 = vdwg.mxu0
    %5335 = vmatpush.bf16.msra.mxu0 %v3390
    %5336 = vmatpush.bf16.msra.mxu0 %v3374
    %5337 = vmatpush.bf16.msra.mxu0 %v3358
    %5338 = vmatpush.bf16.msra.mxu0 %v3342
    %5339 = vmatpush.bf16.msra.mxu0 %v3326
    %5340 = vmatpush.bf16.msra.mxu0 %v3310
    %5341 = vmatpush.bf16.msra.mxu0 %v3294
    %5342 = vmatpush.bf16.msra.mxu0 %v3278
    %5343 = vmatmul.bf16.gmra.mxu0 %v94
    %v5344 = vpop.f32.mrf.mxu0
    %v5345 = vadd.f32 %v894, %v5344
    %v5346 = vpop.f32.mrf.mxu0
    %v5347 = vadd.f32 %v894, %v5346
    %5348 = vdwg.mxu0
    %5349 = vmatpush.bf16.msra.mxu0 %v3518
    %5350 = vmatpush.bf16.msra.mxu0 %v3502
    %5351 = vmatpush.bf16.msra.mxu0 %v3486
    %5352 = vmatpush.bf16.msra.mxu0 %v3470
    %5353 = vmatpush.bf16.msra.mxu0 %v3454
    %5354 = vmatpush.bf16.msra.mxu0 %v3438
    %5355 = vmatpush.bf16.msra.mxu0 %v3422
    %5356 = vmatpush.bf16.msra.mxu0 %v3406
    %5357 = vmatmul.bf16.gmra.mxu0 %v95
    %v5358 = vpop.f32.mrf.mxu0
    %v5359 = vadd.f32 %v5345, %v5358
    %v5360 = vpop.f32.mrf.mxu0
    %v5361 = vadd.f32 %v5347, %v5360
    %5362 = vdwg.mxu0
    %5363 = vmatpush.bf16.msra.mxu0 %v3646
    %5364 = vmatpush.bf16.msra.mxu0 %v3630
    %5365 = vmatpush.bf16.msra.mxu0 %v3614
    %5366 = vmatpush.bf16.msra.mxu0 %v3598
    %5367 = vmatpush.bf16.msra.mxu0 %v3582
    %5368 = vmatpush.bf16.msra.mxu0 %v3566
    %5369 = vmatpush.bf16.msra.mxu0 %v3550
    %5370 = vmatpush.bf16.msra.mxu0 %v3534
    %5371 = vmatmul.bf16.gmra.mxu0 %v96
    %v5372 = vpop.f32.mrf.mxu0
    %v5373 = vadd.f32 %v5359, %v5372
    %v5374 = vpop.f32.mrf.mxu0
    %v5375 = vadd.f32 %v5361, %v5374
    %5376 = vdwg.mxu0
    %5377 = vmatpush.bf16.msra.mxu0 %v3774
    %5378 = vmatpush.bf16.msra.mxu0 %v3758
    %5379 = vmatpush.bf16.msra.mxu0 %v3742
    %5380 = vmatpush.bf16.msra.mxu0 %v3726
    %5381 = vmatpush.bf16.msra.mxu0 %v3710
    %5382 = vmatpush.bf16.msra.mxu0 %v3694
    %5383 = vmatpush.bf16.msra.mxu0 %v3678
    %5384 = vmatpush.bf16.msra.mxu0 %v3662
    %5385 = vmatmul.bf16.gmra.mxu0 %v97
    %v5386 = vpop.f32.mrf.mxu0
    %v5387 = vadd.f32 %v5373, %v5386
    %v5388 = vpop.f32.mrf.mxu0
    %v5389 = vadd.f32 %v5375, %v5388
    %5390 = vdwg.mxu0
    %5391 = vmatpush.bf16.msra.mxu0 %v3902
    %5392 = vmatpush.bf16.msra.mxu0 %v3886
    %5393 = vmatpush.bf16.msra.mxu0 %v3870
    %5394 = vmatpush.bf16.msra.mxu0 %v3854
    %5395 = vmatpush.bf16.msra.mxu0 %v3838
    %5396 = vmatpush.bf16.msra.mxu0 %v3822
    %5397 = vmatpush.bf16.msra.mxu0 %v3806
    %5398 = vmatpush.bf16.msra.mxu0 %v3790
    %5399 = vmatmul.bf16.gmra.mxu0 %v98
    %v5400 = vpop.f32.mrf.mxu0
    %v5401 = vadd.f32 %v5387, %v5400
    %v5402 = vpop.f32.mrf.mxu0
    %v5403 = vadd.f32 %v5389, %v5402
    %5404 = vdwg.mxu0
    %5405 = vmatpush.bf16.msra.mxu0 %v4030
    %5406 = vmatpush.bf16.msra.mxu0 %v4014
    %5407 = vmatpush.bf16.msra.mxu0 %v3998
    %5408 = vmatpush.bf16.msra.mxu0 %v3982
    %5409 = vmatpush.bf16.msra.mxu0 %v3966
    %5410 = vmatpush.bf16.msra.mxu0 %v3950
    %5411 = vmatpush.bf16.msra.mxu0 %v3934
    %5412 = vmatpush.bf16.msra.mxu0 %v3918
    %5413 = vmatmul.bf16.gmra.mxu0 %v99
    %v5414 = vpop.f32.mrf.mxu0
    %v5415 = vadd.f32 %v5401, %v5414
    %v5416 = vpop.f32.mrf.mxu0
    %v5417 = vadd.f32 %v5403, %v5416
    %5418 = vdwg.mxu0
    %5419 = vmatpush.bf16.msra.mxu0 0
    %5420 = vmatpush.bf16.msra.mxu0 0
    %5421 = vmatpush.bf16.msra.mxu0 0
    %5422 = vmatpush.bf16.msra.mxu0 0
    %5423 = vmatpush.bf16.msra.mxu0 0
    %5424 = vmatpush.bf16.msra.mxu0 0
    %5425 = vmatpush.bf16.msra.mxu0 0
    %5426 = vmatpush.bf16.msra.mxu0 %v4046
    %5427 = vmatmul.bf16.gmra.mxu0 %v4843
    %v5428 = vpop.f32.mrf.mxu0
    %v5429 = vadd.f32 %v5415, %v5428
    %v5430 = vpop.f32.mrf.mxu0
    %v5431 = vadd.f32 %v5417, %v5430
    %5432 = vdwg.mxu0
    %5433 = vmatpush.bf16.msra.mxu0 %v3391
    %5434 = vmatpush.bf16.msra.mxu0 %v3375
    %5435 = vmatpush.bf16.msra.mxu0 %v3359
    %5436 = vmatpush.bf16.msra.mxu0 %v3343
    %5437 = vmatpush.bf16.msra.mxu0 %v3327
    %5438 = vmatpush.bf16.msra.mxu0 %v3311
    %5439 = vmatpush.bf16.msra.mxu0 %v3295
    %5440 = vmatpush.bf16.msra.mxu0 %v3279
    %5441 = vmatmul.bf16.gmra.mxu0 %v94
    %v5442 = vpop.f32.mrf.mxu0
    %v5443 = vadd.f32 %v895, %v5442
    %v5444 = vpop.f32.mrf.mxu0
    %v5445 = vadd.f32 %v895, %v5444
    %5446 = vdwg.mxu0
    %5447 = vmatpush.bf16.msra.mxu0 %v3519
    %5448 = vmatpush.bf16.msra.mxu0 %v3503
    %5449 = vmatpush.bf16.msra.mxu0 %v3487
    %5450 = vmatpush.bf16.msra.mxu0 %v3471
    %5451 = vmatpush.bf16.msra.mxu0 %v3455
    %5452 = vmatpush.bf16.msra.mxu0 %v3439
    %5453 = vmatpush.bf16.msra.mxu0 %v3423
    %5454 = vmatpush.bf16.msra.mxu0 %v3407
    %5455 = vmatmul.bf16.gmra.mxu0 %v95
    %v5456 = vpop.f32.mrf.mxu0
    %v5457 = vadd.f32 %v5443, %v5456
    %v5458 = vpop.f32.mrf.mxu0
    %v5459 = vadd.f32 %v5445, %v5458
    %5460 = vdwg.mxu0
    %5461 = vmatpush.bf16.msra.mxu0 %v3647
    %5462 = vmatpush.bf16.msra.mxu0 %v3631
    %5463 = vmatpush.bf16.msra.mxu0 %v3615
    %5464 = vmatpush.bf16.msra.mxu0 %v3599
    %5465 = vmatpush.bf16.msra.mxu0 %v3583
    %5466 = vmatpush.bf16.msra.mxu0 %v3567
    %5467 = vmatpush.bf16.msra.mxu0 %v3551
    %5468 = vmatpush.bf16.msra.mxu0 %v3535
    %5469 = vmatmul.bf16.gmra.mxu0 %v96
    %v5470 = vpop.f32.mrf.mxu0
    %v5471 = vadd.f32 %v5457, %v5470
    %v5472 = vpop.f32.mrf.mxu0
    %v5473 = vadd.f32 %v5459, %v5472
    %5474 = vdwg.mxu0
    %5475 = vmatpush.bf16.msra.mxu0 %v3775
    %5476 = vmatpush.bf16.msra.mxu0 %v3759
    %5477 = vmatpush.bf16.msra.mxu0 %v3743
    %5478 = vmatpush.bf16.msra.mxu0 %v3727
    %5479 = vmatpush.bf16.msra.mxu0 %v3711
    %5480 = vmatpush.bf16.msra.mxu0 %v3695
    %5481 = vmatpush.bf16.msra.mxu0 %v3679
    %5482 = vmatpush.bf16.msra.mxu0 %v3663
    %5483 = vmatmul.bf16.gmra.mxu0 %v97
    %v5484 = vpop.f32.mrf.mxu0
    %v5485 = vadd.f32 %v5471, %v5484
    %v5486 = vpop.f32.mrf.mxu0
    %v5487 = vadd.f32 %v5473, %v5486
    %5488 = vdwg.mxu0
    %5489 = vmatpush.bf16.msra.mxu0 %v3903
    %5490 = vmatpush.bf16.msra.mxu0 %v3887
    %5491 = vmatpush.bf16.msra.mxu0 %v3871
    %5492 = vmatpush.bf16.msra.mxu0 %v3855
    %5493 = vmatpush.bf16.msra.mxu0 %v3839
    %5494 = vmatpush.bf16.msra.mxu0 %v3823
    %5495 = vmatpush.bf16.msra.mxu0 %v3807
    %5496 = vmatpush.bf16.msra.mxu0 %v3791
    %5497 = vmatmul.bf16.gmra.mxu0 %v98
    %v5498 = vpop.f32.mrf.mxu0
    %v5499 = vadd.f32 %v5485, %v5498
    %v5500 = vpop.f32.mrf.mxu0
    %v5501 = vadd.f32 %v5487, %v5500
    %5502 = vdwg.mxu0
    %5503 = vmatpush.bf16.msra.mxu0 %v4031
    %5504 = vmatpush.bf16.msra.mxu0 %v4015
    %5505 = vmatpush.bf16.msra.mxu0 %v3999
    %5506 = vmatpush.bf16.msra.mxu0 %v3983
    %5507 = vmatpush.bf16.msra.mxu0 %v3967
    %5508 = vmatpush.bf16.msra.mxu0 %v3951
    %5509 = vmatpush.bf16.msra.mxu0 %v3935
    %5510 = vmatpush.bf16.msra.mxu0 %v3919
    %5511 = vmatmul.bf16.gmra.mxu0 %v99
    %v5512 = vpop.f32.mrf.mxu0
    %v5513 = vadd.f32 %v5499, %v5512
    %v5514 = vpop.f32.mrf.mxu0
    %v5515 = vadd.f32 %v5501, %v5514
    %5516 = vdwg.mxu0
    %5517 = vmatpush.bf16.msra.mxu0 0
    %5518 = vmatpush.bf16.msra.mxu0 0
    %5519 = vmatpush.bf16.msra.mxu0 0
    %5520 = vmatpush.bf16.msra.mxu0 0
    %5521 = vmatpush.bf16.msra.mxu0 0
    %5522 = vmatpush.bf16.msra.mxu0 0
    %5523 = vmatpush.bf16.msra.mxu0 0
    %5524 = vmatpush.bf16.msra.mxu0 %v4047
    %5525 = vmatmul.bf16.gmra.mxu0 %v4843
    %v5526 = vpop.f32.mrf.mxu0
    %v5527 = vadd.f32 %v5513, %v5526
    %v5528 = vpop.f32.mrf.mxu0
    %v5529 = vadd.f32 %v5515, %v5528
    %5530 = vdwg.mxu0
    %5531 = vmatpush.bf16.msra.mxu0 %v3392
    %5532 = vmatpush.bf16.msra.mxu0 %v3376
    %5533 = vmatpush.bf16.msra.mxu0 %v3360
    %5534 = vmatpush.bf16.msra.mxu0 %v3344
    %5535 = vmatpush.bf16.msra.mxu0 %v3328
    %5536 = vmatpush.bf16.msra.mxu0 %v3312
    %5537 = vmatpush.bf16.msra.mxu0 %v3296
    %5538 = vmatpush.bf16.msra.mxu0 %v3280
    %5539 = vmatmul.bf16.gmra.mxu0 %v94
    %v5540 = vpop.f32.mrf.mxu0
    %v5541 = vadd.f32 %v896, %v5540
    %v5542 = vpop.f32.mrf.mxu0
    %v5543 = vadd.f32 %v896, %v5542
    %5544 = vdwg.mxu0
    %5545 = vmatpush.bf16.msra.mxu0 %v3520
    %5546 = vmatpush.bf16.msra.mxu0 %v3504
    %5547 = vmatpush.bf16.msra.mxu0 %v3488
    %5548 = vmatpush.bf16.msra.mxu0 %v3472
    %5549 = vmatpush.bf16.msra.mxu0 %v3456
    %5550 = vmatpush.bf16.msra.mxu0 %v3440
    %5551 = vmatpush.bf16.msra.mxu0 %v3424
    %5552 = vmatpush.bf16.msra.mxu0 %v3408
    %5553 = vmatmul.bf16.gmra.mxu0 %v95
    %v5554 = vpop.f32.mrf.mxu0
    %v5555 = vadd.f32 %v5541, %v5554
    %v5556 = vpop.f32.mrf.mxu0
    %v5557 = vadd.f32 %v5543, %v5556
    %5558 = vdwg.mxu0
    %5559 = vmatpush.bf16.msra.mxu0 %v3648
    %5560 = vmatpush.bf16.msra.mxu0 %v3632
    %5561 = vmatpush.bf16.msra.mxu0 %v3616
    %5562 = vmatpush.bf16.msra.mxu0 %v3600
    %5563 = vmatpush.bf16.msra.mxu0 %v3584
    %5564 = vmatpush.bf16.msra.mxu0 %v3568
    %5565 = vmatpush.bf16.msra.mxu0 %v3552
    %5566 = vmatpush.bf16.msra.mxu0 %v3536
    %5567 = vmatmul.bf16.gmra.mxu0 %v96
    %v5568 = vpop.f32.mrf.mxu0
    %v5569 = vadd.f32 %v5555, %v5568
    %v5570 = vpop.f32.mrf.mxu0
    %v5571 = vadd.f32 %v5557, %v5570
    %5572 = vdwg.mxu0
    %5573 = vmatpush.bf16.msra.mxu0 %v3776
    %5574 = vmatpush.bf16.msra.mxu0 %v3760
    %5575 = vmatpush.bf16.msra.mxu0 %v3744
    %5576 = vmatpush.bf16.msra.mxu0 %v3728
    %5577 = vmatpush.bf16.msra.mxu0 %v3712
    %5578 = vmatpush.bf16.msra.mxu0 %v3696
    %5579 = vmatpush.bf16.msra.mxu0 %v3680
    %5580 = vmatpush.bf16.msra.mxu0 %v3664
    %5581 = vmatmul.bf16.gmra.mxu0 %v97
    %v5582 = vpop.f32.mrf.mxu0
    %v5583 = vadd.f32 %v5569, %v5582
    %v5584 = vpop.f32.mrf.mxu0
    %v5585 = vadd.f32 %v5571, %v5584
    %5586 = vdwg.mxu0
    %5587 = vmatpush.bf16.msra.mxu0 %v3904
    %5588 = vmatpush.bf16.msra.mxu0 %v3888
    %5589 = vmatpush.bf16.msra.mxu0 %v3872
    %5590 = vmatpush.bf16.msra.mxu0 %v3856
    %5591 = vmatpush.bf16.msra.mxu0 %v3840
    %5592 = vmatpush.bf16.msra.mxu0 %v3824
    %5593 = vmatpush.bf16.msra.mxu0 %v3808
    %5594 = vmatpush.bf16.msra.mxu0 %v3792
    %5595 = vmatmul.bf16.gmra.mxu0 %v98
    %v5596 = vpop.f32.mrf.mxu0
    %v5597 = vadd.f32 %v5583, %v5596
    %v5598 = vpop.f32.mrf.mxu0
    %v5599 = vadd.f32 %v5585, %v5598
    %5600 = vdwg.mxu0
    %5601 = vmatpush.bf16.msra.mxu0 %v4032
    %5602 = vmatpush.bf16.msra.mxu0 %v4016
    %5603 = vmatpush.bf16.msra.mxu0 %v4000
    %5604 = vmatpush.bf16.msra.mxu0 %v3984
    %5605 = vmatpush.bf16.msra.mxu0 %v3968
    %5606 = vmatpush.bf16.msra.mxu0 %v3952
    %5607 = vmatpush.bf16.msra.mxu0 %v3936
    %5608 = vmatpush.bf16.msra.mxu0 %v3920
    %5609 = vmatmul.bf16.gmra.mxu0 %v99
    %v5610 = vpop.f32.mrf.mxu0
    %v5611 = vadd.f32 %v5597, %v5610
    %v5612 = vpop.f32.mrf.mxu0
    %v5613 = vadd.f32 %v5599, %v5612
    %5614 = vdwg.mxu0
    %5615 = vmatpush.bf16.msra.mxu0 0
    %5616 = vmatpush.bf16.msra.mxu0 0
    %5617 = vmatpush.bf16.msra.mxu0 0
    %5618 = vmatpush.bf16.msra.mxu0 0
    %5619 = vmatpush.bf16.msra.mxu0 0
    %5620 = vmatpush.bf16.msra.mxu0 0
    %5621 = vmatpush.bf16.msra.mxu0 0
    %5622 = vmatpush.bf16.msra.mxu0 %v4048
    %5623 = vmatmul.bf16.gmra.mxu0 %v4843
    %v5624 = vpop.f32.mrf.mxu0
    %v5625 = vadd.f32 %v5611, %v5624
    %v5626 = vpop.f32.mrf.mxu0
    %v5627 = vadd.f32 %v5613, %v5626
    %5628 = vdwg.mxu0
    %5629 = vmatpush.bf16.msra.mxu0 %v3393
    %5630 = vmatpush.bf16.msra.mxu0 %v3377
    %5631 = vmatpush.bf16.msra.mxu0 %v3361
    %5632 = vmatpush.bf16.msra.mxu0 %v3345
    %5633 = vmatpush.bf16.msra.mxu0 %v3329
    %5634 = vmatpush.bf16.msra.mxu0 %v3313
    %5635 = vmatpush.bf16.msra.mxu0 %v3297
    %5636 = vmatpush.bf16.msra.mxu0 %v3281
    %5637 = vmatmul.bf16.gmra.mxu0 %v94
    %v5638 = vpop.f32.mrf.mxu0
    %v5639 = vadd.f32 %v897, %v5638
    %v5640 = vpop.f32.mrf.mxu0
    %v5641 = vadd.f32 %v897, %v5640
    %5642 = vdwg.mxu0
    %5643 = vmatpush.bf16.msra.mxu0 %v3521
    %5644 = vmatpush.bf16.msra.mxu0 %v3505
    %5645 = vmatpush.bf16.msra.mxu0 %v3489
    %5646 = vmatpush.bf16.msra.mxu0 %v3473
    %5647 = vmatpush.bf16.msra.mxu0 %v3457
    %5648 = vmatpush.bf16.msra.mxu0 %v3441
    %5649 = vmatpush.bf16.msra.mxu0 %v3425
    %5650 = vmatpush.bf16.msra.mxu0 %v3409
    %5651 = vmatmul.bf16.gmra.mxu0 %v95
    %v5652 = vpop.f32.mrf.mxu0
    %v5653 = vadd.f32 %v5639, %v5652
    %v5654 = vpop.f32.mrf.mxu0
    %v5655 = vadd.f32 %v5641, %v5654
    %5656 = vdwg.mxu0
    %5657 = vmatpush.bf16.msra.mxu0 %v3649
    %5658 = vmatpush.bf16.msra.mxu0 %v3633
    %5659 = vmatpush.bf16.msra.mxu0 %v3617
    %5660 = vmatpush.bf16.msra.mxu0 %v3601
    %5661 = vmatpush.bf16.msra.mxu0 %v3585
    %5662 = vmatpush.bf16.msra.mxu0 %v3569
    %5663 = vmatpush.bf16.msra.mxu0 %v3553
    %5664 = vmatpush.bf16.msra.mxu0 %v3537
    %5665 = vmatmul.bf16.gmra.mxu0 %v96
    %v5666 = vpop.f32.mrf.mxu0
    %v5667 = vadd.f32 %v5653, %v5666
    %v5668 = vpop.f32.mrf.mxu0
    %v5669 = vadd.f32 %v5655, %v5668
    %5670 = vdwg.mxu0
    %5671 = vmatpush.bf16.msra.mxu0 %v3777
    %5672 = vmatpush.bf16.msra.mxu0 %v3761
    %5673 = vmatpush.bf16.msra.mxu0 %v3745
    %5674 = vmatpush.bf16.msra.mxu0 %v3729
    %5675 = vmatpush.bf16.msra.mxu0 %v3713
    %5676 = vmatpush.bf16.msra.mxu0 %v3697
    %5677 = vmatpush.bf16.msra.mxu0 %v3681
    %5678 = vmatpush.bf16.msra.mxu0 %v3665
    %5679 = vmatmul.bf16.gmra.mxu0 %v97
    %v5680 = vpop.f32.mrf.mxu0
    %v5681 = vadd.f32 %v5667, %v5680
    %v5682 = vpop.f32.mrf.mxu0
    %v5683 = vadd.f32 %v5669, %v5682
    %5684 = vdwg.mxu0
    %5685 = vmatpush.bf16.msra.mxu0 %v3905
    %5686 = vmatpush.bf16.msra.mxu0 %v3889
    %5687 = vmatpush.bf16.msra.mxu0 %v3873
    %5688 = vmatpush.bf16.msra.mxu0 %v3857
    %5689 = vmatpush.bf16.msra.mxu0 %v3841
    %5690 = vmatpush.bf16.msra.mxu0 %v3825
    %5691 = vmatpush.bf16.msra.mxu0 %v3809
    %5692 = vmatpush.bf16.msra.mxu0 %v3793
    %5693 = vmatmul.bf16.gmra.mxu0 %v98
    %v5694 = vpop.f32.mrf.mxu0
    %v5695 = vadd.f32 %v5681, %v5694
    %v5696 = vpop.f32.mrf.mxu0
    %v5697 = vadd.f32 %v5683, %v5696
    %5698 = vdwg.mxu0
    %5699 = vmatpush.bf16.msra.mxu0 %v4033
    %5700 = vmatpush.bf16.msra.mxu0 %v4017
    %5701 = vmatpush.bf16.msra.mxu0 %v4001
    %5702 = vmatpush.bf16.msra.mxu0 %v3985
    %5703 = vmatpush.bf16.msra.mxu0 %v3969
    %5704 = vmatpush.bf16.msra.mxu0 %v3953
    %5705 = vmatpush.bf16.msra.mxu0 %v3937
    %5706 = vmatpush.bf16.msra.mxu0 %v3921
    %5707 = vmatmul.bf16.gmra.mxu0 %v99
    %v5708 = vpop.f32.mrf.mxu0
    %v5709 = vadd.f32 %v5695, %v5708
    %v5710 = vpop.f32.mrf.mxu0
    %v5711 = vadd.f32 %v5697, %v5710
    %5712 = vdwg.mxu0
    %5713 = vmatpush.bf16.msra.mxu0 0
    %5714 = vmatpush.bf16.msra.mxu0 0
    %5715 = vmatpush.bf16.msra.mxu0 0
    %5716 = vmatpush.bf16.msra.mxu0 0
    %5717 = vmatpush.bf16.msra.mxu0 0
    %5718 = vmatpush.bf16.msra.mxu0 0
    %5719 = vmatpush.bf16.msra.mxu0 0
    %5720 = vmatpush.bf16.msra.mxu0 %v4049
    %5721 = vmatmul.bf16.gmra.mxu0 %v4843
    %v5722 = vpop.f32.mrf.mxu0
    %v5723 = vadd.f32 %v5709, %v5722
    %v5724 = vpop.f32.mrf.mxu0
    %v5725 = vadd.f32 %v5711, %v5724
    %5726 = vdwg.mxu0
    %5727 = vmatpush.bf16.msra.mxu0 %v3394
    %5728 = vmatpush.bf16.msra.mxu0 %v3378
    %5729 = vmatpush.bf16.msra.mxu0 %v3362
    %5730 = vmatpush.bf16.msra.mxu0 %v3346
    %5731 = vmatpush.bf16.msra.mxu0 %v3330
    %5732 = vmatpush.bf16.msra.mxu0 %v3314
    %5733 = vmatpush.bf16.msra.mxu0 %v3298
    %5734 = vmatpush.bf16.msra.mxu0 %v3282
    %5735 = vmatmul.bf16.gmra.mxu0 %v94
    %v5736 = vpop.f32.mrf.mxu0
    %v5737 = vadd.f32 %v898, %v5736
    %v5738 = vpop.f32.mrf.mxu0
    %v5739 = vadd.f32 %v898, %v5738
    %5740 = vdwg.mxu0
    %5741 = vmatpush.bf16.msra.mxu0 %v3522
    %5742 = vmatpush.bf16.msra.mxu0 %v3506
    %5743 = vmatpush.bf16.msra.mxu0 %v3490
    %5744 = vmatpush.bf16.msra.mxu0 %v3474
    %5745 = vmatpush.bf16.msra.mxu0 %v3458
    %5746 = vmatpush.bf16.msra.mxu0 %v3442
    %5747 = vmatpush.bf16.msra.mxu0 %v3426
    %5748 = vmatpush.bf16.msra.mxu0 %v3410
    %5749 = vmatmul.bf16.gmra.mxu0 %v95
    %v5750 = vpop.f32.mrf.mxu0
    %v5751 = vadd.f32 %v5737, %v5750
    %v5752 = vpop.f32.mrf.mxu0
    %v5753 = vadd.f32 %v5739, %v5752
    %5754 = vdwg.mxu0
    %5755 = vmatpush.bf16.msra.mxu0 %v3650
    %5756 = vmatpush.bf16.msra.mxu0 %v3634
    %5757 = vmatpush.bf16.msra.mxu0 %v3618
    %5758 = vmatpush.bf16.msra.mxu0 %v3602
    %5759 = vmatpush.bf16.msra.mxu0 %v3586
    %5760 = vmatpush.bf16.msra.mxu0 %v3570
    %5761 = vmatpush.bf16.msra.mxu0 %v3554
    %5762 = vmatpush.bf16.msra.mxu0 %v3538
    %5763 = vmatmul.bf16.gmra.mxu0 %v96
    %v5764 = vpop.f32.mrf.mxu0
    %v5765 = vadd.f32 %v5751, %v5764
    %v5766 = vpop.f32.mrf.mxu0
    %v5767 = vadd.f32 %v5753, %v5766
    %5768 = vdwg.mxu0
    %5769 = vmatpush.bf16.msra.mxu0 %v3778
    %5770 = vmatpush.bf16.msra.mxu0 %v3762
    %5771 = vmatpush.bf16.msra.mxu0 %v3746
    %5772 = vmatpush.bf16.msra.mxu0 %v3730
    %5773 = vmatpush.bf16.msra.mxu0 %v3714
    %5774 = vmatpush.bf16.msra.mxu0 %v3698
    %5775 = vmatpush.bf16.msra.mxu0 %v3682
    %5776 = vmatpush.bf16.msra.mxu0 %v3666
    %5777 = vmatmul.bf16.gmra.mxu0 %v97
    %v5778 = vpop.f32.mrf.mxu0
    %v5779 = vadd.f32 %v5765, %v5778
    %v5780 = vpop.f32.mrf.mxu0
    %v5781 = vadd.f32 %v5767, %v5780
    %5782 = vdwg.mxu0
    %5783 = vmatpush.bf16.msra.mxu0 %v3906
    %5784 = vmatpush.bf16.msra.mxu0 %v3890
    %5785 = vmatpush.bf16.msra.mxu0 %v3874
    %5786 = vmatpush.bf16.msra.mxu0 %v3858
    %5787 = vmatpush.bf16.msra.mxu0 %v3842
    %5788 = vmatpush.bf16.msra.mxu0 %v3826
    %5789 = vmatpush.bf16.msra.mxu0 %v3810
    %5790 = vmatpush.bf16.msra.mxu0 %v3794
    %5791 = vmatmul.bf16.gmra.mxu0 %v98
    %v5792 = vpop.f32.mrf.mxu0
    %v5793 = vadd.f32 %v5779, %v5792
    %v5794 = vpop.f32.mrf.mxu0
    %v5795 = vadd.f32 %v5781, %v5794
    %5796 = vdwg.mxu0
    %5797 = vmatpush.bf16.msra.mxu0 %v4034
    %5798 = vmatpush.bf16.msra.mxu0 %v4018
    %5799 = vmatpush.bf16.msra.mxu0 %v4002
    %5800 = vmatpush.bf16.msra.mxu0 %v3986
    %5801 = vmatpush.bf16.msra.mxu0 %v3970
    %5802 = vmatpush.bf16.msra.mxu0 %v3954
    %5803 = vmatpush.bf16.msra.mxu0 %v3938
    %5804 = vmatpush.bf16.msra.mxu0 %v3922
    %5805 = vmatmul.bf16.gmra.mxu0 %v99
    %v5806 = vpop.f32.mrf.mxu0
    %v5807 = vadd.f32 %v5793, %v5806
    %v5808 = vpop.f32.mrf.mxu0
    %v5809 = vadd.f32 %v5795, %v5808
    %5810 = vdwg.mxu0
    %5811 = vmatpush.bf16.msra.mxu0 0
    %5812 = vmatpush.bf16.msra.mxu0 0
    %5813 = vmatpush.bf16.msra.mxu0 0
    %5814 = vmatpush.bf16.msra.mxu0 0
    %5815 = vmatpush.bf16.msra.mxu0 0
    %5816 = vmatpush.bf16.msra.mxu0 0
    %5817 = vmatpush.bf16.msra.mxu0 0
    %5818 = vmatpush.bf16.msra.mxu0 %v4050
    %5819 = vmatmul.bf16.gmra.mxu0 %v4843
    %v5820 = vpop.f32.mrf.mxu0
    %v5821 = vadd.f32 %v5807, %v5820
    %v5822 = vpop.f32.mrf.mxu0
    %v5823 = vadd.f32 %v5809, %v5822
    %5824 = vdwg.mxu0
    %5825 = vmatpush.bf16.msra.mxu0 %v3395
    %5826 = vmatpush.bf16.msra.mxu0 %v3379
    %5827 = vmatpush.bf16.msra.mxu0 %v3363
    %5828 = vmatpush.bf16.msra.mxu0 %v3347
    %5829 = vmatpush.bf16.msra.mxu0 %v3331
    %5830 = vmatpush.bf16.msra.mxu0 %v3315
    %5831 = vmatpush.bf16.msra.mxu0 %v3299
    %5832 = vmatpush.bf16.msra.mxu0 %v3283
    %5833 = vmatmul.bf16.gmra.mxu0 %v94
    %v5834 = vpop.f32.mrf.mxu0
    %v5835 = vadd.f32 %v899, %v5834
    %v5836 = vpop.f32.mrf.mxu0
    %v5837 = vadd.f32 %v899, %v5836
    %5838 = vdwg.mxu0
    %5839 = vmatpush.bf16.msra.mxu0 %v3523
    %5840 = vmatpush.bf16.msra.mxu0 %v3507
    %5841 = vmatpush.bf16.msra.mxu0 %v3491
    %5842 = vmatpush.bf16.msra.mxu0 %v3475
    %5843 = vmatpush.bf16.msra.mxu0 %v3459
    %5844 = vmatpush.bf16.msra.mxu0 %v3443
    %5845 = vmatpush.bf16.msra.mxu0 %v3427
    %5846 = vmatpush.bf16.msra.mxu0 %v3411
    %5847 = vmatmul.bf16.gmra.mxu0 %v95
    %v5848 = vpop.f32.mrf.mxu0
    %v5849 = vadd.f32 %v5835, %v5848
    %v5850 = vpop.f32.mrf.mxu0
    %v5851 = vadd.f32 %v5837, %v5850
    %5852 = vdwg.mxu0
    %5853 = vmatpush.bf16.msra.mxu0 %v3651
    %5854 = vmatpush.bf16.msra.mxu0 %v3635
    %5855 = vmatpush.bf16.msra.mxu0 %v3619
    %5856 = vmatpush.bf16.msra.mxu0 %v3603
    %5857 = vmatpush.bf16.msra.mxu0 %v3587
    %5858 = vmatpush.bf16.msra.mxu0 %v3571
    %5859 = vmatpush.bf16.msra.mxu0 %v3555
    %5860 = vmatpush.bf16.msra.mxu0 %v3539
    %5861 = vmatmul.bf16.gmra.mxu0 %v96
    %v5862 = vpop.f32.mrf.mxu0
    %v5863 = vadd.f32 %v5849, %v5862
    %v5864 = vpop.f32.mrf.mxu0
    %v5865 = vadd.f32 %v5851, %v5864
    %5866 = vdwg.mxu0
    %5867 = vmatpush.bf16.msra.mxu0 %v3779
    %5868 = vmatpush.bf16.msra.mxu0 %v3763
    %5869 = vmatpush.bf16.msra.mxu0 %v3747
    %5870 = vmatpush.bf16.msra.mxu0 %v3731
    %5871 = vmatpush.bf16.msra.mxu0 %v3715
    %5872 = vmatpush.bf16.msra.mxu0 %v3699
    %5873 = vmatpush.bf16.msra.mxu0 %v3683
    %5874 = vmatpush.bf16.msra.mxu0 %v3667
    %5875 = vmatmul.bf16.gmra.mxu0 %v97
    %v5876 = vpop.f32.mrf.mxu0
    %v5877 = vadd.f32 %v5863, %v5876
    %v5878 = vpop.f32.mrf.mxu0
    %v5879 = vadd.f32 %v5865, %v5878
    %5880 = vdwg.mxu0
    %5881 = vmatpush.bf16.msra.mxu0 %v3907
    %5882 = vmatpush.bf16.msra.mxu0 %v3891
    %5883 = vmatpush.bf16.msra.mxu0 %v3875
    %5884 = vmatpush.bf16.msra.mxu0 %v3859
    %5885 = vmatpush.bf16.msra.mxu0 %v3843
    %5886 = vmatpush.bf16.msra.mxu0 %v3827
    %5887 = vmatpush.bf16.msra.mxu0 %v3811
    %5888 = vmatpush.bf16.msra.mxu0 %v3795
    %5889 = vmatmul.bf16.gmra.mxu0 %v98
    %v5890 = vpop.f32.mrf.mxu0
    %v5891 = vadd.f32 %v5877, %v5890
    %v5892 = vpop.f32.mrf.mxu0
    %v5893 = vadd.f32 %v5879, %v5892
    %5894 = vdwg.mxu0
    %5895 = vmatpush.bf16.msra.mxu0 %v4035
    %5896 = vmatpush.bf16.msra.mxu0 %v4019
    %5897 = vmatpush.bf16.msra.mxu0 %v4003
    %5898 = vmatpush.bf16.msra.mxu0 %v3987
    %5899 = vmatpush.bf16.msra.mxu0 %v3971
    %5900 = vmatpush.bf16.msra.mxu0 %v3955
    %5901 = vmatpush.bf16.msra.mxu0 %v3939
    %5902 = vmatpush.bf16.msra.mxu0 %v3923
    %5903 = vmatmul.bf16.gmra.mxu0 %v99
    %v5904 = vpop.f32.mrf.mxu0
    %v5905 = vadd.f32 %v5891, %v5904
    %v5906 = vpop.f32.mrf.mxu0
    %v5907 = vadd.f32 %v5893, %v5906
    %5908 = vdwg.mxu0
    %5909 = vmatpush.bf16.msra.mxu0 0
    %5910 = vmatpush.bf16.msra.mxu0 0
    %5911 = vmatpush.bf16.msra.mxu0 0
    %5912 = vmatpush.bf16.msra.mxu0 0
    %5913 = vmatpush.bf16.msra.mxu0 0
    %5914 = vmatpush.bf16.msra.mxu0 0
    %5915 = vmatpush.bf16.msra.mxu0 0
    %5916 = vmatpush.bf16.msra.mxu0 %v4051
    %5917 = vmatmul.bf16.gmra.mxu0 %v4843
    %v5918 = vpop.f32.mrf.mxu0
    %v5919 = vadd.f32 %v5905, %v5918
    %v5920 = vpop.f32.mrf.mxu0
    %v5921 = vadd.f32 %v5907, %v5920
    %5922 = vdwg.mxu0
    %5923 = vmatpush.bf16.msra.mxu0 %v3396
    %5924 = vmatpush.bf16.msra.mxu0 %v3380
    %5925 = vmatpush.bf16.msra.mxu0 %v3364
    %5926 = vmatpush.bf16.msra.mxu0 %v3348
    %5927 = vmatpush.bf16.msra.mxu0 %v3332
    %5928 = vmatpush.bf16.msra.mxu0 %v3316
    %5929 = vmatpush.bf16.msra.mxu0 %v3300
    %5930 = vmatpush.bf16.msra.mxu0 %v3284
    %5931 = vmatmul.bf16.gmra.mxu0 %v94
    %v5932 = vpop.f32.mrf.mxu0
    %v5933 = vadd.f32 %v900, %v5932
    %v5934 = vpop.f32.mrf.mxu0
    %v5935 = vadd.f32 %v900, %v5934
    %5936 = vdwg.mxu0
    %5937 = vmatpush.bf16.msra.mxu0 %v3524
    %5938 = vmatpush.bf16.msra.mxu0 %v3508
    %5939 = vmatpush.bf16.msra.mxu0 %v3492
    %5940 = vmatpush.bf16.msra.mxu0 %v3476
    %5941 = vmatpush.bf16.msra.mxu0 %v3460
    %5942 = vmatpush.bf16.msra.mxu0 %v3444
    %5943 = vmatpush.bf16.msra.mxu0 %v3428
    %5944 = vmatpush.bf16.msra.mxu0 %v3412
    %5945 = vmatmul.bf16.gmra.mxu0 %v95
    %v5946 = vpop.f32.mrf.mxu0
    %v5947 = vadd.f32 %v5933, %v5946
    %v5948 = vpop.f32.mrf.mxu0
    %v5949 = vadd.f32 %v5935, %v5948
    %5950 = vdwg.mxu0
    %5951 = vmatpush.bf16.msra.mxu0 %v3652
    %5952 = vmatpush.bf16.msra.mxu0 %v3636
    %5953 = vmatpush.bf16.msra.mxu0 %v3620
    %5954 = vmatpush.bf16.msra.mxu0 %v3604
    %5955 = vmatpush.bf16.msra.mxu0 %v3588
    %5956 = vmatpush.bf16.msra.mxu0 %v3572
    %5957 = vmatpush.bf16.msra.mxu0 %v3556
    %5958 = vmatpush.bf16.msra.mxu0 %v3540
    %5959 = vmatmul.bf16.gmra.mxu0 %v96
    %v5960 = vpop.f32.mrf.mxu0
    %v5961 = vadd.f32 %v5947, %v5960
    %v5962 = vpop.f32.mrf.mxu0
    %v5963 = vadd.f32 %v5949, %v5962
    %5964 = vdwg.mxu0
    %5965 = vmatpush.bf16.msra.mxu0 %v3780
    %5966 = vmatpush.bf16.msra.mxu0 %v3764
    %5967 = vmatpush.bf16.msra.mxu0 %v3748
    %5968 = vmatpush.bf16.msra.mxu0 %v3732
    %5969 = vmatpush.bf16.msra.mxu0 %v3716
    %5970 = vmatpush.bf16.msra.mxu0 %v3700
    %5971 = vmatpush.bf16.msra.mxu0 %v3684
    %5972 = vmatpush.bf16.msra.mxu0 %v3668
    %5973 = vmatmul.bf16.gmra.mxu0 %v97
    %v5974 = vpop.f32.mrf.mxu0
    %v5975 = vadd.f32 %v5961, %v5974
    %v5976 = vpop.f32.mrf.mxu0
    %v5977 = vadd.f32 %v5963, %v5976
    %5978 = vdwg.mxu0
    %5979 = vmatpush.bf16.msra.mxu0 %v3908
    %5980 = vmatpush.bf16.msra.mxu0 %v3892
    %5981 = vmatpush.bf16.msra.mxu0 %v3876
    %5982 = vmatpush.bf16.msra.mxu0 %v3860
    %5983 = vmatpush.bf16.msra.mxu0 %v3844
    %5984 = vmatpush.bf16.msra.mxu0 %v3828
    %5985 = vmatpush.bf16.msra.mxu0 %v3812
    %5986 = vmatpush.bf16.msra.mxu0 %v3796
    %5987 = vmatmul.bf16.gmra.mxu0 %v98
    %v5988 = vpop.f32.mrf.mxu0
    %v5989 = vadd.f32 %v5975, %v5988
    %v5990 = vpop.f32.mrf.mxu0
    %v5991 = vadd.f32 %v5977, %v5990
    %5992 = vdwg.mxu0
    %5993 = vmatpush.bf16.msra.mxu0 %v4036
    %5994 = vmatpush.bf16.msra.mxu0 %v4020
    %5995 = vmatpush.bf16.msra.mxu0 %v4004
    %5996 = vmatpush.bf16.msra.mxu0 %v3988
    %5997 = vmatpush.bf16.msra.mxu0 %v3972
    %5998 = vmatpush.bf16.msra.mxu0 %v3956
    %5999 = vmatpush.bf16.msra.mxu0 %v3940
    %6000 = vmatpush.bf16.msra.mxu0 %v3924
    %6001 = vmatmul.bf16.gmra.mxu0 %v99
    %v6002 = vpop.f32.mrf.mxu0
    %v6003 = vadd.f32 %v5989, %v6002
    %v6004 = vpop.f32.mrf.mxu0
    %v6005 = vadd.f32 %v5991, %v6004
    %6006 = vdwg.mxu0
    %6007 = vmatpush.bf16.msra.mxu0 0
    %6008 = vmatpush.bf16.msra.mxu0 0
    %6009 = vmatpush.bf16.msra.mxu0 0
    %6010 = vmatpush.bf16.msra.mxu0 0
    %6011 = vmatpush.bf16.msra.mxu0 0
    %6012 = vmatpush.bf16.msra.mxu0 0
    %6013 = vmatpush.bf16.msra.mxu0 0
    %6014 = vmatpush.bf16.msra.mxu0 %v4052
    %6015 = vmatmul.bf16.gmra.mxu0 %v4843
    %v6016 = vpop.f32.mrf.mxu0
    %v6017 = vadd.f32 %v6003, %v6016
    %v6018 = vpop.f32.mrf.mxu0
    %v6019 = vadd.f32 %v6005, %v6018
    %6020 = vdwg.mxu0
    %6021 = vmatpush.bf16.msra.mxu0 %v3397
    %6022 = vmatpush.bf16.msra.mxu0 %v3381
    %6023 = vmatpush.bf16.msra.mxu0 %v3365
    %6024 = vmatpush.bf16.msra.mxu0 %v3349
    %6025 = vmatpush.bf16.msra.mxu0 %v3333
    %6026 = vmatpush.bf16.msra.mxu0 %v3317
    %6027 = vmatpush.bf16.msra.mxu0 %v3301
    %6028 = vmatpush.bf16.msra.mxu0 %v3285
    %6029 = vmatmul.bf16.gmra.mxu0 %v94
    %v6030 = vpop.f32.mrf.mxu0
    %v6031 = vadd.f32 %v901, %v6030
    %v6032 = vpop.f32.mrf.mxu0
    %v6033 = vadd.f32 %v901, %v6032
    %6034 = vdwg.mxu0
    %6035 = vmatpush.bf16.msra.mxu0 %v3525
    %6036 = vmatpush.bf16.msra.mxu0 %v3509
    %6037 = vmatpush.bf16.msra.mxu0 %v3493
    %6038 = vmatpush.bf16.msra.mxu0 %v3477
    %6039 = vmatpush.bf16.msra.mxu0 %v3461
    %6040 = vmatpush.bf16.msra.mxu0 %v3445
    %6041 = vmatpush.bf16.msra.mxu0 %v3429
    %6042 = vmatpush.bf16.msra.mxu0 %v3413
    %6043 = vmatmul.bf16.gmra.mxu0 %v95
    %v6044 = vpop.f32.mrf.mxu0
    %v6045 = vadd.f32 %v6031, %v6044
    %v6046 = vpop.f32.mrf.mxu0
    %v6047 = vadd.f32 %v6033, %v6046
    %6048 = vdwg.mxu0
    %6049 = vmatpush.bf16.msra.mxu0 %v3653
    %6050 = vmatpush.bf16.msra.mxu0 %v3637
    %6051 = vmatpush.bf16.msra.mxu0 %v3621
    %6052 = vmatpush.bf16.msra.mxu0 %v3605
    %6053 = vmatpush.bf16.msra.mxu0 %v3589
    %6054 = vmatpush.bf16.msra.mxu0 %v3573
    %6055 = vmatpush.bf16.msra.mxu0 %v3557
    %6056 = vmatpush.bf16.msra.mxu0 %v3541
    %6057 = vmatmul.bf16.gmra.mxu0 %v96
    %v6058 = vpop.f32.mrf.mxu0
    %v6059 = vadd.f32 %v6045, %v6058
    %v6060 = vpop.f32.mrf.mxu0
    %v6061 = vadd.f32 %v6047, %v6060
    %6062 = vdwg.mxu0
    %6063 = vmatpush.bf16.msra.mxu0 %v3781
    %6064 = vmatpush.bf16.msra.mxu0 %v3765
    %6065 = vmatpush.bf16.msra.mxu0 %v3749
    %6066 = vmatpush.bf16.msra.mxu0 %v3733
    %6067 = vmatpush.bf16.msra.mxu0 %v3717
    %6068 = vmatpush.bf16.msra.mxu0 %v3701
    %6069 = vmatpush.bf16.msra.mxu0 %v3685
    %6070 = vmatpush.bf16.msra.mxu0 %v3669
    %6071 = vmatmul.bf16.gmra.mxu0 %v97
    %v6072 = vpop.f32.mrf.mxu0
    %v6073 = vadd.f32 %v6059, %v6072
    %v6074 = vpop.f32.mrf.mxu0
    %v6075 = vadd.f32 %v6061, %v6074
    %6076 = vdwg.mxu0
    %6077 = vmatpush.bf16.msra.mxu0 %v3909
    %6078 = vmatpush.bf16.msra.mxu0 %v3893
    %6079 = vmatpush.bf16.msra.mxu0 %v3877
    %6080 = vmatpush.bf16.msra.mxu0 %v3861
    %6081 = vmatpush.bf16.msra.mxu0 %v3845
    %6082 = vmatpush.bf16.msra.mxu0 %v3829
    %6083 = vmatpush.bf16.msra.mxu0 %v3813
    %6084 = vmatpush.bf16.msra.mxu0 %v3797
    %6085 = vmatmul.bf16.gmra.mxu0 %v98
    %v6086 = vpop.f32.mrf.mxu0
    %v6087 = vadd.f32 %v6073, %v6086
    %v6088 = vpop.f32.mrf.mxu0
    %v6089 = vadd.f32 %v6075, %v6088
    %6090 = vdwg.mxu0
    %6091 = vmatpush.bf16.msra.mxu0 %v4037
    %6092 = vmatpush.bf16.msra.mxu0 %v4021
    %6093 = vmatpush.bf16.msra.mxu0 %v4005
    %6094 = vmatpush.bf16.msra.mxu0 %v3989
    %6095 = vmatpush.bf16.msra.mxu0 %v3973
    %6096 = vmatpush.bf16.msra.mxu0 %v3957
    %6097 = vmatpush.bf16.msra.mxu0 %v3941
    %6098 = vmatpush.bf16.msra.mxu0 %v3925
    %6099 = vmatmul.bf16.gmra.mxu0 %v99
    %v6100 = vpop.f32.mrf.mxu0
    %v6101 = vadd.f32 %v6087, %v6100
    %v6102 = vpop.f32.mrf.mxu0
    %v6103 = vadd.f32 %v6089, %v6102
    %6104 = vdwg.mxu0
    %6105 = vmatpush.bf16.msra.mxu0 0
    %6106 = vmatpush.bf16.msra.mxu0 0
    %6107 = vmatpush.bf16.msra.mxu0 0
    %6108 = vmatpush.bf16.msra.mxu0 0
    %6109 = vmatpush.bf16.msra.mxu0 0
    %6110 = vmatpush.bf16.msra.mxu0 0
    %6111 = vmatpush.bf16.msra.mxu0 0
    %6112 = vmatpush.bf16.msra.mxu0 %v4053
    %6113 = vmatmul.bf16.gmra.mxu0 %v4843
    %v6114 = vpop.f32.mrf.mxu0
    %v6115 = vadd.f32 %v6101, %v6114
    %v6116 = vpop.f32.mrf.mxu0
    %v6117 = vadd.f32 %v6103, %v6116
    %6118 = vdwg.mxu0
    %6119 = vmatpush.bf16.msra.mxu0 %v3398
    %6120 = vmatpush.bf16.msra.mxu0 %v3382
    %6121 = vmatpush.bf16.msra.mxu0 %v3366
    %6122 = vmatpush.bf16.msra.mxu0 %v3350
    %6123 = vmatpush.bf16.msra.mxu0 %v3334
    %6124 = vmatpush.bf16.msra.mxu0 %v3318
    %6125 = vmatpush.bf16.msra.mxu0 %v3302
    %6126 = vmatpush.bf16.msra.mxu0 %v3286
    %6127 = vmatmul.bf16.gmra.mxu0 %v94
    %v6128 = vpop.f32.mrf.mxu0
    %v6129 = vadd.f32 %v902, %v6128
    %v6130 = vpop.f32.mrf.mxu0
    %v6131 = vadd.f32 %v902, %v6130
    %6132 = vdwg.mxu0
    %6133 = vmatpush.bf16.msra.mxu0 %v3526
    %6134 = vmatpush.bf16.msra.mxu0 %v3510
    %6135 = vmatpush.bf16.msra.mxu0 %v3494
    %6136 = vmatpush.bf16.msra.mxu0 %v3478
    %6137 = vmatpush.bf16.msra.mxu0 %v3462
    %6138 = vmatpush.bf16.msra.mxu0 %v3446
    %6139 = vmatpush.bf16.msra.mxu0 %v3430
    %6140 = vmatpush.bf16.msra.mxu0 %v3414
    %6141 = vmatmul.bf16.gmra.mxu0 %v95
    %v6142 = vpop.f32.mrf.mxu0
    %v6143 = vadd.f32 %v6129, %v6142
    %v6144 = vpop.f32.mrf.mxu0
    %v6145 = vadd.f32 %v6131, %v6144
    %6146 = vdwg.mxu0
    %6147 = vmatpush.bf16.msra.mxu0 %v3654
    %6148 = vmatpush.bf16.msra.mxu0 %v3638
    %6149 = vmatpush.bf16.msra.mxu0 %v3622
    %6150 = vmatpush.bf16.msra.mxu0 %v3606
    %6151 = vmatpush.bf16.msra.mxu0 %v3590
    %6152 = vmatpush.bf16.msra.mxu0 %v3574
    %6153 = vmatpush.bf16.msra.mxu0 %v3558
    %6154 = vmatpush.bf16.msra.mxu0 %v3542
    %6155 = vmatmul.bf16.gmra.mxu0 %v96
    %v6156 = vpop.f32.mrf.mxu0
    %v6157 = vadd.f32 %v6143, %v6156
    %v6158 = vpop.f32.mrf.mxu0
    %v6159 = vadd.f32 %v6145, %v6158
    %6160 = vdwg.mxu0
    %6161 = vmatpush.bf16.msra.mxu0 %v3782
    %6162 = vmatpush.bf16.msra.mxu0 %v3766
    %6163 = vmatpush.bf16.msra.mxu0 %v3750
    %6164 = vmatpush.bf16.msra.mxu0 %v3734
    %6165 = vmatpush.bf16.msra.mxu0 %v3718
    %6166 = vmatpush.bf16.msra.mxu0 %v3702
    %6167 = vmatpush.bf16.msra.mxu0 %v3686
    %6168 = vmatpush.bf16.msra.mxu0 %v3670
    %6169 = vmatmul.bf16.gmra.mxu0 %v97
    %v6170 = vpop.f32.mrf.mxu0
    %v6171 = vadd.f32 %v6157, %v6170
    %v6172 = vpop.f32.mrf.mxu0
    %v6173 = vadd.f32 %v6159, %v6172
    %6174 = vdwg.mxu0
    %6175 = vmatpush.bf16.msra.mxu0 %v3910
    %6176 = vmatpush.bf16.msra.mxu0 %v3894
    %6177 = vmatpush.bf16.msra.mxu0 %v3878
    %6178 = vmatpush.bf16.msra.mxu0 %v3862
    %6179 = vmatpush.bf16.msra.mxu0 %v3846
    %6180 = vmatpush.bf16.msra.mxu0 %v3830
    %6181 = vmatpush.bf16.msra.mxu0 %v3814
    %6182 = vmatpush.bf16.msra.mxu0 %v3798
    %6183 = vmatmul.bf16.gmra.mxu0 %v98
    %v6184 = vpop.f32.mrf.mxu0
    %v6185 = vadd.f32 %v6171, %v6184
    %v6186 = vpop.f32.mrf.mxu0
    %v6187 = vadd.f32 %v6173, %v6186
    %6188 = vdwg.mxu0
    %6189 = vmatpush.bf16.msra.mxu0 %v4038
    %6190 = vmatpush.bf16.msra.mxu0 %v4022
    %6191 = vmatpush.bf16.msra.mxu0 %v4006
    %6192 = vmatpush.bf16.msra.mxu0 %v3990
    %6193 = vmatpush.bf16.msra.mxu0 %v3974
    %6194 = vmatpush.bf16.msra.mxu0 %v3958
    %6195 = vmatpush.bf16.msra.mxu0 %v3942
    %6196 = vmatpush.bf16.msra.mxu0 %v3926
    %6197 = vmatmul.bf16.gmra.mxu0 %v99
    %v6198 = vpop.f32.mrf.mxu0
    %v6199 = vadd.f32 %v6185, %v6198
    %v6200 = vpop.f32.mrf.mxu0
    %v6201 = vadd.f32 %v6187, %v6200
    %6202 = vdwg.mxu0
    %6203 = vmatpush.bf16.msra.mxu0 0
    %6204 = vmatpush.bf16.msra.mxu0 0
    %6205 = vmatpush.bf16.msra.mxu0 0
    %6206 = vmatpush.bf16.msra.mxu0 0
    %6207 = vmatpush.bf16.msra.mxu0 0
    %6208 = vmatpush.bf16.msra.mxu0 0
    %6209 = vmatpush.bf16.msra.mxu0 0
    %6210 = vmatpush.bf16.msra.mxu0 %v4054
    %6211 = vmatmul.bf16.gmra.mxu0 %v4843
    %v6212 = vpop.f32.mrf.mxu0
    %v6213 = vadd.f32 %v6199, %v6212
    %v6214 = vpop.f32.mrf.mxu0
    %v6215 = vadd.f32 %v6201, %v6214
    %6216 = vdwg.mxu0
    %6217 = vmatpush.bf16.msra.mxu0 %v3399
    %6218 = vmatpush.bf16.msra.mxu0 %v3383
    %6219 = vmatpush.bf16.msra.mxu0 %v3367
    %6220 = vmatpush.bf16.msra.mxu0 %v3351
    %6221 = vmatpush.bf16.msra.mxu0 %v3335
    %6222 = vmatpush.bf16.msra.mxu0 %v3319
    %6223 = vmatpush.bf16.msra.mxu0 %v3303
    %6224 = vmatpush.bf16.msra.mxu0 %v3287
    %6225 = vmatmul.bf16.gmra.mxu0 %v94
    %v6226 = vpop.f32.mrf.mxu0
    %v6227 = vadd.f32 %v903, %v6226
    %v6228 = vpop.f32.mrf.mxu0
    %v6229 = vadd.f32 %v903, %v6228
    %6230 = vdwg.mxu0
    %6231 = vmatpush.bf16.msra.mxu0 %v3527
    %6232 = vmatpush.bf16.msra.mxu0 %v3511
    %6233 = vmatpush.bf16.msra.mxu0 %v3495
    %6234 = vmatpush.bf16.msra.mxu0 %v3479
    %6235 = vmatpush.bf16.msra.mxu0 %v3463
    %6236 = vmatpush.bf16.msra.mxu0 %v3447
    %6237 = vmatpush.bf16.msra.mxu0 %v3431
    %6238 = vmatpush.bf16.msra.mxu0 %v3415
    %6239 = vmatmul.bf16.gmra.mxu0 %v95
    %v6240 = vpop.f32.mrf.mxu0
    %v6241 = vadd.f32 %v6227, %v6240
    %v6242 = vpop.f32.mrf.mxu0
    %v6243 = vadd.f32 %v6229, %v6242
    %6244 = vdwg.mxu0
    %6245 = vmatpush.bf16.msra.mxu0 %v3655
    %6246 = vmatpush.bf16.msra.mxu0 %v3639
    %6247 = vmatpush.bf16.msra.mxu0 %v3623
    %6248 = vmatpush.bf16.msra.mxu0 %v3607
    %6249 = vmatpush.bf16.msra.mxu0 %v3591
    %6250 = vmatpush.bf16.msra.mxu0 %v3575
    %6251 = vmatpush.bf16.msra.mxu0 %v3559
    %6252 = vmatpush.bf16.msra.mxu0 %v3543
    %6253 = vmatmul.bf16.gmra.mxu0 %v96
    %v6254 = vpop.f32.mrf.mxu0
    %v6255 = vadd.f32 %v6241, %v6254
    %v6256 = vpop.f32.mrf.mxu0
    %v6257 = vadd.f32 %v6243, %v6256
    %6258 = vdwg.mxu0
    %6259 = vmatpush.bf16.msra.mxu0 %v3783
    %6260 = vmatpush.bf16.msra.mxu0 %v3767
    %6261 = vmatpush.bf16.msra.mxu0 %v3751
    %6262 = vmatpush.bf16.msra.mxu0 %v3735
    %6263 = vmatpush.bf16.msra.mxu0 %v3719
    %6264 = vmatpush.bf16.msra.mxu0 %v3703
    %6265 = vmatpush.bf16.msra.mxu0 %v3687
    %6266 = vmatpush.bf16.msra.mxu0 %v3671
    %6267 = vmatmul.bf16.gmra.mxu0 %v97
    %v6268 = vpop.f32.mrf.mxu0
    %v6269 = vadd.f32 %v6255, %v6268
    %v6270 = vpop.f32.mrf.mxu0
    %v6271 = vadd.f32 %v6257, %v6270
    %6272 = vdwg.mxu0
    %6273 = vmatpush.bf16.msra.mxu0 %v3911
    %6274 = vmatpush.bf16.msra.mxu0 %v3895
    %6275 = vmatpush.bf16.msra.mxu0 %v3879
    %6276 = vmatpush.bf16.msra.mxu0 %v3863
    %6277 = vmatpush.bf16.msra.mxu0 %v3847
    %6278 = vmatpush.bf16.msra.mxu0 %v3831
    %6279 = vmatpush.bf16.msra.mxu0 %v3815
    %6280 = vmatpush.bf16.msra.mxu0 %v3799
    %6281 = vmatmul.bf16.gmra.mxu0 %v98
    %v6282 = vpop.f32.mrf.mxu0
    %v6283 = vadd.f32 %v6269, %v6282
    %v6284 = vpop.f32.mrf.mxu0
    %v6285 = vadd.f32 %v6271, %v6284
    %6286 = vdwg.mxu0
    %6287 = vmatpush.bf16.msra.mxu0 %v4039
    %6288 = vmatpush.bf16.msra.mxu0 %v4023
    %6289 = vmatpush.bf16.msra.mxu0 %v4007
    %6290 = vmatpush.bf16.msra.mxu0 %v3991
    %6291 = vmatpush.bf16.msra.mxu0 %v3975
    %6292 = vmatpush.bf16.msra.mxu0 %v3959
    %6293 = vmatpush.bf16.msra.mxu0 %v3943
    %6294 = vmatpush.bf16.msra.mxu0 %v3927
    %6295 = vmatmul.bf16.gmra.mxu0 %v99
    %v6296 = vpop.f32.mrf.mxu0
    %v6297 = vadd.f32 %v6283, %v6296
    %v6298 = vpop.f32.mrf.mxu0
    %v6299 = vadd.f32 %v6285, %v6298
    %6300 = vdwg.mxu0
    %6301 = vmatpush.bf16.msra.mxu0 0
    %6302 = vmatpush.bf16.msra.mxu0 0
    %6303 = vmatpush.bf16.msra.mxu0 0
    %6304 = vmatpush.bf16.msra.mxu0 0
    %6305 = vmatpush.bf16.msra.mxu0 0
    %6306 = vmatpush.bf16.msra.mxu0 0
    %6307 = vmatpush.bf16.msra.mxu0 0
    %6308 = vmatpush.bf16.msra.mxu0 %v4055
    %6309 = vmatmul.bf16.gmra.mxu0 %v4843
    %v6310 = vpop.f32.mrf.mxu0
    %v6311 = vadd.f32 %v6297, %v6310
    %v6312 = vpop.f32.mrf.mxu0
    %v6313 = vadd.f32 %v6299, %v6312
    %6314 = vdwg.mxu0
    %6315 = vmatpush.bf16.msra.mxu0 %v3400
    %6316 = vmatpush.bf16.msra.mxu0 %v3384
    %6317 = vmatpush.bf16.msra.mxu0 %v3368
    %6318 = vmatpush.bf16.msra.mxu0 %v3352
    %6319 = vmatpush.bf16.msra.mxu0 %v3336
    %6320 = vmatpush.bf16.msra.mxu0 %v3320
    %6321 = vmatpush.bf16.msra.mxu0 %v3304
    %6322 = vmatpush.bf16.msra.mxu0 %v3288
    %6323 = vmatmul.bf16.gmra.mxu0 %v94
    %v6324 = vpop.f32.mrf.mxu0
    %v6325 = vadd.f32 %v904, %v6324
    %v6326 = vpop.f32.mrf.mxu0
    %v6327 = vadd.f32 %v904, %v6326
    %6328 = vdwg.mxu0
    %6329 = vmatpush.bf16.msra.mxu0 %v3528
    %6330 = vmatpush.bf16.msra.mxu0 %v3512
    %6331 = vmatpush.bf16.msra.mxu0 %v3496
    %6332 = vmatpush.bf16.msra.mxu0 %v3480
    %6333 = vmatpush.bf16.msra.mxu0 %v3464
    %6334 = vmatpush.bf16.msra.mxu0 %v3448
    %6335 = vmatpush.bf16.msra.mxu0 %v3432
    %6336 = vmatpush.bf16.msra.mxu0 %v3416
    %6337 = vmatmul.bf16.gmra.mxu0 %v95
    %v6338 = vpop.f32.mrf.mxu0
    %v6339 = vadd.f32 %v6325, %v6338
    %v6340 = vpop.f32.mrf.mxu0
    %v6341 = vadd.f32 %v6327, %v6340
    %6342 = vdwg.mxu0
    %6343 = vmatpush.bf16.msra.mxu0 %v3656
    %6344 = vmatpush.bf16.msra.mxu0 %v3640
    %6345 = vmatpush.bf16.msra.mxu0 %v3624
    %6346 = vmatpush.bf16.msra.mxu0 %v3608
    %6347 = vmatpush.bf16.msra.mxu0 %v3592
    %6348 = vmatpush.bf16.msra.mxu0 %v3576
    %6349 = vmatpush.bf16.msra.mxu0 %v3560
    %6350 = vmatpush.bf16.msra.mxu0 %v3544
    %6351 = vmatmul.bf16.gmra.mxu0 %v96
    %v6352 = vpop.f32.mrf.mxu0
    %v6353 = vadd.f32 %v6339, %v6352
    %v6354 = vpop.f32.mrf.mxu0
    %v6355 = vadd.f32 %v6341, %v6354
    %6356 = vdwg.mxu0
    %6357 = vmatpush.bf16.msra.mxu0 %v3784
    %6358 = vmatpush.bf16.msra.mxu0 %v3768
    %6359 = vmatpush.bf16.msra.mxu0 %v3752
    %6360 = vmatpush.bf16.msra.mxu0 %v3736
    %6361 = vmatpush.bf16.msra.mxu0 %v3720
    %6362 = vmatpush.bf16.msra.mxu0 %v3704
    %6363 = vmatpush.bf16.msra.mxu0 %v3688
    %6364 = vmatpush.bf16.msra.mxu0 %v3672
    %6365 = vmatmul.bf16.gmra.mxu0 %v97
    %v6366 = vpop.f32.mrf.mxu0
    %v6367 = vadd.f32 %v6353, %v6366
    %v6368 = vpop.f32.mrf.mxu0
    %v6369 = vadd.f32 %v6355, %v6368
    %6370 = vdwg.mxu0
    %6371 = vmatpush.bf16.msra.mxu0 %v3912
    %6372 = vmatpush.bf16.msra.mxu0 %v3896
    %6373 = vmatpush.bf16.msra.mxu0 %v3880
    %6374 = vmatpush.bf16.msra.mxu0 %v3864
    %6375 = vmatpush.bf16.msra.mxu0 %v3848
    %6376 = vmatpush.bf16.msra.mxu0 %v3832
    %6377 = vmatpush.bf16.msra.mxu0 %v3816
    %6378 = vmatpush.bf16.msra.mxu0 %v3800
    %6379 = vmatmul.bf16.gmra.mxu0 %v98
    %v6380 = vpop.f32.mrf.mxu0
    %v6381 = vadd.f32 %v6367, %v6380
    %v6382 = vpop.f32.mrf.mxu0
    %v6383 = vadd.f32 %v6369, %v6382
    %6384 = vdwg.mxu0
    %6385 = vmatpush.bf16.msra.mxu0 %v4040
    %6386 = vmatpush.bf16.msra.mxu0 %v4024
    %6387 = vmatpush.bf16.msra.mxu0 %v4008
    %6388 = vmatpush.bf16.msra.mxu0 %v3992
    %6389 = vmatpush.bf16.msra.mxu0 %v3976
    %6390 = vmatpush.bf16.msra.mxu0 %v3960
    %6391 = vmatpush.bf16.msra.mxu0 %v3944
    %6392 = vmatpush.bf16.msra.mxu0 %v3928
    %6393 = vmatmul.bf16.gmra.mxu0 %v99
    %v6394 = vpop.f32.mrf.mxu0
    %v6395 = vadd.f32 %v6381, %v6394
    %v6396 = vpop.f32.mrf.mxu0
    %v6397 = vadd.f32 %v6383, %v6396
    %6398 = vdwg.mxu0
    %6399 = vmatpush.bf16.msra.mxu0 0
    %6400 = vmatpush.bf16.msra.mxu0 0
    %6401 = vmatpush.bf16.msra.mxu0 0
    %6402 = vmatpush.bf16.msra.mxu0 0
    %6403 = vmatpush.bf16.msra.mxu0 0
    %6404 = vmatpush.bf16.msra.mxu0 0
    %6405 = vmatpush.bf16.msra.mxu0 0
    %6406 = vmatpush.bf16.msra.mxu0 %v4056
    %6407 = vmatmul.bf16.gmra.mxu0 %v4843
    %v6408 = vpop.f32.mrf.mxu0
    %v6409 = vadd.f32 %v6395, %v6408
    %v6410 = vpop.f32.mrf.mxu0
    %v6411 = vadd.f32 %v6397, %v6410
    %6412 = vdwg.mxu0
    %v6413 = vmax.f32 %v4939, 0.0
    %v6414 = vmax.f32 %v5037, 0.0
    %v6415 = vmax.f32 %v5135, 0.0
    %v6416 = vmax.f32 %v5233, 0.0
    %v6417 = vmax.f32 %v5331, 0.0
    %v6418 = vmax.f32 %v5429, 0.0
    %v6419 = vmax.f32 %v5527, 0.0
    %v6420 = vmax.f32 %v5625, 0.0
    %v6421 = vmax.f32 %v5723, 0.0
    %v6422 = vmax.f32 %v5821, 0.0
    %v6423 = vmax.f32 %v5919, 0.0
    %v6424 = vmax.f32 %v6017, 0.0
    %v6425 = vmax.f32 %v6115, 0.0
    %v6426 = vmax.f32 %v6213, 0.0
    %v6427 = vmax.f32 %v6311, 0.0
    %v6428 = vmax.f32 %v6409, 0.0
    %v6429 = vmax.f32 %v4941, 0.0
    %v6430 = vmax.f32 %v5039, 0.0
    %v6431 = vmax.f32 %v5137, 0.0
    %v6432 = vmax.f32 %v5235, 0.0
    %v6433 = vmax.f32 %v5333, 0.0
    %v6434 = vmax.f32 %v5431, 0.0
    %v6435 = vmax.f32 %v5529, 0.0
    %v6436 = vmax.f32 %v5627, 0.0
    %v6437 = vmax.f32 %v5725, 0.0
    %v6438 = vmax.f32 %v5823, 0.0
    %v6439 = vmax.f32 %v5921, 0.0
    %v6440 = vmax.f32 %v6019, 0.0
    %v6441 = vmax.f32 %v6117, 0.0
    %v6442 = vmax.f32 %v6215, 0.0
    %v6443 = vmax.f32 %v6313, 0.0
    %v6444 = vmax.f32 %v6411, 0.0
    %v6445 = vpack.c.bf16 %v6429, %v6413
    %v6446 = vpack.c.bf16 %v6430, %v6414
    %v6447 = vpack.c.bf16 %v6431, %v6415
    %v6448 = vpack.c.bf16 %v6432, %v6416
    %v6449 = vpack.c.bf16 %v6433, %v6417
    %v6450 = vpack.c.bf16 %v6434, %v6418
    %v6451 = vpack.c.bf16 %v6435, %v6419
    %v6452 = vpack.c.bf16 %v6436, %v6420
    %v6453 = vpack.c.bf16 %v6437, %v6421
    %v6454 = vpack.c.bf16 %v6438, %v6422
    %v6455 = vpack.c.bf16 %v6439, %v6423
    %v6456 = vpack.c.bf16 %v6440, %v6424
    %v6457 = vpack.c.bf16 %v6441, %v6425
    %v6458 = vpack.c.bf16 %v6442, %v6426
    %v6459 = vpack.c.bf16 %v6443, %v6427
    %v6460 = vpack.c.bf16 %v6444, %v6428
    %v6461 = vld [vmem:[#allocation6] sm:$0xf]
    %v6462 = vld [vmem:[#allocation6 + $0x4] sm:$0xf]
    %v6463 = vld [vmem:[#allocation6 + $0x8] sm:$0xf]
    %v6464 = vld [vmem:[#allocation6 + $0xc] sm:$0xf]
    %v6465 = vld [vmem:[#allocation6 + $0x10] sm:$0xf]
    %v6466 = vld [vmem:[#allocation6 + $0x14] sm:$0xf]
    %v6467 = vld [vmem:[#allocation6 + $0x18] sm:$0xf]
    %v6468 = vld [vmem:[#allocation6 + $0x1c] sm:$0xf]
    %v6469 = vld [vmem:[#allocation6 + $0x20] sm:$0xf]
    %v6470 = vld [vmem:[#allocation6 + $0x24] sm:$0xf]
    %v6471 = vld [vmem:[#allocation6 + $0x28] sm:$0xf]
    %v6472 = vld [vmem:[#allocation6 + $0x2c] sm:$0xf]
    %v6473 = vld [vmem:[#allocation6 + $0x30] sm:$0xf]
    %v6474 = vld [vmem:[#allocation6 + $0x34] sm:$0xf]
    %v6475 = vld [vmem:[#allocation6 + $0x38] sm:$0xf]
    %v6476 = vld [vmem:[#allocation6 + $0x3c] sm:$0xf]
    %v6477 = vld [vmem:[#allocation6 + $0x40] sm:$0xf]
    %v6478 = vld [vmem:[#allocation6 + $0x44] sm:$0xf]
    %v6479 = vld [vmem:[#allocation6 + $0x48] sm:$0xf]
    %v6480 = vld [vmem:[#allocation6 + $0x4c] sm:$0xf]
    %v6481 = vld [vmem:[#allocation6 + $0x50] sm:$0xf]
    %v6482 = vld [vmem:[#allocation6 + $0x54] sm:$0xf]
    %v6483 = vld [vmem:[#allocation6 + $0x58] sm:$0xf]
    %v6484 = vld [vmem:[#allocation6 + $0x5c] sm:$0xf]
    %v6485 = vld [vmem:[#allocation6 + $0x60] sm:$0xf]
    %v6486 = vld [vmem:[#allocation6 + $0x64] sm:$0xf]
    %v6487 = vld [vmem:[#allocation6 + $0x68] sm:$0xf]
    %v6488 = vld [vmem:[#allocation6 + $0x6c] sm:$0xf]
    %v6489 = vld [vmem:[#allocation6 + $0x70] sm:$0xf]
    %v6490 = vld [vmem:[#allocation6 + $0x74] sm:$0xf]
    %v6491 = vld [vmem:[#allocation6 + $0x78] sm:$0xf]
    %v6492 = vld [vmem:[#allocation6 + $0x7c] sm:$0xf]
    %v6493 = vld [vmem:[#allocation6 + $0x80] sm:$0xf]
    %v6494 = vld [vmem:[#allocation6 + $0x84] sm:$0xf]
    %v6495 = vld [vmem:[#allocation6 + $0x88] sm:$0xf]
    %v6496 = vld [vmem:[#allocation6 + $0x8c] sm:$0xf]
    %v6497 = vld [vmem:[#allocation6 + $0x90] sm:$0xf]
    %v6498 = vld [vmem:[#allocation6 + $0x94] sm:$0xf]
    %v6499 = vld [vmem:[#allocation6 + $0x98] sm:$0xf]
    %v6500 = vld [vmem:[#allocation6 + $0x9c] sm:$0xf]
    %v6501 = vld [vmem:[#allocation6 + $0xa0] sm:$0xf]
    %v6502 = vld [vmem:[#allocation6 + $0xa4] sm:$0xf]
    %v6503 = vld [vmem:[#allocation6 + $0xa8] sm:$0xf]
    %v6504 = vld [vmem:[#allocation6 + $0xac] sm:$0xf]
    %v6505 = vld [vmem:[#allocation6 + $0xb0] sm:$0xf]
    %v6506 = vld [vmem:[#allocation6 + $0xb4] sm:$0xf]
    %v6507 = vld [vmem:[#allocation6 + $0xb8] sm:$0xf]
    %v6508 = vld [vmem:[#allocation6 + $0xbc] sm:$0xf]
    %v6509 = vld [vmem:[#allocation6 + $0xc0] sm:$0xf]
    %v6510 = vld [vmem:[#allocation6 + $0xc4] sm:$0xf]
    %v6511 = vld [vmem:[#allocation6 + $0xc8] sm:$0xf]
    %v6512 = vld [vmem:[#allocation6 + $0xcc] sm:$0xf]
    %v6513 = vld [vmem:[#allocation6 + $0xd0] sm:$0xf]
    %v6514 = vld [vmem:[#allocation6 + $0xd4] sm:$0xf]
    %v6515 = vld [vmem:[#allocation6 + $0xd8] sm:$0xf]
    %v6516 = vld [vmem:[#allocation6 + $0xdc] sm:$0xf]
    %v6517 = vld [vmem:[#allocation6 + $0xe0] sm:$0xf]
    %v6518 = vld [vmem:[#allocation6 + $0xe4] sm:$0xf]
    %v6519 = vld [vmem:[#allocation6 + $0xe8] sm:$0xf]
    %v6520 = vld [vmem:[#allocation6 + $0xec] sm:$0xf]
    %v6521 = vld [vmem:[#allocation6 + $0xf0] sm:$0xf]
    %v6522 = vld [vmem:[#allocation6 + $0xf4] sm:$0xf]
    %v6523 = vld [vmem:[#allocation6 + $0xf8] sm:$0xf]
    %v6524 = vld [vmem:[#allocation6 + $0xfc] sm:$0xf]
    %v6525 = vld [vmem:[#allocation6 + $0x100] sm:$0xf]
    %v6526 = vld [vmem:[#allocation6 + $0x104] sm:$0xf]
    %v6527 = vld [vmem:[#allocation6 + $0x108] sm:$0xf]
    %v6528 = vld [vmem:[#allocation6 + $0x10c] sm:$0xf]
    %v6529 = vld [vmem:[#allocation6 + $0x110] sm:$0xf]
    %v6530 = vld [vmem:[#allocation6 + $0x114] sm:$0xf]
    %v6531 = vld [vmem:[#allocation6 + $0x118] sm:$0xf]
    %v6532 = vld [vmem:[#allocation6 + $0x11c] sm:$0xf]
    %v6533 = vld [vmem:[#allocation6 + $0x120] sm:$0xf]
    %v6534 = vld [vmem:[#allocation6 + $0x124] sm:$0xf]
    %v6535 = vld [vmem:[#allocation6 + $0x128] sm:$0xf]
    %v6536 = vld [vmem:[#allocation6 + $0x12c] sm:$0xf]
    %v6537 = vld [vmem:[#allocation6 + $0x130] sm:$0xf]
    %v6538 = vld [vmem:[#allocation6 + $0x134] sm:$0xf]
    %v6539 = vld [vmem:[#allocation6 + $0x138] sm:$0xf]
    %v6540 = vld [vmem:[#allocation6 + $0x13c] sm:$0xf]
    %v6541 = vld [vmem:[#allocation6 + $0x140] sm:$0xf]
    %v6542 = vld [vmem:[#allocation6 + $0x144] sm:$0xf]
    %v6543 = vld [vmem:[#allocation6 + $0x148] sm:$0xf]
    %v6544 = vld [vmem:[#allocation6 + $0x14c] sm:$0xf]
    %v6545 = vld [vmem:[#allocation6 + $0x150] sm:$0xf]
    %v6546 = vld [vmem:[#allocation6 + $0x154] sm:$0xf]
    %v6547 = vld [vmem:[#allocation6 + $0x158] sm:$0xf]
    %v6548 = vld [vmem:[#allocation6 + $0x15c] sm:$0xf]
    %v6549 = vld [vmem:[#allocation6 + $0x160] sm:$0xf]
    %v6550 = vld [vmem:[#allocation6 + $0x164] sm:$0xf]
    %v6551 = vld [vmem:[#allocation6 + $0x168] sm:$0xf]
    %v6552 = vld [vmem:[#allocation6 + $0x16c] sm:$0xf]
    %v6553 = vld [vmem:[#allocation6 + $0x170] sm:$0xf]
    %v6554 = vld [vmem:[#allocation6 + $0x174] sm:$0xf]
    %v6555 = vld [vmem:[#allocation6 + $0x178] sm:$0xf]
    %v6556 = vld [vmem:[#allocation6 + $0x17c] sm:$0xf]
    %v6557 = vld [vmem:[#allocation6 + $0x180] sm:$0xf]
    %v6558 = vld [vmem:[#allocation6 + $0x184] sm:$0xf]
    %v6559 = vld [vmem:[#allocation6 + $0x188] sm:$0xf]
    %v6560 = vld [vmem:[#allocation6 + $0x18c] sm:$0xf]
    %v6561 = vld [vmem:[#allocation6 + $0x190] sm:$0xf]
    %v6562 = vld [vmem:[#allocation6 + $0x194] sm:$0xf]
    %v6563 = vld [vmem:[#allocation6 + $0x198] sm:$0xf]
    %v6564 = vld [vmem:[#allocation6 + $0x19c] sm:$0xf]
    %v6565 = vld [vmem:[#allocation6 + $0x1a0] sm:$0xf]
    %v6566 = vld [vmem:[#allocation6 + $0x1a4] sm:$0xf]
    %v6567 = vld [vmem:[#allocation6 + $0x1a8] sm:$0xf]
    %v6568 = vld [vmem:[#allocation6 + $0x1ac] sm:$0xf]
    %v6569 = vld [vmem:[#allocation6 + $0x1b0] sm:$0xf]
    %v6570 = vld [vmem:[#allocation6 + $0x1b4] sm:$0xf]
    %v6571 = vld [vmem:[#allocation6 + $0x1b8] sm:$0xf]
    %v6572 = vld [vmem:[#allocation6 + $0x1bc] sm:$0xf]
    %v6573 = vld [vmem:[#allocation6 + $0x1c0] sm:$0xf]
    %v6574 = vld [vmem:[#allocation6 + $0x1c4] sm:$0xf]
    %v6575 = vld [vmem:[#allocation6 + $0x1c8] sm:$0xf]
    %v6576 = vld [vmem:[#allocation6 + $0x1cc] sm:$0xf]
    %v6577 = vld [vmem:[#allocation6 + $0x1d0] sm:$0xf]
    %v6578 = vld [vmem:[#allocation6 + $0x1d4] sm:$0xf]
    %v6579 = vld [vmem:[#allocation6 + $0x1d8] sm:$0xf]
    %v6580 = vld [vmem:[#allocation6 + $0x1dc] sm:$0xf]
    %v6581 = vld [vmem:[#allocation6 + $0x1e0] sm:$0xf]
    %v6582 = vld [vmem:[#allocation6 + $0x1e4] sm:$0xf]
    %v6583 = vld [vmem:[#allocation6 + $0x1e8] sm:$0xf]
    %v6584 = vld [vmem:[#allocation6 + $0x1ec] sm:$0xf]
    %v6585 = vld [vmem:[#allocation6 + $0x1f0] sm:$0xf]
    %v6586 = vld [vmem:[#allocation6 + $0x1f4] sm:$0xf]
    %v6587 = vld [vmem:[#allocation6 + $0x1f8] sm:$0xf]
    %v6588 = vld [vmem:[#allocation6 + $0x1fc] sm:$0xf]
    %v6589 = vld [vmem:[#allocation6 + $0x200] sm:$0xf]
    %v6590 = vld [vmem:[#allocation6 + $0x204] sm:$0xf]
    %v6591 = vld [vmem:[#allocation6 + $0x208] sm:$0xf]
    %v6592 = vld [vmem:[#allocation6 + $0x20c] sm:$0xf]
    %v6593 = vld [vmem:[#allocation6 + $0x210] sm:$0xf]
    %v6594 = vld [vmem:[#allocation6 + $0x214] sm:$0xf]
    %v6595 = vld [vmem:[#allocation6 + $0x218] sm:$0xf]
    %v6596 = vld [vmem:[#allocation6 + $0x21c] sm:$0xf]
    %v6597 = vld [vmem:[#allocation6 + $0x220] sm:$0xf]
    %v6598 = vld [vmem:[#allocation6 + $0x224] sm:$0xf]
    %v6599 = vld [vmem:[#allocation6 + $0x228] sm:$0xf]
    %v6600 = vld [vmem:[#allocation6 + $0x22c] sm:$0xf]
    %v6601 = vld [vmem:[#allocation6 + $0x230] sm:$0xf]
    %v6602 = vld [vmem:[#allocation6 + $0x234] sm:$0xf]
    %v6603 = vld [vmem:[#allocation6 + $0x238] sm:$0xf]
    %v6604 = vld [vmem:[#allocation6 + $0x23c] sm:$0xf]
    %v6605 = vld [vmem:[#allocation6 + $0x240] sm:$0xf]
    %v6606 = vld [vmem:[#allocation6 + $0x244] sm:$0xf]
    %v6607 = vld [vmem:[#allocation6 + $0x248] sm:$0xf]
    %v6608 = vld [vmem:[#allocation6 + $0x24c] sm:$0xf]
    %v6609 = vld [vmem:[#allocation6 + $0x250] sm:$0xf]
    %v6610 = vld [vmem:[#allocation6 + $0x254] sm:$0xf]
    %v6611 = vld [vmem:[#allocation6 + $0x258] sm:$0xf]
    %v6612 = vld [vmem:[#allocation6 + $0x25c] sm:$0xf]
    %v6613 = vld [vmem:[#allocation6 + $0x260] sm:$0xf]
    %v6614 = vld [vmem:[#allocation6 + $0x264] sm:$0xf]
    %v6615 = vld [vmem:[#allocation6 + $0x268] sm:$0xf]
    %v6616 = vld [vmem:[#allocation6 + $0x26c] sm:$0xf]
    %v6617 = vld [vmem:[#allocation6 + $0x270] sm:$0xf]
    %v6618 = vld [vmem:[#allocation6 + $0x274] sm:$0xf]
    %v6619 = vld [vmem:[#allocation6 + $0x278] sm:$0xf]
    %v6620 = vld [vmem:[#allocation6 + $0x27c] sm:$0xf]
    %v6621 = vld [vmem:[#allocation6 + $0x280] sm:$0xf]
    %v6622 = vld [vmem:[#allocation6 + $0x284] sm:$0xf]
    %v6623 = vld [vmem:[#allocation6 + $0x288] sm:$0xf]
    %v6624 = vld [vmem:[#allocation6 + $0x28c] sm:$0xf]
    %v6625 = vld [vmem:[#allocation6 + $0x290] sm:$0xf]
    %v6626 = vld [vmem:[#allocation6 + $0x294] sm:$0xf]
    %v6627 = vld [vmem:[#allocation6 + $0x298] sm:$0xf]
    %v6628 = vld [vmem:[#allocation6 + $0x29c] sm:$0xf]
    %v6629 = vld [vmem:[#allocation6 + $0x2a0] sm:$0xf]
    %v6630 = vld [vmem:[#allocation6 + $0x2a4] sm:$0xf]
    %v6631 = vld [vmem:[#allocation6 + $0x2a8] sm:$0xf]
    %v6632 = vld [vmem:[#allocation6 + $0x2ac] sm:$0xf]
    %v6633 = vld [vmem:[#allocation6 + $0x2b0] sm:$0xf]
    %v6634 = vld [vmem:[#allocation6 + $0x2b4] sm:$0xf]
    %v6635 = vld [vmem:[#allocation6 + $0x2b8] sm:$0xf]
    %v6636 = vld [vmem:[#allocation6 + $0x2bc] sm:$0xf]
    %v6637 = vld [vmem:[#allocation6 + $0x2c0] sm:$0xf]
    %v6638 = vld [vmem:[#allocation6 + $0x2c4] sm:$0xf]
    %v6639 = vld [vmem:[#allocation6 + $0x2c8] sm:$0xf]
    %v6640 = vld [vmem:[#allocation6 + $0x2cc] sm:$0xf]
    %v6641 = vld [vmem:[#allocation6 + $0x2d0] sm:$0xf]
    %v6642 = vld [vmem:[#allocation6 + $0x2d4] sm:$0xf]
    %v6643 = vld [vmem:[#allocation6 + $0x2d8] sm:$0xf]
    %v6644 = vld [vmem:[#allocation6 + $0x2dc] sm:$0xf]
    %v6645 = vld [vmem:[#allocation6 + $0x2e0] sm:$0xf]
    %v6646 = vld [vmem:[#allocation6 + $0x2e4] sm:$0xf]
    %v6647 = vld [vmem:[#allocation6 + $0x2e8] sm:$0xf]
    %v6648 = vld [vmem:[#allocation6 + $0x2ec] sm:$0xf]
    %v6649 = vld [vmem:[#allocation6 + $0x2f0] sm:$0xf]
    %v6650 = vld [vmem:[#allocation6 + $0x2f4] sm:$0xf]
    %v6651 = vld [vmem:[#allocation6 + $0x2f8] sm:$0xf]
    %v6652 = vld [vmem:[#allocation6 + $0x2fc] sm:$0xf]
    %v6653 = vld [vmem:[#allocation6 + $0x300] sm:$0xf]
    %v6654 = vld [vmem:[#allocation6 + $0x304] sm:$0xf]
    %v6655 = vld [vmem:[#allocation6 + $0x308] sm:$0xf]
    %v6656 = vld [vmem:[#allocation6 + $0x30c] sm:$0xf]
    %v6657 = vld [vmem:[#allocation6 + $0x310] sm:$0xf]
    %v6658 = vld [vmem:[#allocation6 + $0x314] sm:$0xf]
    %v6659 = vld [vmem:[#allocation6 + $0x318] sm:$0xf]
    %v6660 = vld [vmem:[#allocation6 + $0x31c] sm:$0xf]
    %v6661 = vld [vmem:[#allocation6 + $0x320] sm:$0xf]
    %v6662 = vld [vmem:[#allocation6 + $0x324] sm:$0xf]
    %v6663 = vld [vmem:[#allocation6 + $0x328] sm:$0xf]
    %v6664 = vld [vmem:[#allocation6 + $0x32c] sm:$0xf]
    %v6665 = vld [vmem:[#allocation6 + $0x330] sm:$0xf]
    %v6666 = vld [vmem:[#allocation6 + $0x334] sm:$0xf]
    %v6667 = vld [vmem:[#allocation6 + $0x338] sm:$0xf]
    %v6668 = vld [vmem:[#allocation6 + $0x33c] sm:$0xf]
    %v6669 = vld [vmem:[#allocation6 + $0x340] sm:$0xf]
    %v6670 = vld [vmem:[#allocation6 + $0x344] sm:$0xf]
    %v6671 = vld [vmem:[#allocation6 + $0x348] sm:$0xf]
    %v6672 = vld [vmem:[#allocation6 + $0x34c] sm:$0xf]
    %v6673 = vld [vmem:[#allocation6 + $0x350] sm:$0xf]
    %v6674 = vld [vmem:[#allocation6 + $0x354] sm:$0xf]
    %v6675 = vld [vmem:[#allocation6 + $0x358] sm:$0xf]
    %v6676 = vld [vmem:[#allocation6 + $0x35c] sm:$0xf]
    %v6677 = vld [vmem:[#allocation6 + $0x360] sm:$0xf]
    %v6678 = vld [vmem:[#allocation6 + $0x364] sm:$0xf]
    %v6679 = vld [vmem:[#allocation6 + $0x368] sm:$0xf]
    %v6680 = vld [vmem:[#allocation6 + $0x36c] sm:$0xf]
    %v6681 = vld [vmem:[#allocation6 + $0x370] sm:$0xf]
    %v6682 = vld [vmem:[#allocation6 + $0x374] sm:$0xf]
    %v6683 = vld [vmem:[#allocation6 + $0x378] sm:$0xf]
    %v6684 = vld [vmem:[#allocation6 + $0x37c] sm:$0xf]
    %v6685 = vld [vmem:[#allocation6 + $0x380] sm:$0xf]
    %v6686 = vld [vmem:[#allocation6 + $0x384] sm:$0xf]
    %v6687 = vld [vmem:[#allocation6 + $0x388] sm:$0xf]
    %v6688 = vld [vmem:[#allocation6 + $0x38c] sm:$0xf]
    %v6689 = vld [vmem:[#allocation6 + $0x390] sm:$0xf]
    %v6690 = vld [vmem:[#allocation6 + $0x394] sm:$0xf]
    %v6691 = vld [vmem:[#allocation6 + $0x398] sm:$0xf]
    %v6692 = vld [vmem:[#allocation6 + $0x39c] sm:$0xf]
    %v6693 = vld [vmem:[#allocation6 + $0x3a0] sm:$0xf]
    %v6694 = vld [vmem:[#allocation6 + $0x3a4] sm:$0xf]
    %v6695 = vld [vmem:[#allocation6 + $0x3a8] sm:$0xf]
    %v6696 = vld [vmem:[#allocation6 + $0x3ac] sm:$0xf]
    %v6697 = vld [vmem:[#allocation6 + $0x3b0] sm:$0xf]
    %v6698 = vld [vmem:[#allocation6 + $0x3b4] sm:$0xf]
    %v6699 = vld [vmem:[#allocation6 + $0x3b8] sm:$0xf]
    %v6700 = vld [vmem:[#allocation6 + $0x3bc] sm:$0xf]
    %v6701 = vld [vmem:[#allocation6 + $0x3c0] sm:$0xf]
    %v6702 = vld [vmem:[#allocation6 + $0x3c4] sm:$0xf]
    %v6703 = vld [vmem:[#allocation6 + $0x3c8] sm:$0xf]
    %v6704 = vld [vmem:[#allocation6 + $0x3cc] sm:$0xf]
    %v6705 = vld [vmem:[#allocation6 + $0x3d0] sm:$0xf]
    %v6706 = vld [vmem:[#allocation6 + $0x3d4] sm:$0xf]
    %v6707 = vld [vmem:[#allocation6 + $0x3d8] sm:$0xf]
    %v6708 = vld [vmem:[#allocation6 + $0x3dc] sm:$0xf]
    %v6709 = vld [vmem:[#allocation6 + $0x3e0] sm:$0xf]
    %v6710 = vld [vmem:[#allocation6 + $0x3e4] sm:$0xf]
    %v6711 = vld [vmem:[#allocation6 + $0x3e8] sm:$0xf]
    %v6712 = vld [vmem:[#allocation6 + $0x3ec] sm:$0xf]
    %v6713 = vld [vmem:[#allocation6 + $0x3f0] sm:$0xf]
    %v6714 = vld [vmem:[#allocation6 + $0x3f4] sm:$0xf]
    %v6715 = vld [vmem:[#allocation6 + $0x3f8] sm:$0xf]
    %v6716 = vld [vmem:[#allocation6 + $0x3fc] sm:$0xf]
    %v6717 = vld [vmem:[#allocation7] sm:$0x1]
    %v6719 = vperm.slane %v6717, 0
    %v6977 = vunpack.c.l.b16 %v6461
    %v6978 = vunpack.c.l.b16 %v6462
    %v6979 = vunpack.c.l.b16 %v6463
    %v6980 = vunpack.c.l.b16 %v6464
    %v6981 = vunpack.c.l.b16 %v6465
    %v6982 = vunpack.c.l.b16 %v6466
    %v6983 = vunpack.c.l.b16 %v6467
    %v6984 = vunpack.c.l.b16 %v6468
    %v6985 = vunpack.c.l.b16 %v6469
    %v6986 = vunpack.c.l.b16 %v6470
    %v6987 = vunpack.c.l.b16 %v6471
    %v6988 = vunpack.c.l.b16 %v6472
    %v6989 = vunpack.c.l.b16 %v6473
    %v6990 = vunpack.c.l.b16 %v6474
    %v6991 = vunpack.c.l.b16 %v6475
    %v6992 = vunpack.c.l.b16 %v6476
    %v6993 = vunpack.c.l.b16 %v6477
    %v6994 = vunpack.c.l.b16 %v6478
    %v6995 = vunpack.c.l.b16 %v6479
    %v6996 = vunpack.c.l.b16 %v6480
    %v6997 = vunpack.c.l.b16 %v6481
    %v6998 = vunpack.c.l.b16 %v6482
    %v6999 = vunpack.c.l.b16 %v6483
    %v7000 = vunpack.c.l.b16 %v6484
    %v7001 = vunpack.c.l.b16 %v6485
    %v7002 = vunpack.c.l.b16 %v6486
    %v7003 = vunpack.c.l.b16 %v6487
    %v7004 = vunpack.c.l.b16 %v6488
    %v7005 = vunpack.c.l.b16 %v6489
    %v7006 = vunpack.c.l.b16 %v6490
    %v7007 = vunpack.c.l.b16 %v6491
    %v7008 = vunpack.c.l.b16 %v6492
    %v7009 = vunpack.c.l.b16 %v6493
    %v7010 = vunpack.c.l.b16 %v6494
    %v7011 = vunpack.c.l.b16 %v6495
    %v7012 = vunpack.c.l.b16 %v6496
    %v7013 = vunpack.c.l.b16 %v6497
    %v7014 = vunpack.c.l.b16 %v6498
    %v7015 = vunpack.c.l.b16 %v6499
    %v7016 = vunpack.c.l.b16 %v6500
    %v7017 = vunpack.c.l.b16 %v6501
    %v7018 = vunpack.c.l.b16 %v6502
    %v7019 = vunpack.c.l.b16 %v6503
    %v7020 = vunpack.c.l.b16 %v6504
    %v7021 = vunpack.c.l.b16 %v6505
    %v7022 = vunpack.c.l.b16 %v6506
    %v7023 = vunpack.c.l.b16 %v6507
    %v7024 = vunpack.c.l.b16 %v6508
    %v7025 = vunpack.c.l.b16 %v6509
    %v7026 = vunpack.c.l.b16 %v6510
    %v7027 = vunpack.c.l.b16 %v6511
    %v7028 = vunpack.c.l.b16 %v6512
    %v7029 = vunpack.c.l.b16 %v6513
    %v7030 = vunpack.c.l.b16 %v6514
    %v7031 = vunpack.c.l.b16 %v6515
    %v7032 = vunpack.c.l.b16 %v6516
    %v7033 = vunpack.c.l.b16 %v6517
    %v7034 = vunpack.c.l.b16 %v6518
    %v7035 = vunpack.c.l.b16 %v6519
    %v7036 = vunpack.c.l.b16 %v6520
    %v7037 = vunpack.c.l.b16 %v6521
    %v7038 = vunpack.c.l.b16 %v6522
    %v7039 = vunpack.c.l.b16 %v6523
    %v7040 = vunpack.c.l.b16 %v6524
    %v7041 = vunpack.c.l.b16 %v6525
    %v7042 = vunpack.c.l.b16 %v6526
    %v7043 = vunpack.c.l.b16 %v6527
    %v7044 = vunpack.c.l.b16 %v6528
    %v7045 = vunpack.c.l.b16 %v6529
    %v7046 = vunpack.c.l.b16 %v6530
    %v7047 = vunpack.c.l.b16 %v6531
    %v7048 = vunpack.c.l.b16 %v6532
    %v7049 = vunpack.c.l.b16 %v6533
    %v7050 = vunpack.c.l.b16 %v6534
    %v7051 = vunpack.c.l.b16 %v6535
    %v7052 = vunpack.c.l.b16 %v6536
    %v7053 = vunpack.c.l.b16 %v6537
    %v7054 = vunpack.c.l.b16 %v6538
    %v7055 = vunpack.c.l.b16 %v6539
    %v7056 = vunpack.c.l.b16 %v6540
    %v7057 = vunpack.c.l.b16 %v6541
    %v7058 = vunpack.c.l.b16 %v6542
    %v7059 = vunpack.c.l.b16 %v6543
    %v7060 = vunpack.c.l.b16 %v6544
    %v7061 = vunpack.c.l.b16 %v6545
    %v7062 = vunpack.c.l.b16 %v6546
    %v7063 = vunpack.c.l.b16 %v6547
    %v7064 = vunpack.c.l.b16 %v6548
    %v7065 = vunpack.c.l.b16 %v6549
    %v7066 = vunpack.c.l.b16 %v6550
    %v7067 = vunpack.c.l.b16 %v6551
    %v7068 = vunpack.c.l.b16 %v6552
    %v7069 = vunpack.c.l.b16 %v6553
    %v7070 = vunpack.c.l.b16 %v6554
    %v7071 = vunpack.c.l.b16 %v6555
    %v7072 = vunpack.c.l.b16 %v6556
    %v7073 = vunpack.c.l.b16 %v6557
    %v7074 = vunpack.c.l.b16 %v6558
    %v7075 = vunpack.c.l.b16 %v6559
    %v7076 = vunpack.c.l.b16 %v6560
    %v7077 = vunpack.c.l.b16 %v6561
    %v7078 = vunpack.c.l.b16 %v6562
    %v7079 = vunpack.c.l.b16 %v6563
    %v7080 = vunpack.c.l.b16 %v6564
    %v7081 = vunpack.c.l.b16 %v6565
    %v7082 = vunpack.c.l.b16 %v6566
    %v7083 = vunpack.c.l.b16 %v6567
    %v7084 = vunpack.c.l.b16 %v6568
    %v7085 = vunpack.c.l.b16 %v6569
    %v7086 = vunpack.c.l.b16 %v6570
    %v7087 = vunpack.c.l.b16 %v6571
    %v7088 = vunpack.c.l.b16 %v6572
    %v7089 = vunpack.c.l.b16 %v6573
    %v7090 = vunpack.c.l.b16 %v6574
    %v7091 = vunpack.c.l.b16 %v6575
    %v7092 = vunpack.c.l.b16 %v6576
    %v7093 = vunpack.c.l.b16 %v6577
    %v7094 = vunpack.c.l.b16 %v6578
    %v7095 = vunpack.c.l.b16 %v6579
    %v7096 = vunpack.c.l.b16 %v6580
    %v7097 = vunpack.c.l.b16 %v6581
    %v7098 = vunpack.c.l.b16 %v6582
    %v7099 = vunpack.c.l.b16 %v6583
    %v7100 = vunpack.c.l.b16 %v6584
    %v7101 = vunpack.c.l.b16 %v6585
    %v7102 = vunpack.c.l.b16 %v6586
    %v7103 = vunpack.c.l.b16 %v6587
    %v7104 = vunpack.c.l.b16 %v6588
    %v7105 = vunpack.c.l.b16 %v6589
    %v7106 = vunpack.c.l.b16 %v6590
    %v7107 = vunpack.c.l.b16 %v6591
    %v7108 = vunpack.c.l.b16 %v6592
    %v7109 = vunpack.c.l.b16 %v6593
    %v7110 = vunpack.c.l.b16 %v6594
    %v7111 = vunpack.c.l.b16 %v6595
    %v7112 = vunpack.c.l.b16 %v6596
    %v7113 = vunpack.c.l.b16 %v6597
    %v7114 = vunpack.c.l.b16 %v6598
    %v7115 = vunpack.c.l.b16 %v6599
    %v7116 = vunpack.c.l.b16 %v6600
    %v7117 = vunpack.c.l.b16 %v6601
    %v7118 = vunpack.c.l.b16 %v6602
    %v7119 = vunpack.c.l.b16 %v6603
    %v7120 = vunpack.c.l.b16 %v6604
    %v7121 = vunpack.c.l.b16 %v6605
    %v7122 = vunpack.c.l.b16 %v6606
    %v7123 = vunpack.c.l.b16 %v6607
    %v7124 = vunpack.c.l.b16 %v6608
    %v7125 = vunpack.c.l.b16 %v6609
    %v7126 = vunpack.c.l.b16 %v6610
    %v7127 = vunpack.c.l.b16 %v6611
    %v7128 = vunpack.c.l.b16 %v6612
    %v7129 = vunpack.c.l.b16 %v6613
    %v7130 = vunpack.c.l.b16 %v6614
    %v7131 = vunpack.c.l.b16 %v6615
    %v7132 = vunpack.c.l.b16 %v6616
    %v7133 = vunpack.c.l.b16 %v6617
    %v7134 = vunpack.c.l.b16 %v6618
    %v7135 = vunpack.c.l.b16 %v6619
    %v7136 = vunpack.c.l.b16 %v6620
    %v7137 = vunpack.c.l.b16 %v6621
    %v7138 = vunpack.c.l.b16 %v6622
    %v7139 = vunpack.c.l.b16 %v6623
    %v7140 = vunpack.c.l.b16 %v6624
    %v7141 = vunpack.c.l.b16 %v6625
    %v7142 = vunpack.c.l.b16 %v6626
    %v7143 = vunpack.c.l.b16 %v6627
    %v7144 = vunpack.c.l.b16 %v6628
    %v7145 = vunpack.c.l.b16 %v6629
    %v7146 = vunpack.c.l.b16 %v6630
    %v7147 = vunpack.c.l.b16 %v6631
    %v7148 = vunpack.c.l.b16 %v6632
    %v7149 = vunpack.c.l.b16 %v6633
    %v7150 = vunpack.c.l.b16 %v6634
    %v7151 = vunpack.c.l.b16 %v6635
    %v7152 = vunpack.c.l.b16 %v6636
    %v7153 = vunpack.c.l.b16 %v6637
    %v7154 = vunpack.c.l.b16 %v6638
    %v7155 = vunpack.c.l.b16 %v6639
    %v7156 = vunpack.c.l.b16 %v6640
    %v7157 = vunpack.c.l.b16 %v6641
    %v7158 = vunpack.c.l.b16 %v6642
    %v7159 = vunpack.c.l.b16 %v6643
    %v7160 = vunpack.c.l.b16 %v6644
    %v7161 = vunpack.c.l.b16 %v6645
    %v7162 = vunpack.c.l.b16 %v6646
    %v7163 = vunpack.c.l.b16 %v6647
    %v7164 = vunpack.c.l.b16 %v6648
    %v7165 = vunpack.c.l.b16 %v6649
    %v7166 = vunpack.c.l.b16 %v6650
    %v7167 = vunpack.c.l.b16 %v6651
    %v7168 = vunpack.c.l.b16 %v6652
    %v7169 = vunpack.c.l.b16 %v6653
    %v7170 = vunpack.c.l.b16 %v6654
    %v7171 = vunpack.c.l.b16 %v6655
    %v7172 = vunpack.c.l.b16 %v6656
    %v7173 = vunpack.c.l.b16 %v6657
    %v7174 = vunpack.c.l.b16 %v6658
    %v7175 = vunpack.c.l.b16 %v6659
    %v7176 = vunpack.c.l.b16 %v6660
    %v7177 = vunpack.c.l.b16 %v6661
    %v7178 = vunpack.c.l.b16 %v6662
    %v7179 = vunpack.c.l.b16 %v6663
    %v7180 = vunpack.c.l.b16 %v6664
    %v7181 = vunpack.c.l.b16 %v6665
    %v7182 = vunpack.c.l.b16 %v6666
    %v7183 = vunpack.c.l.b16 %v6667
    %v7184 = vunpack.c.l.b16 %v6668
    %v7185 = vunpack.c.l.b16 %v6669
    %v7186 = vunpack.c.l.b16 %v6670
    %v7187 = vunpack.c.l.b16 %v6671
    %v7188 = vunpack.c.l.b16 %v6672
    %v7189 = vunpack.c.l.b16 %v6673
    %v7190 = vunpack.c.l.b16 %v6674
    %v7191 = vunpack.c.l.b16 %v6675
    %v7192 = vunpack.c.l.b16 %v6676
    %v7193 = vunpack.c.l.b16 %v6677
    %v7194 = vunpack.c.l.b16 %v6678
    %v7195 = vunpack.c.l.b16 %v6679
    %v7196 = vunpack.c.l.b16 %v6680
    %v7197 = vunpack.c.l.b16 %v6681
    %v7198 = vunpack.c.l.b16 %v6682
    %v7199 = vunpack.c.l.b16 %v6683
    %v7200 = vunpack.c.l.b16 %v6684
    %v7201 = vunpack.c.l.b16 %v6685
    %v7202 = vunpack.c.l.b16 %v6686
    %v7203 = vunpack.c.l.b16 %v6687
    %v7204 = vunpack.c.l.b16 %v6688
    %v7205 = vunpack.c.l.b16 %v6689
    %v7206 = vunpack.c.l.b16 %v6690
    %v7207 = vunpack.c.l.b16 %v6691
    %v7208 = vunpack.c.l.b16 %v6692
    %v7209 = vunpack.c.l.b16 %v6693
    %v7210 = vunpack.c.l.b16 %v6694
    %v7211 = vunpack.c.l.b16 %v6695
    %v7212 = vunpack.c.l.b16 %v6696
    %v7213 = vunpack.c.l.b16 %v6697
    %v7214 = vunpack.c.l.b16 %v6698
    %v7215 = vunpack.c.l.b16 %v6699
    %v7216 = vunpack.c.l.b16 %v6700
    %v7217 = vunpack.c.l.b16 %v6701
    %v7218 = vunpack.c.l.b16 %v6702
    %v7219 = vunpack.c.l.b16 %v6703
    %v7220 = vunpack.c.l.b16 %v6704
    %v7221 = vunpack.c.l.b16 %v6705
    %v7222 = vunpack.c.l.b16 %v6706
    %v7223 = vunpack.c.l.b16 %v6707
    %v7224 = vunpack.c.l.b16 %v6708
    %v7225 = vunpack.c.l.b16 %v6709
    %v7226 = vunpack.c.l.b16 %v6710
    %v7227 = vunpack.c.l.b16 %v6711
    %v7228 = vunpack.c.l.b16 %v6712
    %v7229 = vunpack.c.l.b16 %v6713
    %v7230 = vunpack.c.l.b16 %v6714
    %v7231 = vunpack.c.l.b16 %v6715
    %v7232 = vunpack.c.l.b16 %v6716
    %v7233 = vpack.c.b16 %v6978, %v6977
    %v7234 = vpack.c.b16 %v6980, %v6979
    %v7235 = vpack.c.b16 %v6982, %v6981
    %v7236 = vpack.c.b16 %v6984, %v6983
    %v7237 = vpack.c.b16 %v6986, %v6985
    %v7238 = vpack.c.b16 %v6988, %v6987
    %v7239 = vpack.c.b16 %v6990, %v6989
    %v7240 = vpack.c.b16 %v6992, %v6991
    %v7241 = vpack.c.b16 %v6994, %v6993
    %v7242 = vpack.c.b16 %v6996, %v6995
    %v7243 = vpack.c.b16 %v6998, %v6997
    %v7244 = vpack.c.b16 %v7000, %v6999
    %v7245 = vpack.c.b16 %v7002, %v7001
    %v7246 = vpack.c.b16 %v7004, %v7003
    %v7247 = vpack.c.b16 %v7006, %v7005
    %v7248 = vpack.c.b16 %v7008, %v7007
    %v7249 = vpack.c.b16 %v7010, %v7009
    %v7250 = vpack.c.b16 %v7012, %v7011
    %v7251 = vpack.c.b16 %v7014, %v7013
    %v7252 = vpack.c.b16 %v7016, %v7015
    %v7253 = vpack.c.b16 %v7018, %v7017
    %v7254 = vpack.c.b16 %v7020, %v7019
    %v7255 = vpack.c.b16 %v7022, %v7021
    %v7256 = vpack.c.b16 %v7024, %v7023
    %v7257 = vpack.c.b16 %v7026, %v7025
    %v7258 = vpack.c.b16 %v7028, %v7027
    %v7259 = vpack.c.b16 %v7030, %v7029
    %v7260 = vpack.c.b16 %v7032, %v7031
    %v7261 = vpack.c.b16 %v7034, %v7033
    %v7262 = vpack.c.b16 %v7036, %v7035
    %v7263 = vpack.c.b16 %v7038, %v7037
    %v7264 = vpack.c.b16 %v7040, %v7039
    %v7265 = vpack.c.b16 %v7042, %v7041
    %v7266 = vpack.c.b16 %v7044, %v7043
    %v7267 = vpack.c.b16 %v7046, %v7045
    %v7268 = vpack.c.b16 %v7048, %v7047
    %v7269 = vpack.c.b16 %v7050, %v7049
    %v7270 = vpack.c.b16 %v7052, %v7051
    %v7271 = vpack.c.b16 %v7054, %v7053
    %v7272 = vpack.c.b16 %v7056, %v7055
    %v7273 = vpack.c.b16 %v7058, %v7057
    %v7274 = vpack.c.b16 %v7060, %v7059
    %v7275 = vpack.c.b16 %v7062, %v7061
    %v7276 = vpack.c.b16 %v7064, %v7063
    %v7277 = vpack.c.b16 %v7066, %v7065
    %v7278 = vpack.c.b16 %v7068, %v7067
    %v7279 = vpack.c.b16 %v7070, %v7069
    %v7280 = vpack.c.b16 %v7072, %v7071
    %v7281 = vpack.c.b16 %v7074, %v7073
    %v7282 = vpack.c.b16 %v7076, %v7075
    %v7283 = vpack.c.b16 %v7078, %v7077
    %v7284 = vpack.c.b16 %v7080, %v7079
    %v7285 = vpack.c.b16 %v7082, %v7081
    %v7286 = vpack.c.b16 %v7084, %v7083
    %v7287 = vpack.c.b16 %v7086, %v7085
    %v7288 = vpack.c.b16 %v7088, %v7087
    %v7289 = vpack.c.b16 %v7090, %v7089
    %v7290 = vpack.c.b16 %v7092, %v7091
    %v7291 = vpack.c.b16 %v7094, %v7093
    %v7292 = vpack.c.b16 %v7096, %v7095
    %v7293 = vpack.c.b16 %v7098, %v7097
    %v7294 = vpack.c.b16 %v7100, %v7099
    %v7295 = vpack.c.b16 %v7102, %v7101
    %v7296 = vpack.c.b16 %v7104, %v7103
    %v7297 = vpack.c.b16 %v7106, %v7105
    %v7298 = vpack.c.b16 %v7108, %v7107
    %v7299 = vpack.c.b16 %v7110, %v7109
    %v7300 = vpack.c.b16 %v7112, %v7111
    %v7301 = vpack.c.b16 %v7114, %v7113
    %v7302 = vpack.c.b16 %v7116, %v7115
    %v7303 = vpack.c.b16 %v7118, %v7117
    %v7304 = vpack.c.b16 %v7120, %v7119
    %v7305 = vpack.c.b16 %v7122, %v7121
    %v7306 = vpack.c.b16 %v7124, %v7123
    %v7307 = vpack.c.b16 %v7126, %v7125
    %v7308 = vpack.c.b16 %v7128, %v7127
    %v7309 = vpack.c.b16 %v7130, %v7129
    %v7310 = vpack.c.b16 %v7132, %v7131
    %v7311 = vpack.c.b16 %v7134, %v7133
    %v7312 = vpack.c.b16 %v7136, %v7135
    %v7313 = vpack.c.b16 %v7138, %v7137
    %v7314 = vpack.c.b16 %v7140, %v7139
    %v7315 = vpack.c.b16 %v7142, %v7141
    %v7316 = vpack.c.b16 %v7144, %v7143
    %v7317 = vpack.c.b16 %v7146, %v7145
    %v7318 = vpack.c.b16 %v7148, %v7147
    %v7319 = vpack.c.b16 %v7150, %v7149
    %v7320 = vpack.c.b16 %v7152, %v7151
    %v7321 = vpack.c.b16 %v7154, %v7153
    %v7322 = vpack.c.b16 %v7156, %v7155
    %v7323 = vpack.c.b16 %v7158, %v7157
    %v7324 = vpack.c.b16 %v7160, %v7159
    %v7325 = vpack.c.b16 %v7162, %v7161
    %v7326 = vpack.c.b16 %v7164, %v7163
    %v7327 = vpack.c.b16 %v7166, %v7165
    %v7328 = vpack.c.b16 %v7168, %v7167
    %v7329 = vpack.c.b16 %v7170, %v7169
    %v7330 = vpack.c.b16 %v7172, %v7171
    %v7331 = vpack.c.b16 %v7174, %v7173
    %v7332 = vpack.c.b16 %v7176, %v7175
    %v7333 = vpack.c.b16 %v7178, %v7177
    %v7334 = vpack.c.b16 %v7180, %v7179
    %v7335 = vpack.c.b16 %v7182, %v7181
    %v7336 = vpack.c.b16 %v7184, %v7183
    %v7337 = vpack.c.b16 %v7186, %v7185
    %v7338 = vpack.c.b16 %v7188, %v7187
    %v7339 = vpack.c.b16 %v7190, %v7189
    %v7340 = vpack.c.b16 %v7192, %v7191
    %v7341 = vpack.c.b16 %v7194, %v7193
    %v7342 = vpack.c.b16 %v7196, %v7195
    %v7343 = vpack.c.b16 %v7198, %v7197
    %v7344 = vpack.c.b16 %v7200, %v7199
    %v7345 = vpack.c.b16 %v7202, %v7201
    %v7346 = vpack.c.b16 %v7204, %v7203
    %v7347 = vpack.c.b16 %v7206, %v7205
    %v7348 = vpack.c.b16 %v7208, %v7207
    %v7349 = vpack.c.b16 %v7210, %v7209
    %v7350 = vpack.c.b16 %v7212, %v7211
    %v7351 = vpack.c.b16 %v7214, %v7213
    %v7352 = vpack.c.b16 %v7216, %v7215
    %v7353 = vpack.c.b16 %v7218, %v7217
    %v7354 = vpack.c.b16 %v7220, %v7219
    %v7355 = vpack.c.b16 %v7222, %v7221
    %v7356 = vpack.c.b16 %v7224, %v7223
    %v7357 = vpack.c.b16 %v7226, %v7225
    %v7358 = vpack.c.b16 %v7228, %v7227
    %v7359 = vpack.c.b16 %v7230, %v7229
    %v7360 = vpack.c.b16 %v7232, %v7231
    %7489 = vmatpush.bf16.msra.mxu0 %v7240
    %7490 = vmatpush.bf16.msra.mxu0 %v7239
    %7491 = vmatpush.bf16.msra.mxu0 %v7238
    %7492 = vmatpush.bf16.msra.mxu0 %v7237
    %7493 = vmatpush.bf16.msra.mxu0 %v7236
    %7494 = vmatpush.bf16.msra.mxu0 %v7235
    %7495 = vmatpush.bf16.msra.mxu0 %v7234
    %7496 = vmatpush.bf16.msra.mxu0 %v7233
    %7497 = vmatmul.bf16.gmra.mxu0 %v6445
    %v7498 = vpop.f32.mrf.mxu0
    %v7499 = vadd.f32 %v6719, %v7498
    %v7500 = vpop.f32.mrf.mxu0
    %v7501 = vadd.f32 %v6719, %v7500
    %7502 = vdwg.mxu0
    %7503 = vmatpush.bf16.msra.mxu0 %v7248
    %7504 = vmatpush.bf16.msra.mxu0 %v7247
    %7505 = vmatpush.bf16.msra.mxu0 %v7246
    %7506 = vmatpush.bf16.msra.mxu0 %v7245
    %7507 = vmatpush.bf16.msra.mxu0 %v7244
    %7508 = vmatpush.bf16.msra.mxu0 %v7243
    %7509 = vmatpush.bf16.msra.mxu0 %v7242
    %7510 = vmatpush.bf16.msra.mxu0 %v7241
    %7511 = vmatmul.bf16.gmra.mxu0 %v6446
    %v7512 = vpop.f32.mrf.mxu0
    %v7513 = vadd.f32 %v7499, %v7512
    %v7514 = vpop.f32.mrf.mxu0
    %v7515 = vadd.f32 %v7501, %v7514
    %7516 = vdwg.mxu0
    %7517 = vmatpush.bf16.msra.mxu0 %v7256
    %7518 = vmatpush.bf16.msra.mxu0 %v7255
    %7519 = vmatpush.bf16.msra.mxu0 %v7254
    %7520 = vmatpush.bf16.msra.mxu0 %v7253
    %7521 = vmatpush.bf16.msra.mxu0 %v7252
    %7522 = vmatpush.bf16.msra.mxu0 %v7251
    %7523 = vmatpush.bf16.msra.mxu0 %v7250
    %7524 = vmatpush.bf16.msra.mxu0 %v7249
    %7525 = vmatmul.bf16.gmra.mxu0 %v6447
    %v7526 = vpop.f32.mrf.mxu0
    %v7527 = vadd.f32 %v7513, %v7526
    %v7528 = vpop.f32.mrf.mxu0
    %v7529 = vadd.f32 %v7515, %v7528
    %7530 = vdwg.mxu0
    %7531 = vmatpush.bf16.msra.mxu0 %v7264
    %7532 = vmatpush.bf16.msra.mxu0 %v7263
    %7533 = vmatpush.bf16.msra.mxu0 %v7262
    %7534 = vmatpush.bf16.msra.mxu0 %v7261
    %7535 = vmatpush.bf16.msra.mxu0 %v7260
    %7536 = vmatpush.bf16.msra.mxu0 %v7259
    %7537 = vmatpush.bf16.msra.mxu0 %v7258
    %7538 = vmatpush.bf16.msra.mxu0 %v7257
    %7539 = vmatmul.bf16.gmra.mxu0 %v6448
    %v7540 = vpop.f32.mrf.mxu0
    %v7541 = vadd.f32 %v7527, %v7540
    %v7542 = vpop.f32.mrf.mxu0
    %v7543 = vadd.f32 %v7529, %v7542
    %7544 = vdwg.mxu0
    %7545 = vmatpush.bf16.msra.mxu0 %v7272
    %7546 = vmatpush.bf16.msra.mxu0 %v7271
    %7547 = vmatpush.bf16.msra.mxu0 %v7270
    %7548 = vmatpush.bf16.msra.mxu0 %v7269
    %7549 = vmatpush.bf16.msra.mxu0 %v7268
    %7550 = vmatpush.bf16.msra.mxu0 %v7267
    %7551 = vmatpush.bf16.msra.mxu0 %v7266
    %7552 = vmatpush.bf16.msra.mxu0 %v7265
    %7553 = vmatmul.bf16.gmra.mxu0 %v6449
    %v7554 = vpop.f32.mrf.mxu0
    %v7555 = vadd.f32 %v7541, %v7554
    %v7556 = vpop.f32.mrf.mxu0
    %v7557 = vadd.f32 %v7543, %v7556
    %7558 = vdwg.mxu0
    %7559 = vmatpush.bf16.msra.mxu0 %v7280
    %7560 = vmatpush.bf16.msra.mxu0 %v7279
    %7561 = vmatpush.bf16.msra.mxu0 %v7278
    %7562 = vmatpush.bf16.msra.mxu0 %v7277
    %7563 = vmatpush.bf16.msra.mxu0 %v7276
    %7564 = vmatpush.bf16.msra.mxu0 %v7275
    %7565 = vmatpush.bf16.msra.mxu0 %v7274
    %7566 = vmatpush.bf16.msra.mxu0 %v7273
    %7567 = vmatmul.bf16.gmra.mxu0 %v6450
    %v7568 = vpop.f32.mrf.mxu0
    %v7569 = vadd.f32 %v7555, %v7568
    %v7570 = vpop.f32.mrf.mxu0
    %v7571 = vadd.f32 %v7557, %v7570
    %7572 = vdwg.mxu0
    %7573 = vmatpush.bf16.msra.mxu0 %v7288
    %7574 = vmatpush.bf16.msra.mxu0 %v7287
    %7575 = vmatpush.bf16.msra.mxu0 %v7286
    %7576 = vmatpush.bf16.msra.mxu0 %v7285
    %7577 = vmatpush.bf16.msra.mxu0 %v7284
    %7578 = vmatpush.bf16.msra.mxu0 %v7283
    %7579 = vmatpush.bf16.msra.mxu0 %v7282
    %7580 = vmatpush.bf16.msra.mxu0 %v7281
    %7581 = vmatmul.bf16.gmra.mxu0 %v6451
    %v7582 = vpop.f32.mrf.mxu0
    %v7583 = vadd.f32 %v7569, %v7582
    %v7584 = vpop.f32.mrf.mxu0
    %v7585 = vadd.f32 %v7571, %v7584
    %7586 = vdwg.mxu0
    %7587 = vmatpush.bf16.msra.mxu0 %v7296
    %7588 = vmatpush.bf16.msra.mxu0 %v7295
    %7589 = vmatpush.bf16.msra.mxu0 %v7294
    %7590 = vmatpush.bf16.msra.mxu0 %v7293
    %7591 = vmatpush.bf16.msra.mxu0 %v7292
    %7592 = vmatpush.bf16.msra.mxu0 %v7291
    %7593 = vmatpush.bf16.msra.mxu0 %v7290
    %7594 = vmatpush.bf16.msra.mxu0 %v7289
    %7595 = vmatmul.bf16.gmra.mxu0 %v6452
    %v7596 = vpop.f32.mrf.mxu0
    %v7597 = vadd.f32 %v7583, %v7596
    %v7598 = vpop.f32.mrf.mxu0
    %v7599 = vadd.f32 %v7585, %v7598
    %7600 = vdwg.mxu0
    %7601 = vmatpush.bf16.msra.mxu0 %v7304
    %7602 = vmatpush.bf16.msra.mxu0 %v7303
    %7603 = vmatpush.bf16.msra.mxu0 %v7302
    %7604 = vmatpush.bf16.msra.mxu0 %v7301
    %7605 = vmatpush.bf16.msra.mxu0 %v7300
    %7606 = vmatpush.bf16.msra.mxu0 %v7299
    %7607 = vmatpush.bf16.msra.mxu0 %v7298
    %7608 = vmatpush.bf16.msra.mxu0 %v7297
    %7609 = vmatmul.bf16.gmra.mxu0 %v6453
    %v7610 = vpop.f32.mrf.mxu0
    %v7611 = vadd.f32 %v7597, %v7610
    %v7612 = vpop.f32.mrf.mxu0
    %v7613 = vadd.f32 %v7599, %v7612
    %7614 = vdwg.mxu0
    %7615 = vmatpush.bf16.msra.mxu0 %v7312
    %7616 = vmatpush.bf16.msra.mxu0 %v7311
    %7617 = vmatpush.bf16.msra.mxu0 %v7310
    %7618 = vmatpush.bf16.msra.mxu0 %v7309
    %7619 = vmatpush.bf16.msra.mxu0 %v7308
    %7620 = vmatpush.bf16.msra.mxu0 %v7307
    %7621 = vmatpush.bf16.msra.mxu0 %v7306
    %7622 = vmatpush.bf16.msra.mxu0 %v7305
    %7623 = vmatmul.bf16.gmra.mxu0 %v6454
    %v7624 = vpop.f32.mrf.mxu0
    %v7625 = vadd.f32 %v7611, %v7624
    %v7626 = vpop.f32.mrf.mxu0
    %v7627 = vadd.f32 %v7613, %v7626
    %7628 = vdwg.mxu0
    %7629 = vmatpush.bf16.msra.mxu0 %v7320
    %7630 = vmatpush.bf16.msra.mxu0 %v7319
    %7631 = vmatpush.bf16.msra.mxu0 %v7318
    %7632 = vmatpush.bf16.msra.mxu0 %v7317
    %7633 = vmatpush.bf16.msra.mxu0 %v7316
    %7634 = vmatpush.bf16.msra.mxu0 %v7315
    %7635 = vmatpush.bf16.msra.mxu0 %v7314
    %7636 = vmatpush.bf16.msra.mxu0 %v7313
    %7637 = vmatmul.bf16.gmra.mxu0 %v6455
    %v7638 = vpop.f32.mrf.mxu0
    %v7639 = vadd.f32 %v7625, %v7638
    %v7640 = vpop.f32.mrf.mxu0
    %v7641 = vadd.f32 %v7627, %v7640
    %7642 = vdwg.mxu0
    %7643 = vmatpush.bf16.msra.mxu0 %v7328
    %7644 = vmatpush.bf16.msra.mxu0 %v7327
    %7645 = vmatpush.bf16.msra.mxu0 %v7326
    %7646 = vmatpush.bf16.msra.mxu0 %v7325
    %7647 = vmatpush.bf16.msra.mxu0 %v7324
    %7648 = vmatpush.bf16.msra.mxu0 %v7323
    %7649 = vmatpush.bf16.msra.mxu0 %v7322
    %7650 = vmatpush.bf16.msra.mxu0 %v7321
    %7651 = vmatmul.bf16.gmra.mxu0 %v6456
    %v7652 = vpop.f32.mrf.mxu0
    %v7653 = vadd.f32 %v7639, %v7652
    %v7654 = vpop.f32.mrf.mxu0
    %v7655 = vadd.f32 %v7641, %v7654
    %7656 = vdwg.mxu0
    %7657 = vmatpush.bf16.msra.mxu0 %v7336
    %7658 = vmatpush.bf16.msra.mxu0 %v7335
    %7659 = vmatpush.bf16.msra.mxu0 %v7334
    %7660 = vmatpush.bf16.msra.mxu0 %v7333
    %7661 = vmatpush.bf16.msra.mxu0 %v7332
    %7662 = vmatpush.bf16.msra.mxu0 %v7331
    %7663 = vmatpush.bf16.msra.mxu0 %v7330
    %7664 = vmatpush.bf16.msra.mxu0 %v7329
    %7665 = vmatmul.bf16.gmra.mxu0 %v6457
    %v7666 = vpop.f32.mrf.mxu0
    %v7667 = vadd.f32 %v7653, %v7666
    %v7668 = vpop.f32.mrf.mxu0
    %v7669 = vadd.f32 %v7655, %v7668
    %7670 = vdwg.mxu0
    %7671 = vmatpush.bf16.msra.mxu0 %v7344
    %7672 = vmatpush.bf16.msra.mxu0 %v7343
    %7673 = vmatpush.bf16.msra.mxu0 %v7342
    %7674 = vmatpush.bf16.msra.mxu0 %v7341
    %7675 = vmatpush.bf16.msra.mxu0 %v7340
    %7676 = vmatpush.bf16.msra.mxu0 %v7339
    %7677 = vmatpush.bf16.msra.mxu0 %v7338
    %7678 = vmatpush.bf16.msra.mxu0 %v7337
    %7679 = vmatmul.bf16.gmra.mxu0 %v6458
    %v7680 = vpop.f32.mrf.mxu0
    %v7681 = vadd.f32 %v7667, %v7680
    %v7682 = vpop.f32.mrf.mxu0
    %v7683 = vadd.f32 %v7669, %v7682
    %7684 = vdwg.mxu0
    %7685 = vmatpush.bf16.msra.mxu0 %v7352
    %7686 = vmatpush.bf16.msra.mxu0 %v7351
    %7687 = vmatpush.bf16.msra.mxu0 %v7350
    %7688 = vmatpush.bf16.msra.mxu0 %v7349
    %7689 = vmatpush.bf16.msra.mxu0 %v7348
    %7690 = vmatpush.bf16.msra.mxu0 %v7347
    %7691 = vmatpush.bf16.msra.mxu0 %v7346
    %7692 = vmatpush.bf16.msra.mxu0 %v7345
    %7693 = vmatmul.bf16.gmra.mxu0 %v6459
    %v7694 = vpop.f32.mrf.mxu0
    %v7695 = vadd.f32 %v7681, %v7694
    %v7696 = vpop.f32.mrf.mxu0
    %v7697 = vadd.f32 %v7683, %v7696
    %7698 = vdwg.mxu0
    %7699 = vmatpush.bf16.msra.mxu0 %v7360
    %7700 = vmatpush.bf16.msra.mxu0 %v7359
    %7701 = vmatpush.bf16.msra.mxu0 %v7358
    %7702 = vmatpush.bf16.msra.mxu0 %v7357
    %7703 = vmatpush.bf16.msra.mxu0 %v7356
    %7704 = vmatpush.bf16.msra.mxu0 %v7355
    %7705 = vmatpush.bf16.msra.mxu0 %v7354
    %7706 = vmatpush.bf16.msra.mxu0 %v7353
    %7707 = vmatmul.bf16.gmra.mxu0 %v6460
    %v7708 = vpop.f32.mrf.mxu0
    %v7709 = vadd.f32 %v7695, %v7708
    %v7710 = vpop.f32.mrf.mxu0
    %v7711 = vadd.f32 %v7697, %v7710
    %7712 = vdwg.mxu0
    %7713 = vst [vmem:[%s5] sm:$0xff] %v7709
    %7714 = vst [vmem:[%s5 + $0x8] sm:$0xff] %v7711
    // Predicated region
    $region38: #{mlp_forward.1} parent=1 // pred_check
      _
    $region39: #{mlp_forward.1} parent=1 // pred_check_branch
      %7716 = sbr.rel (0) target = $region41
    $region40: #{mlp_forward.1} parent=1 // pred_region
      _
    $region41: #{mlp_forward.1} parent=1 // pred_fallthru
      _
    // Predicated region
    $region42: #{mlp_forward.1} parent=1 // pred_check
      _
    $region43: #{mlp_forward.1} parent=1 // pred_check_branch
      %7718 = sbr.rel (0) target = $region45
    $region44: #{mlp_forward.1} parent=1 // pred_region
      _
    $region45: #{mlp_forward.1} parent=1 // pred_fallthru
      _
    %7719 = vsyncpa [#allocation3], 1
    %7720 = vsyncpa [#allocation5], 1
    %7721 = vsyncpa [#allocation8], 1

</llo_original>
